<compile_context>
chip_gen: v7x
topology: tpu7x:2x2x1
jax: 0.10.0
libtpu: 0.0.40
codegen_flags: <defaults>
</compile_context>

<pallas_src>
import functools

import numpy as np

import jax
import jax.numpy as jnp
from jax import lax
from jax.experimental import pallas as pl
from jax.experimental.pallas import tpu as pltpu


# -----------------------------------------------------------------------------
# Parameter preparation — hoisted out of the forward path, done once per params.
# torch Conv1d weight (C_out, C_in, K) -> (C_out, K*C_in) so the K taps merge
# into one MXU contraction; bias -> (C_out, 1) f32 column (epilogue stays f32).
# -----------------------------------------------------------------------------
def _fold_conv_weight(w_oik, dtype):
    c_out, c_in, k = w_oik.shape
    # [co, k*C_in + ci] = w[co, ci, k]  (must match the in-kernel window stack)
    return jnp.transpose(w_oik, (0, 2, 1)).reshape(c_out, k * c_in).astype(dtype)


def prepare_params(params, dtype=jnp.float32):
    """params: list of (w1, b1, w2, b2) in torch Conv1d layout.

    dtype controls the MXU operand dtype (use jnp.bfloat16 on v6e/v7x); biases and
    all elementwise epilogues stay f32."""
    prepped = []
    for (w1, b1, w2, b2) in params:
        prepped.append((
            _fold_conv_weight(w1, dtype), b1.reshape(-1, 1).astype(jnp.float32),
            _fold_conv_weight(w2, dtype), b2.reshape(-1, 1).astype(jnp.float32)))
    return prepped


# -----------------------------------------------------------------------------
# Host-built MaxPool1d(2) selection matrix (grid-invariant kernel input).
# Input columns: pairwise-max array m of width w_in_m laid out with per-batch
# stride s_in.  Output columns: pooled slab of width b*s_out (per-batch stride
# s_out).  Exact 0/1 entries; applied with HIGHEST precision => exact selection.
# -----------------------------------------------------------------------------
def _pool_select_matrix(w_in_m, s_in, s_out, b):
    sel = np.zeros((w_in_m, b * s_out), dtype=np.float32)
    for bb in range(b):
        for l in range(s_out):
            r = bb * s_in + 2 * l
            if r < w_in_m:
                sel[r, bb * s_out + l] = 1.0
    return jnp.asarray(sel)


# -----------------------------------------------------------------------------
# Fused encoder kernel: one grid step = B batch elements, ALL blocks.
# Activations are 2-D (C, B*S) slabs; batch lives in the lane dimension.
# -----------------------------------------------------------------------------
def _make_encoder_kernel(nblocks, K):
    def conv1d_relu(h, w_ref, b_ref):
        # h: (C_in, W) f32 slab.  Cast ONCE before im2col (bf16 path), then stack
        # the K shifted lane windows into a single (K*C_in, W-K+1) MXU operand.
        w = w_ref[...]
        hc = h.astype(w.dtype)
        w_out = hc.shape[1] - (K - 1)
        win = jnp.concatenate([hc[:, k:k + w_out] for k in range(K)], axis=0)
        y = jnp.dot(w, win, preferred_element_type=jnp.float32)
        y = y + b_ref[...]                         # (C_out,1) f32, broadcasts on lanes
        return jnp.maximum(y, 0.0)                 # f32 (C_out, W-K+1)

    def kernel(*refs):
        x_ref = refs[0]
        w_refs = refs[1:1 + 4 * nblocks]
        p_refs = refs[1 + 4 * nblocks:5 * nblocks]     # nblocks-1 pool matrices
        out_refs = refs[5 * nblocks:]

        h = x_ref[...]                                  # (C0, B*S0), compute dtype
        for i in range(nblocks):                        # static unroll over blocks
            w1, b1, w2, b2 = w_refs[4 * i:4 * i + 4]
            h = conv1d_relu(h, w1, b1)
            h = conv1d_relu(h, w2, b2)
            # Lane-dense slab store; wrapper unpacks to flatten(1,-1) order.
            out_refs[i][0] = h.astype(out_refs[i].dtype)
            if i + 1 < nblocks:                         # pool feeds the next block
                m = jnp.maximum(h[:, :-1], h[:, 1:])    # pairwise max (VPU)
                h = jnp.dot(m, p_refs[i][...],          # ONE exact selection matmul
                            preferred_element_type=jnp.float32,
                            precision=lax.Precision.HIGHEST)
    return kernel


# -----------------------------------------------------------------------------
# Encoder forward: one pallas_call for the whole encoder, batch-blocked grid.
# -----------------------------------------------------------------------------
@functools.partial(jax.jit, static_argnames=("kernel_size", "block_b"))
def encoder_forward(x_ncl, prepped_params, kernel_size=3, block_b=8):
    """x_ncl: (N, C0, L0) PyTorch NCL.  prepped_params: output of prepare_params.
    Returns list of flattened features, each (N, C*L) in flatten(1,-1) order."""
    K = kernel_size
    nblocks = len(prepped_params)
    N, C0, L0 = x_ncl.shape
    cdt = prepped_params[0][0].dtype

    B = max(1, min(block_b, N))
    G = pl.cdiv(N, B)
    N_pad = G * B
    assert (B * L0) % 128 == 0 or G == 1, "choose block_b so B*L0 is a multiple of 128"

    # ---- static per-block plan: stride S_i (per-batch lane stride), valid lengths.
    strides = [L0]
    l_in = L0
    block_info = []                      # (c_out, l_feat, s_i, w_feat)
    for i, (w1m, _, _, _) in enumerate(prepped_params):
        s_i = strides[i]
        c_out = w1m.shape[0]
        l_feat = l_in - 2 * (K - 1)      # two valid convs
        assert l_feat > 0, "sequence too short for this encoder depth"
        w_feat = B * s_i - 2 * (K - 1)
        block_info.append((c_out, l_feat, s_i, w_feat))
        if i + 1 < nblocks:
            strides.append(s_i // 2)     # pooled per-batch stride
            l_in = l_feat // 2           # MaxPool1d(2) valid length

    # ---- grid-invariant pooling selection matrices (hoisted out of the kernel).
    pool_mats = [
        _pool_select_matrix(block_info[i][3] - 1, block_info[i][2], strides[i + 1], B)
        for i in range(nblocks - 1)
    ]

    # ---- input: fold batch into the lane axis (per-batch stride L0).
    x = x_ncl.astype(cdt)
    if N_pad != N:
        x = jnp.pad(x, ((0, N_pad - N), (0, 0), (0, 0)))
    x_flat = jnp.transpose(x, (1, 0, 2)).reshape(C0, N_pad * L0)

    in_specs = [pl.BlockSpec((C0, B * L0), lambda g: (0, g))]
    operands = [x_flat]
    for blk in prepped_params:
        for t in blk:
            operands.append(t)
            in_specs.append(pl.BlockSpec(t.shape, lambda g: (0, 0)))
    for pm in pool_mats:
        operands.append(pm)
        in_specs.append(pl.BlockSpec(pm.shape, lambda g: (0, 0)))

    out_shape = tuple(jax.ShapeDtypeStruct((G, c, w), cdt)
                      for (c, _, _, w) in block_info)
    out_specs = tuple(pl.BlockSpec((1, c, w), lambda g: (g, 0, 0))
                      for (c, _, _, w) in block_info)

    slabs = pl.pallas_call(
        _make_encoder_kernel(nblocks, K),
        out_shape=out_shape,
        grid=(G,),
        in_specs=in_specs,
        out_specs=out_specs,
        compiler_params=pltpu.CompilerParams(
            dimension_semantics=("parallel",)),   # v7x: batch blocks across both TCs
    )(*operands)

    # ---- unpack slabs to PyTorch flatten(1,-1) features (tiny wrapper-side ops).
    ftrs = []
    for slab, (c, l_feat, s_i, w_feat) in zip(slabs, block_info):
        f = jnp.pad(slab, ((0, 0), (0, 0), (0, B * s_i - w_feat)))   # (G, c, B*S)
        f = f.reshape(G, c, B, s_i).transpose(0, 2, 1, 3)            # (G, B, c, S)
        f = f.reshape(N_pad, c, s_i)[:N, :, :l_feat]
        ftrs.append(f.reshape(N, c * l_feat))
    return ftrs


# -----------------------------------------------------------------------------
# Deterministic parameter init (synthetic; torch Conv1d layout).
# -----------------------------------------------------------------------------
def init_params(key, chs, K=3):
    params = []
    for i in range(len(chs) - 1):
        in_ch, out_ch = chs[i], chs[i + 1]
        key, k1, k2, k3, k4 = jax.random.split(key, 5)
        w1 = jax.random.normal(k1, (out_ch, in_ch, K), jnp.float32) * 0.1
        b1 = jax.random.normal(k2, (out_ch,), jnp.float32) * 0.1
        w2 = jax.random.normal(k3, (out_ch, out_ch, K), jnp.float32) * 0.1
        b2 = jax.random.normal(k4, (out_ch,), jnp.float32) * 0.1
        params.append((w1, b1, w2, b2))
    return params


# -----------------------------------------------------------------------------
# Pure-JAX reference (matches the PyTorch forward semantics) for validation.
# -----------------------------------------------------------------------------
def _ref_conv1d(x_ncl, w, b):
    y = lax.conv_general_dilated(
        x_ncl, w, window_strides=(1,), padding="VALID",
        dimension_numbers=("NCH", "OIH", "NCH"))
    return y + b[None, :, None]


def ref_forward(x_ncl, params):
    ftrs = []
    x = x_ncl
    for (w1, b1, w2, b2) in params:
        x = jnp.maximum(_ref_conv1d(x, w1, b1), 0.0)
        x = jnp.maximum(_ref_conv1d(x, w2, b2), 0.0)
        ftrs.append(x.reshape(x.shape[0], -1))
        N, C, L = x.shape
        Lp = L // 2
        x = x[:, :, : 2 * Lp].reshape(N, C, Lp, 2).max(axis=-1)
    return ftrs


if __name__ == "__main__":
    # Small config structurally identical to Encoder(chs=..., kernel_size=3);
    # the Decoder would use params.chs_encoder here.
    chs = (16, 8, 8, 8)   # 3 Blocks
    K = 3
    N, L0 = 32, 64        # grid = 4 batch blocks of 8 -> 2 pipelined steps per TC on v7x

    key = jax.random.PRNGKey(0)
    key, kx = jax.random.split(key)
    x = jax.random.normal(kx, (N, chs[0], L0), jnp.float32)   # PyTorch NCL input
    params = init_params(key, chs, K=K)

    # Weight folding hoisted out of the forward path (once per parameter set).
    # On v6e/v7x at real sizes: prepare_params(params, dtype=jnp.bfloat16).
    prepped = prepare_params(params)

    ftrs = encoder_forward(x, prepped, kernel_size=K, block_b=8)
    ftrs = [jax.block_until_ready(f) for f in ftrs]

    refs = ref_forward(x, params)
    for got, want in zip(ftrs, refs):
        assert got.shape == want.shape, (got.shape, want.shape)
        if not bool(jnp.allclose(got, want, atol=1e-4, rtol=1e-4)):
            raise SystemExit("MISMATCH vs. pure-JAX reference")

    print("KERNEL_OK")
</pallas_src>

<mosaic_0001>
module attributes {stable_mosaic.version = 11 : i64} {
  func.func @kernel(%arg0: i32, %arg1: memref<16x512xf32, #tpu.memory_space<vmem>>, %arg2: memref<8x48xf32, #tpu.memory_space<vmem>>, %arg3: memref<8x1xf32, #tpu.memory_space<vmem>>, %arg4: memref<8x24xf32, #tpu.memory_space<vmem>>, %arg5: memref<8x1xf32, #tpu.memory_space<vmem>>, %arg6: memref<8x24xf32, #tpu.memory_space<vmem>>, %arg7: memref<8x1xf32, #tpu.memory_space<vmem>>, %arg8: memref<8x24xf32, #tpu.memory_space<vmem>>, %arg9: memref<8x1xf32, #tpu.memory_space<vmem>>, %arg10: memref<8x24xf32, #tpu.memory_space<vmem>>, %arg11: memref<8x1xf32, #tpu.memory_space<vmem>>, %arg12: memref<8x24xf32, #tpu.memory_space<vmem>>, %arg13: memref<8x1xf32, #tpu.memory_space<vmem>>, %arg14: memref<507x256xf32, #tpu.memory_space<vmem>>, %arg15: memref<251x128xf32, #tpu.memory_space<vmem>>, %arg16: memref<1x8x508xf32, #tpu.memory_space<vmem>>, %arg17: memref<1x8x252xf32, #tpu.memory_space<vmem>>, %arg18: memref<1x8x124xf32, #tpu.memory_space<vmem>>) attributes {dimension_semantics = [#tpu.dimension_semantics<parallel>], iteration_bounds = array<i64: 4>, scalar_prefetch = 0 : i64, scratch_operands = 0 : i64, tpu.core_type = #tpu.core_type<tc>, window_params = [{transform_indices = @transform_0, window_bounds = array<i64: 16, 512>}, {pipeline_mode = #tpu.pipeline_mode<synchronous>, transform_indices = @transform_1, window_bounds = array<i64: 8, 48>}, {pipeline_mode = #tpu.pipeline_mode<synchronous>, transform_indices = @transform_2, window_bounds = array<i64: 8, 1>}, {pipeline_mode = #tpu.pipeline_mode<synchronous>, transform_indices = @transform_3, window_bounds = array<i64: 8, 24>}, {pipeline_mode = #tpu.pipeline_mode<synchronous>, transform_indices = @transform_4, window_bounds = array<i64: 8, 1>}, {pipeline_mode = #tpu.pipeline_mode<synchronous>, transform_indices = @transform_5, window_bounds = array<i64: 8, 24>}, {pipeline_mode = #tpu.pipeline_mode<synchronous>, transform_indices = @transform_6, window_bounds = array<i64: 8, 1>}, {pipeline_mode = #tpu.pipeline_mode<synchronous>, transform_indices = @transform_7, window_bounds = array<i64: 8, 24>}, {pipeline_mode = #tpu.pipeline_mode<synchronous>, transform_indices = @transform_8, window_bounds = array<i64: 8, 1>}, {pipeline_mode = #tpu.pipeline_mode<synchronous>, transform_indices = @transform_9, window_bounds = array<i64: 8, 24>}, {pipeline_mode = #tpu.pipeline_mode<synchronous>, transform_indices = @transform_10, window_bounds = array<i64: 8, 1>}, {pipeline_mode = #tpu.pipeline_mode<synchronous>, transform_indices = @transform_11, window_bounds = array<i64: 8, 24>}, {pipeline_mode = #tpu.pipeline_mode<synchronous>, transform_indices = @transform_12, window_bounds = array<i64: 8, 1>}, {pipeline_mode = #tpu.pipeline_mode<synchronous>, transform_indices = @transform_13, window_bounds = array<i64: 507, 256>}, {pipeline_mode = #tpu.pipeline_mode<synchronous>, transform_indices = @transform_14, window_bounds = array<i64: 251, 128>}, {transform_indices = @transform_15, window_bounds = array<i64: 1, 8, 508>}, {transform_indices = @transform_16, window_bounds = array<i64: 1, 8, 252>}, {transform_indices = @transform_17, window_bounds = array<i64: 1, 8, 124>}]} {
    %c0 = arith.constant 0 : index
    %c0_0 = arith.constant 0 : index
    %0 = vector.load %arg1[%c0, %c0_0] : memref<16x512xf32, #tpu.memory_space<vmem>>, vector<16x512xf32>
    %c0_1 = arith.constant 0 : index
    %c0_2 = arith.constant 0 : index
    %1 = vector.load %arg2[%c0_1, %c0_2] : memref<8x48xf32, #tpu.memory_space<vmem>>, vector<8x48xf32>
    %2 = vector.extract_strided_slice %0 {offsets = [0, 0], sizes = [16, 510], strides = [1, 1]} : vector<16x512xf32> to vector<16x510xf32>
    %3 = vector.extract_strided_slice %0 {offsets = [0, 1], sizes = [16, 510], strides = [1, 1]} : vector<16x512xf32> to vector<16x510xf32>
    %4 = vector.extract_strided_slice %0 {offsets = [0, 2], sizes = [16, 510], strides = [1, 1]} : vector<16x512xf32> to vector<16x510xf32>
    %5 = tpu.concatenate %2, %3, %4 in 0 : vector<16x510xf32>, vector<16x510xf32>, vector<16x510xf32> -> vector<48x510xf32>
    %cst = arith.constant dense<0.000000e+00> : vector<8x510xf32>
    %6 = tpu.matmul %1, %5, %cst {dimension_numbers = #tpu.dot_dimension_numbers<[1], [0], [0], [1], [0, 0, 1, 1], [], []>} : vector<8x48xf32>, vector<48x510xf32>, vector<8x510xf32> -> vector<8x510xf32>
    %c0_3 = arith.constant 0 : index
    %c0_4 = arith.constant 0 : index
    %7 = vector.load %arg3[%c0_3, %c0_4] : memref<8x1xf32, #tpu.memory_space<vmem>>, vector<8x1xf32>
    %8 = vector.broadcast %7 : vector<8x1xf32> to vector<8x510xf32>
    %9 = arith.addf %6, %8 : vector<8x510xf32>
    %cst_5 = arith.constant 0.000000e+00 : f32
    %10 = vector.broadcast %cst_5 : f32 to vector<8x510xf32>
    %11 = arith.maximumf %9, %10 : vector<8x510xf32>
    %c0_6 = arith.constant 0 : index
    %c0_7 = arith.constant 0 : index
    %12 = vector.load %arg4[%c0_6, %c0_7] : memref<8x24xf32, #tpu.memory_space<vmem>>, vector<8x24xf32>
    %13 = vector.extract_strided_slice %11 {offsets = [0, 0], sizes = [8, 508], strides = [1, 1]} : vector<8x510xf32> to vector<8x508xf32>
    %14 = vector.extract_strided_slice %11 {offsets = [0, 1], sizes = [8, 508], strides = [1, 1]} : vector<8x510xf32> to vector<8x508xf32>
    %15 = vector.extract_strided_slice %11 {offsets = [0, 2], sizes = [8, 508], strides = [1, 1]} : vector<8x510xf32> to vector<8x508xf32>
    %16 = tpu.concatenate %13, %14, %15 in 0 : vector<8x508xf32>, vector<8x508xf32>, vector<8x508xf32> -> vector<24x508xf32>
    %cst_8 = arith.constant dense<0.000000e+00> : vector<8x508xf32>
    %17 = tpu.matmul %12, %16, %cst_8 {dimension_numbers = #tpu.dot_dimension_numbers<[1], [0], [0], [1], [0, 0, 1, 1], [], []>} : vector<8x24xf32>, vector<24x508xf32>, vector<8x508xf32> -> vector<8x508xf32>
    %c0_9 = arith.constant 0 : index
    %c0_10 = arith.constant 0 : index
    %18 = vector.load %arg5[%c0_9, %c0_10] : memref<8x1xf32, #tpu.memory_space<vmem>>, vector<8x1xf32>
    %19 = vector.broadcast %18 : vector<8x1xf32> to vector<8x508xf32>
    %20 = arith.addf %17, %19 : vector<8x508xf32>
    %cst_11 = arith.constant 0.000000e+00 : f32
    %21 = vector.broadcast %cst_11 : f32 to vector<8x508xf32>
    %22 = arith.maximumf %20, %21 : vector<8x508xf32>
    %c0_12 = arith.constant 0 : index
    %c0_13 = arith.constant 0 : index
    %c0_14 = arith.constant 0 : index
    %23 = vector.load %arg16[%c0_12, %c0_13, %c0_14] : memref<1x8x508xf32, #tpu.memory_space<vmem>>, vector<1x8x508xf32>
    %24 = vector.shape_cast %23 : vector<1x8x508xf32> to vector<8x508xf32>
    %25 = vector.shape_cast %22 : vector<8x508xf32> to vector<1x8x508xf32>
    tpu.vector_store %arg16[%c0_12, %c0_13, %c0_14], %25 {strides = array<i32>} : memref<1x8x508xf32, #tpu.memory_space<vmem>>, vector<1x8x508xf32>,
    %26 = vector.extract_strided_slice %22 {offsets = [0, 0], sizes = [8, 507], strides = [1, 1]} : vector<8x508xf32> to vector<8x507xf32>
    %27 = vector.extract_strided_slice %22 {offsets = [0, 1], sizes = [8, 507], strides = [1, 1]} : vector<8x508xf32> to vector<8x507xf32>
    %28 = arith.maximumf %26, %27 : vector<8x507xf32>
    %c0_15 = arith.constant 0 : index
    %c0_16 = arith.constant 0 : index
    %29 = vector.load %arg14[%c0_15, %c0_16] : memref<507x256xf32, #tpu.memory_space<vmem>>, vector<507x256xf32>
    %cst_17 = arith.constant dense<0.000000e+00> : vector<8x256xf32>
    %30 = tpu.matmul %28, %29, %cst_17 {dimension_numbers = #tpu.dot_dimension_numbers<[1], [0], [0], [1], [0, 0, 1, 1], [], []>, precision = #tpu.contract_precision<fp32>} : vector<8x507xf32>, vector<507x256xf32>, vector<8x256xf32> -> vector<8x256xf32>
    %c0_18 = arith.constant 0 : index
    %c0_19 = arith.constant 0 : index
    %31 = vector.load %arg6[%c0_18, %c0_19] : memref<8x24xf32, #tpu.memory_space<vmem>>, vector<8x24xf32>
    %32 = vector.extract_strided_slice %30 {offsets = [0, 0], sizes = [8, 254], strides = [1, 1]} : vector<8x256xf32> to vector<8x254xf32>
    %33 = vector.extract_strided_slice %30 {offsets = [0, 1], sizes = [8, 254], strides = [1, 1]} : vector<8x256xf32> to vector<8x254xf32>
    %34 = vector.extract_strided_slice %30 {offsets = [0, 2], sizes = [8, 254], strides = [1, 1]} : vector<8x256xf32> to vector<8x254xf32>
    %35 = tpu.concatenate %32, %33, %34 in 0 : vector<8x254xf32>, vector<8x254xf32>, vector<8x254xf32> -> vector<24x254xf32>
    %cst_20 = arith.constant dense<0.000000e+00> : vector<8x254xf32>
    %36 = tpu.matmul %31, %35, %cst_20 {dimension_numbers = #tpu.dot_dimension_numbers<[1], [0], [0], [1], [0, 0, 1, 1], [], []>} : vector<8x24xf32>, vector<24x254xf32>, vector<8x254xf32> -> vector<8x254xf32>
    %c0_21 = arith.constant 0 : index
    %c0_22 = arith.constant 0 : index
    %37 = vector.load %arg7[%c0_21, %c0_22] : memref<8x1xf32, #tpu.memory_space<vmem>>, vector<8x1xf32>
    %38 = vector.broadcast %37 : vector<8x1xf32> to vector<8x254xf32>
    %39 = arith.addf %36, %38 : vector<8x254xf32>
    %cst_23 = arith.constant 0.000000e+00 : f32
    %40 = vector.broadcast %cst_23 : f32 to vector<8x254xf32>
    %41 = arith.maximumf %39, %40 : vector<8x254xf32>
    %c0_24 = arith.constant 0 : index
    %c0_25 = arith.constant 0 : index
    %42 = vector.load %arg8[%c0_24, %c0_25] : memref<8x24xf32, #tpu.memory_space<vmem>>, vector<8x24xf32>
    %43 = vector.extract_strided_slice %41 {offsets = [0, 0], sizes = [8, 252], strides = [1, 1]} : vector<8x254xf32> to vector<8x252xf32>
    %44 = vector.extract_strided_slice %41 {offsets = [0, 1], sizes = [8, 252], strides = [1, 1]} : vector<8x254xf32> to vector<8x252xf32>
    %45 = vector.extract_strided_slice %41 {offsets = [0, 2], sizes = [8, 252], strides = [1, 1]} : vector<8x254xf32> to vector<8x252xf32>
    %46 = tpu.concatenate %43, %44, %45 in 0 : vector<8x252xf32>, vector<8x252xf32>, vector<8x252xf32> -> vector<24x252xf32>
    %cst_26 = arith.constant dense<0.000000e+00> : vector<8x252xf32>
    %47 = tpu.matmul %42, %46, %cst_26 {dimension_numbers = #tpu.dot_dimension_numbers<[1], [0], [0], [1], [0, 0, 1, 1], [], []>} : vector<8x24xf32>, vector<24x252xf32>, vector<8x252xf32> -> vector<8x252xf32>
    %c0_27 = arith.constant 0 : index
    %c0_28 = arith.constant 0 : index
    %48 = vector.load %arg9[%c0_27, %c0_28] : memref<8x1xf32, #tpu.memory_space<vmem>>, vector<8x1xf32>
    %49 = vector.broadcast %48 : vector<8x1xf32> to vector<8x252xf32>
    %50 = arith.addf %47, %49 : vector<8x252xf32>
    %cst_29 = arith.constant 0.000000e+00 : f32
    %51 = vector.broadcast %cst_29 : f32 to vector<8x252xf32>
    %52 = arith.maximumf %50, %51 : vector<8x252xf32>
    %c0_30 = arith.constant 0 : index
    %c0_31 = arith.constant 0 : index
    %c0_32 = arith.constant 0 : index
    %53 = vector.load %arg17[%c0_30, %c0_31, %c0_32] : memref<1x8x252xf32, #tpu.memory_space<vmem>>, vector<1x8x252xf32>
    %54 = vector.shape_cast %53 : vector<1x8x252xf32> to vector<8x252xf32>
    %55 = vector.shape_cast %52 : vector<8x252xf32> to vector<1x8x252xf32>
    tpu.vector_store %arg17[%c0_30, %c0_31, %c0_32], %55 {strides = array<i32>} : memref<1x8x252xf32, #tpu.memory_space<vmem>>, vector<1x8x252xf32>,
    %56 = vector.extract_strided_slice %52 {offsets = [0, 0], sizes = [8, 251], strides = [1, 1]} : vector<8x252xf32> to vector<8x251xf32>
    %57 = vector.extract_strided_slice %52 {offsets = [0, 1], sizes = [8, 251], strides = [1, 1]} : vector<8x252xf32> to vector<8x251xf32>
    %58 = arith.maximumf %56, %57 : vector<8x251xf32>
    %c0_33 = arith.constant 0 : index
    %c0_34 = arith.constant 0 : index
    %59 = vector.load %arg15[%c0_33, %c0_34] : memref<251x128xf32, #tpu.memory_space<vmem>>, vector<251x128xf32>
    %cst_35 = arith.constant dense<0.000000e+00> : vector<8x128xf32>
    %60 = tpu.matmul %58, %59, %cst_35 {dimension_numbers = #tpu.dot_dimension_numbers<[1], [0], [0], [1], [0, 0, 1, 1], [], []>, precision = #tpu.contract_precision<fp32>} : vector<8x251xf32>, vector<251x128xf32>, vector<8x128xf32> -> vector<8x128xf32>
    %c0_36 = arith.constant 0 : index
    %c0_37 = arith.constant 0 : index
    %61 = vector.load %arg10[%c0_36, %c0_37] : memref<8x24xf32, #tpu.memory_space<vmem>>, vector<8x24xf32>
    %62 = vector.extract_strided_slice %60 {offsets = [0, 0], sizes = [8, 126], strides = [1, 1]} : vector<8x128xf32> to vector<8x126xf32>
    %63 = vector.extract_strided_slice %60 {offsets = [0, 1], sizes = [8, 126], strides = [1, 1]} : vector<8x128xf32> to vector<8x126xf32>
    %64 = vector.extract_strided_slice %60 {offsets = [0, 2], sizes = [8, 126], strides = [1, 1]} : vector<8x128xf32> to vector<8x126xf32>
    %65 = tpu.concatenate %62, %63, %64 in 0 : vector<8x126xf32>, vector<8x126xf32>, vector<8x126xf32> -> vector<24x126xf32>
    %cst_38 = arith.constant dense<0.000000e+00> : vector<8x126xf32>
    %66 = tpu.matmul %61, %65, %cst_38 {dimension_numbers = #tpu.dot_dimension_numbers<[1], [0], [0], [1], [0, 0, 1, 1], [], []>} : vector<8x24xf32>, vector<24x126xf32>, vector<8x126xf32> -> vector<8x126xf32>
    %c0_39 = arith.constant 0 : index
    %c0_40 = arith.constant 0 : index
    %67 = vector.load %arg11[%c0_39, %c0_40] : memref<8x1xf32, #tpu.memory_space<vmem>>, vector<8x1xf32>
    %68 = vector.broadcast %67 : vector<8x1xf32> to vector<8x126xf32>
    %69 = arith.addf %66, %68 : vector<8x126xf32>
    %cst_41 = arith.constant 0.000000e+00 : f32
    %70 = vector.broadcast %cst_41 : f32 to vector<8x126xf32>
    %71 = arith.maximumf %69, %70 : vector<8x126xf32>
    %c0_42 = arith.constant 0 : index
    %c0_43 = arith.constant 0 : index
    %72 = vector.load %arg12[%c0_42, %c0_43] : memref<8x24xf32, #tpu.memory_space<vmem>>, vector<8x24xf32>
    %73 = vector.extract_strided_slice %71 {offsets = [0, 0], sizes = [8, 124], strides = [1, 1]} : vector<8x126xf32> to vector<8x124xf32>
    %74 = vector.extract_strided_slice %71 {offsets = [0, 1], sizes = [8, 124], strides = [1, 1]} : vector<8x126xf32> to vector<8x124xf32>
    %75 = vector.extract_strided_slice %71 {offsets = [0, 2], sizes = [8, 124], strides = [1, 1]} : vector<8x126xf32> to vector<8x124xf32>
    %76 = tpu.concatenate %73, %74, %75 in 0 : vector<8x124xf32>, vector<8x124xf32>, vector<8x124xf32> -> vector<24x124xf32>
    %cst_44 = arith.constant dense<0.000000e+00> : vector<8x124xf32>
    %77 = tpu.matmul %72, %76, %cst_44 {dimension_numbers = #tpu.dot_dimension_numbers<[1], [0], [0], [1], [0, 0, 1, 1], [], []>} : vector<8x24xf32>, vector<24x124xf32>, vector<8x124xf32> -> vector<8x124xf32>
    %c0_45 = arith.constant 0 : index
    %c0_46 = arith.constant 0 : index
    %78 = vector.load %arg13[%c0_45, %c0_46] : memref<8x1xf32, #tpu.memory_space<vmem>>, vector<8x1xf32>
    %79 = vector.broadcast %78 : vector<8x1xf32> to vector<8x124xf32>
    %80 = arith.addf %77, %79 : vector<8x124xf32>
    %cst_47 = arith.constant 0.000000e+00 : f32
    %81 = vector.broadcast %cst_47 : f32 to vector<8x124xf32>
    %82 = arith.maximumf %80, %81 : vector<8x124xf32>
    %c0_48 = arith.constant 0 : index
    %c0_49 = arith.constant 0 : index
    %c0_50 = arith.constant 0 : index
    %83 = vector.load %arg18[%c0_48, %c0_49, %c0_50] : memref<1x8x124xf32, #tpu.memory_space<vmem>>, vector<1x8x124xf32>
    %84 = vector.shape_cast %83 : vector<1x8x124xf32> to vector<8x124xf32>
    %85 = vector.shape_cast %82 : vector<8x124xf32> to vector<1x8x124xf32>
    tpu.vector_store %arg18[%c0_48, %c0_49, %c0_50], %85 {strides = array<i32>} : memref<1x8x124xf32, #tpu.memory_space<vmem>>, vector<1x8x124xf32>,
    return
  }
  func.func @transform_0(%arg0: i32) -> (i32, i32) {
    %c0_i32 = arith.constant 0 : i32
    %c0_i32_0 = arith.constant 0 : i32
    return %c0_i32, %arg0 : i32, i32
  }
  func.func @transform_1(%arg0: i32) -> (i32, i32) {
    %c0_i32 = arith.constant 0 : i32
    %c0_i32_0 = arith.constant 0 : i32
    %c0_i32_1 = arith.constant 0 : i32
    return %c0_i32, %c0_i32_0 : i32, i32
  }
  func.func @transform_2(%arg0: i32) -> (i32, i32) {
    %c0_i32 = arith.constant 0 : i32
    %c0_i32_0 = arith.constant 0 : i32
    %c0_i32_1 = arith.constant 0 : i32
    return %c0_i32, %c0_i32_0 : i32, i32
  }
  func.func @transform_3(%arg0: i32) -> (i32, i32) {
    %c0_i32 = arith.constant 0 : i32
    %c0_i32_0 = arith.constant 0 : i32
    %c0_i32_1 = arith.constant 0 : i32
    return %c0_i32, %c0_i32_0 : i32, i32
  }
  func.func @transform_4(%arg0: i32) -> (i32, i32) {
    %c0_i32 = arith.constant 0 : i32
    %c0_i32_0 = arith.constant 0 : i32
    %c0_i32_1 = arith.constant 0 : i32
    return %c0_i32, %c0_i32_0 : i32, i32
  }
  func.func @transform_5(%arg0: i32) -> (i32, i32) {
    %c0_i32 = arith.constant 0 : i32
    %c0_i32_0 = arith.constant 0 : i32
    %c0_i32_1 = arith.constant 0 : i32
    return %c0_i32, %c0_i32_0 : i32, i32
  }
  func.func @transform_6(%arg0: i32) -> (i32, i32) {
    %c0_i32 = arith.constant 0 : i32
    %c0_i32_0 = arith.constant 0 : i32
    %c0_i32_1 = arith.constant 0 : i32
    return %c0_i32, %c0_i32_0 : i32, i32
  }
  func.func @transform_7(%arg0: i32) -> (i32, i32) {
    %c0_i32 = arith.constant 0 : i32
    %c0_i32_0 = arith.constant 0 : i32
    %c0_i32_1 = arith.constant 0 : i32
    return %c0_i32, %c0_i32_0 : i32, i32
  }
  func.func @transform_8(%arg0: i32) -> (i32, i32) {
    %c0_i32 = arith.constant 0 : i32
    %c0_i32_0 = arith.constant 0 : i32
    %c0_i32_1 = arith.constant 0 : i32
    return %c0_i32, %c0_i32_0 : i32, i32
  }
  func.func @transform_9(%arg0: i32) -> (i32, i32) {
    %c0_i32 = arith.constant 0 : i32
    %c0_i32_0 = arith.constant 0 : i32
    %c0_i32_1 = arith.constant 0 : i32
    return %c0_i32, %c0_i32_0 : i32, i32
  }
  func.func @transform_10(%arg0: i32) -> (i32, i32) {
    %c0_i32 = arith.constant 0 : i32
    %c0_i32_0 = arith.constant 0 : i32
    %c0_i32_1 = arith.constant 0 : i32
    return %c0_i32, %c0_i32_0 : i32, i32
  }
  func.func @transform_11(%arg0: i32) -> (i32, i32) {
    %c0_i32 = arith.constant 0 : i32
    %c0_i32_0 = arith.constant 0 : i32
    %c0_i32_1 = arith.constant 0 : i32
    return %c0_i32, %c0_i32_0 : i32, i32
  }
  func.func @transform_12(%arg0: i32) -> (i32, i32) {
    %c0_i32 = arith.constant 0 : i32
    %c0_i32_0 = arith.constant 0 : i32
    %c0_i32_1 = arith.constant 0 : i32
    return %c0_i32, %c0_i32_0 : i32, i32
  }
  func.func @transform_13(%arg0: i32) -> (i32, i32) {
    %c0_i32 = arith.constant 0 : i32
    %c0_i32_0 = arith.constant 0 : i32
    %c0_i32_1 = arith.constant 0 : i32
    return %c0_i32, %c0_i32_0 : i32, i32
  }
  func.func @transform_14(%arg0: i32) -> (i32, i32) {
    %c0_i32 = arith.constant 0 : i32
    %c0_i32_0 = arith.constant 0 : i32
    %c0_i32_1 = arith.constant 0 : i32
    return %c0_i32, %c0_i32_0 : i32, i32
  }
  func.func @transform_15(%arg0: i32) -> (i32, i32, i32) {
    %c0_i32 = arith.constant 0 : i32
    %c0_i32_0 = arith.constant 0 : i32
    %c0_i32_1 = arith.constant 0 : i32
    return %arg0, %c0_i32, %c0_i32_0 : i32, i32, i32
  }
  func.func @transform_16(%arg0: i32) -> (i32, i32, i32) {
    %c0_i32 = arith.constant 0 : i32
    %c0_i32_0 = arith.constant 0 : i32
    %c0_i32_1 = arith.constant 0 : i32
    return %arg0, %c0_i32, %c0_i32_0 : i32, i32, i32
  }
  func.func @transform_17(%arg0: i32) -> (i32, i32, i32) {
    %c0_i32 = arith.constant 0 : i32
    %c0_i32_0 = arith.constant 0 : i32
    %c0_i32_1 = arith.constant 0 : i32
    return %arg0, %c0_i32, %c0_i32_0 : i32, i32, i32
  }
}

</mosaic_0001>

<llo_original>
// kernel: encoder_forward.1
$region0: #{encoder_forward.1}
  #allocation0 [shape = 'u32[]', space=smem, size = 0x4, offset = 0x4, fixed_abs, tag = 'smem constant byte address 0x4 - core index']
  #allocation1 [shape = 'u32[144,128]{1,0:T(1,128)}', space=vmem, size = 0x12000, scoped, tag = 'internal scratch']
  %s0 = inlined_call_operand.vmem [shape: f32[16,2048], index: 0, kind: input, shape index: {}]
  %s1 = inlined_call_operand.vmem [shape: f32[8,48], index: 1, kind: input, shape index: {}]
  %s2 = inlined_call_operand.vmem [shape: f32[8,1], index: 2, kind: input, shape index: {}]
  %s3 = inlined_call_operand.vmem [shape: f32[8,24], index: 3, kind: input, shape index: {}]
  %s4 = inlined_call_operand.vmem [shape: f32[8,1], index: 4, kind: input, shape index: {}]
  %s5 = inlined_call_operand.vmem [shape: f32[8,24], index: 5, kind: input, shape index: {}]
  %s6 = inlined_call_operand.vmem [shape: f32[8,1], index: 6, kind: input, shape index: {}]
  %s7 = inlined_call_operand.vmem [shape: f32[8,24], index: 7, kind: input, shape index: {}]
  %s8 = inlined_call_operand.vmem [shape: f32[8,1], index: 8, kind: input, shape index: {}]
  %s9 = inlined_call_operand.vmem [shape: f32[8,24], index: 9, kind: input, shape index: {}]
  %s10 = inlined_call_operand.vmem [shape: f32[8,1], index: 10, kind: input, shape index: {}]
  %s11 = inlined_call_operand.vmem [shape: f32[8,24], index: 11, kind: input, shape index: {}]
  %s12 = inlined_call_operand.vmem [shape: f32[8,1], index: 12, kind: input, shape index: {}]
  %s13 = inlined_call_operand.vmem [shape: f32[507,256], index: 13, kind: input, shape index: {}]
  %s14 = inlined_call_operand.vmem [shape: f32[251,128], index: 14, kind: input, shape index: {}]
  %s15 = inlined_call_operand.vmem [shape: f32[4,8,508], index: 15, kind: output, shape index: {0}]
  %s16 = inlined_call_operand.vmem [shape: f32[4,8,252], index: 16, kind: output, shape index: {1}]
  %s17 = inlined_call_operand.vmem [shape: f32[4,8,124], index: 17, kind: output, shape index: {2}]
  %18 = xla_tuple %s15, %s16, %s17
  %s19 = sld [smem:[#allocation0]]
  $region132: #{encoder_forward.1} parent=0
    _
  %s21 = ssub.s32 1, %s19
  %s22 = scalar_select 0, %s21, %s19
  $region1: #{encoder_forward.1} parent=0
    #allocation2 [shape = 'u8[65536]{0}', space=vmem, size = 0x10000, scoped, tag = 'input window, operand 0']
    loop: start=0, step=1, limit=6
    $region2: #{encoder_forward.1} parent=1 // loop_pre_header
      _
    $region3: #{encoder_forward.1} parent=1 // loop_header
      %s24 = sphi 0, %s28
      %p25 = scmp.ge.s32.totalorder %s24, 6
      %s34 = sphi 0, %s36
      %s37 = sphi 0, %s34
      %s38 = sphi 0, %s37
      %s54 = sphi 0, %s38
      %s58 = sphi 0, %s58
      %s60 = sphi 0, %s58
      %s61 = sphi 0, %s60
      %s75 = sphi 0, %s61
      %s79 = sphi 0, %s79
      %s81 = sphi 0, %s79
      %s82 = sphi 0, %s81
      %s96 = sphi 0, %s82
      %s100 = sphi 0, %s100
      %s102 = sphi 0, %s100
      %s103 = sphi 0, %s102
      %s117 = sphi 0, %s103
      %s121 = sphi 0, %s121
      %s123 = sphi 0, %s121
      %s124 = sphi 0, %s123
      %s138 = sphi 0, %s124
      %s142 = sphi 0, %s142
      %s144 = sphi 0, %s142
      %s145 = sphi 0, %s144
      %s159 = sphi 0, %s145
      %s163 = sphi 0, %s163
      %s165 = sphi 0, %s163
      %s166 = sphi 0, %s165
      %s180 = sphi 0, %s166
      %s184 = sphi 0, %s184
      %s186 = sphi 0, %s184
      %s187 = sphi 0, %s186
      %s201 = sphi 0, %s187
      %s205 = sphi 0, %s205
      %s207 = sphi 0, %s205
      %s208 = sphi 0, %s207
      %s222 = sphi 0, %s208
      %s226 = sphi 0, %s226
      %s228 = sphi 0, %s226
      %s229 = sphi 0, %s228
      %s243 = sphi 0, %s229
      %s247 = sphi 0, %s247
      %s249 = sphi 0, %s247
      %s250 = sphi 0, %s249
      %s264 = sphi 0, %s250
      %s268 = sphi 0, %s268
      %s270 = sphi 0, %s268
      %s271 = sphi 0, %s270
      %s285 = sphi 0, %s271
      %s289 = sphi 0, %s289
      %s291 = sphi 0, %s289
      %s292 = sphi 0, %s291
      %s306 = sphi 0, %s292
      %s310 = sphi 0, %s310
      %s312 = sphi 0, %s310
      %s313 = sphi 0, %s312
      %s327 = sphi 0, %s313
      %s331 = sphi 0, %s331
      %s333 = sphi 0, %s331
      %s334 = sphi 0, %s333
      %s348 = sphi 0, %s334
      %s354 = sphi 0, %s356
      %s357 = sphi 0, %s354
      %s358 = sphi 0, %s357
      %s374 = sphi 0, %s358
      %s380 = sphi 0, %s382
      %s383 = sphi 0, %s380
      %s384 = sphi 0, %s383
      %s400 = sphi 0, %s384
      %s406 = sphi 0, %s408
      %s409 = sphi 0, %s406
      %s410 = sphi 0, %s409
      %s426 = sphi 0, %s410
    $region4: #{encoder_forward.1} parent=1 // loop_header_branch
      %27 = sbr.rel (%p25) target = $region8
    $region5: #{encoder_forward.1} parent=1 // loop_body
      %s29 = ssub.s32 %s24, 1
      %s30 = ssub.s32 %s24, 2
      %s31 = sadd.s32 %s24, 1
      %s32 = ssub.s32 %s24, %s31
      %p33 = scmp.eq.s32.totalorder %s32, 0
      %s35 = sadd.s32 %s34, 1
      %s36 = scalar_select %p33, %s34, %s35
      %p39 = pneg %p33
      %p40 = scmp.eq.s32.totalorder %s24, 3
      %p41 = por %p39, %p40
      %p42 = scmp.ne.s32.totalorder %s34, %s37
      %p43 = scmp.eq.s32.totalorder %s24, 0
      %p44 = por %p42, %p43
      %p45 = scmp.ne.s32.totalorder %s34, %s37
      %p46 = scmp.eq.s32.totalorder %s29, 3
      %p47 = por %p45, %p46
      %p48 = scmp.ne.s32.totalorder %s37, %s38
      %p49 = scmp.eq.s32.totalorder %s29, 0
      %p50 = por %p48, %p49
      %p51 = scmp.ne.s32.totalorder %s37, %s38
      %p52 = scmp.eq.s32.totalorder %s30, 3
      %p53 = por %p51, %p52
      %p55 = scmp.ne.s32.totalorder %s38, %s54
      %p56 = scmp.eq.s32.totalorder %s30, 0
      %p57 = por %p55, %p56
      %s59 = sadd.s32 %s58, 1
      %p62 = scmp.eq.s32.totalorder %s24, 3
      %p63 = scmp.ne.s32.totalorder %s58, %s60
      %p64 = scmp.eq.s32.totalorder %s24, 0
      %p65 = por %p63, %p64
      %p66 = scmp.ne.s32.totalorder %s58, %s60
      %p67 = scmp.eq.s32.totalorder %s29, 3
      %p68 = por %p66, %p67
      %p69 = scmp.ne.s32.totalorder %s60, %s61
      %p70 = scmp.eq.s32.totalorder %s29, 0
      %p71 = por %p69, %p70
      %p72 = scmp.ne.s32.totalorder %s60, %s61
      %p73 = scmp.eq.s32.totalorder %s30, 3
      %p74 = por %p72, %p73
      %p76 = scmp.ne.s32.totalorder %s61, %s75
      %p77 = scmp.eq.s32.totalorder %s30, 0
      %p78 = por %p76, %p77
      %s80 = sadd.s32 %s79, 1
      %p83 = scmp.eq.s32.totalorder %s24, 3
      %p84 = scmp.ne.s32.totalorder %s79, %s81
      %p85 = scmp.eq.s32.totalorder %s24, 0
      %p86 = por %p84, %p85
      %p87 = scmp.ne.s32.totalorder %s79, %s81
      %p88 = scmp.eq.s32.totalorder %s29, 3
      %p89 = por %p87, %p88
      %p90 = scmp.ne.s32.totalorder %s81, %s82
      %p91 = scmp.eq.s32.totalorder %s29, 0
      %p92 = por %p90, %p91
      %p93 = scmp.ne.s32.totalorder %s81, %s82
      %p94 = scmp.eq.s32.totalorder %s30, 3
      %p95 = por %p93, %p94
      %p97 = scmp.ne.s32.totalorder %s82, %s96
      %p98 = scmp.eq.s32.totalorder %s30, 0
      %p99 = por %p97, %p98
      %s101 = sadd.s32 %s100, 1
      %p104 = scmp.eq.s32.totalorder %s24, 3
      %p105 = scmp.ne.s32.totalorder %s100, %s102
      %p106 = scmp.eq.s32.totalorder %s24, 0
      %p107 = por %p105, %p106
      %p108 = scmp.ne.s32.totalorder %s100, %s102
      %p109 = scmp.eq.s32.totalorder %s29, 3
      %p110 = por %p108, %p109
      %p111 = scmp.ne.s32.totalorder %s102, %s103
      %p112 = scmp.eq.s32.totalorder %s29, 0
      %p113 = por %p111, %p112
      %p114 = scmp.ne.s32.totalorder %s102, %s103
      %p115 = scmp.eq.s32.totalorder %s30, 3
      %p116 = por %p114, %p115
      %p118 = scmp.ne.s32.totalorder %s103, %s117
      %p119 = scmp.eq.s32.totalorder %s30, 0
      %p120 = por %p118, %p119
      %s122 = sadd.s32 %s121, 1
      %p125 = scmp.eq.s32.totalorder %s24, 3
      %p126 = scmp.ne.s32.totalorder %s121, %s123
      %p127 = scmp.eq.s32.totalorder %s24, 0
      %p128 = por %p126, %p127
      %p129 = scmp.ne.s32.totalorder %s121, %s123
      %p130 = scmp.eq.s32.totalorder %s29, 3
      %p131 = por %p129, %p130
      %p132 = scmp.ne.s32.totalorder %s123, %s124
      %p133 = scmp.eq.s32.totalorder %s29, 0
      %p134 = por %p132, %p133
      %p135 = scmp.ne.s32.totalorder %s123, %s124
      %p136 = scmp.eq.s32.totalorder %s30, 3
      %p137 = por %p135, %p136
      %p139 = scmp.ne.s32.totalorder %s124, %s138
      %p140 = scmp.eq.s32.totalorder %s30, 0
      %p141 = por %p139, %p140
      %s143 = sadd.s32 %s142, 1
      %p146 = scmp.eq.s32.totalorder %s24, 3
      %p147 = scmp.ne.s32.totalorder %s142, %s144
      %p148 = scmp.eq.s32.totalorder %s24, 0
      %p149 = por %p147, %p148
      %p150 = scmp.ne.s32.totalorder %s142, %s144
      %p151 = scmp.eq.s32.totalorder %s29, 3
      %p152 = por %p150, %p151
      %p153 = scmp.ne.s32.totalorder %s144, %s145
      %p154 = scmp.eq.s32.totalorder %s29, 0
      %p155 = por %p153, %p154
      %p156 = scmp.ne.s32.totalorder %s144, %s145
      %p157 = scmp.eq.s32.totalorder %s30, 3
      %p158 = por %p156, %p157
      %p160 = scmp.ne.s32.totalorder %s145, %s159
      %p161 = scmp.eq.s32.totalorder %s30, 0
      %p162 = por %p160, %p161
      %s164 = sadd.s32 %s163, 1
      %p167 = scmp.eq.s32.totalorder %s24, 3
      %p168 = scmp.ne.s32.totalorder %s163, %s165
      %p169 = scmp.eq.s32.totalorder %s24, 0
      %p170 = por %p168, %p169
      %p171 = scmp.ne.s32.totalorder %s163, %s165
      %p172 = scmp.eq.s32.totalorder %s29, 3
      %p173 = por %p171, %p172
      %p174 = scmp.ne.s32.totalorder %s165, %s166
      %p175 = scmp.eq.s32.totalorder %s29, 0
      %p176 = por %p174, %p175
      %p177 = scmp.ne.s32.totalorder %s165, %s166
      %p178 = scmp.eq.s32.totalorder %s30, 3
      %p179 = por %p177, %p178
      %p181 = scmp.ne.s32.totalorder %s166, %s180
      %p182 = scmp.eq.s32.totalorder %s30, 0
      %p183 = por %p181, %p182
      %s185 = sadd.s32 %s184, 1
      %p188 = scmp.eq.s32.totalorder %s24, 3
      %p189 = scmp.ne.s32.totalorder %s184, %s186
      %p190 = scmp.eq.s32.totalorder %s24, 0
      %p191 = por %p189, %p190
      %p192 = scmp.ne.s32.totalorder %s184, %s186
      %p193 = scmp.eq.s32.totalorder %s29, 3
      %p194 = por %p192, %p193
      %p195 = scmp.ne.s32.totalorder %s186, %s187
      %p196 = scmp.eq.s32.totalorder %s29, 0
      %p197 = por %p195, %p196
      %p198 = scmp.ne.s32.totalorder %s186, %s187
      %p199 = scmp.eq.s32.totalorder %s30, 3
      %p200 = por %p198, %p199
      %p202 = scmp.ne.s32.totalorder %s187, %s201
      %p203 = scmp.eq.s32.totalorder %s30, 0
      %p204 = por %p202, %p203
      %s206 = sadd.s32 %s205, 1
      %p209 = scmp.eq.s32.totalorder %s24, 3
      %p210 = scmp.ne.s32.totalorder %s205, %s207
      %p211 = scmp.eq.s32.totalorder %s24, 0
      %p212 = por %p210, %p211
      %p213 = scmp.ne.s32.totalorder %s205, %s207
      %p214 = scmp.eq.s32.totalorder %s29, 3
      %p215 = por %p213, %p214
      %p216 = scmp.ne.s32.totalorder %s207, %s208
      %p217 = scmp.eq.s32.totalorder %s29, 0
      %p218 = por %p216, %p217
      %p219 = scmp.ne.s32.totalorder %s207, %s208
      %p220 = scmp.eq.s32.totalorder %s30, 3
      %p221 = por %p219, %p220
      %p223 = scmp.ne.s32.totalorder %s208, %s222
      %p224 = scmp.eq.s32.totalorder %s30, 0
      %p225 = por %p223, %p224
      %s227 = sadd.s32 %s226, 1
      %p230 = scmp.eq.s32.totalorder %s24, 3
      %p231 = scmp.ne.s32.totalorder %s226, %s228
      %p232 = scmp.eq.s32.totalorder %s24, 0
      %p233 = por %p231, %p232
      %p234 = scmp.ne.s32.totalorder %s226, %s228
      %p235 = scmp.eq.s32.totalorder %s29, 3
      %p236 = por %p234, %p235
      %p237 = scmp.ne.s32.totalorder %s228, %s229
      %p238 = scmp.eq.s32.totalorder %s29, 0
      %p239 = por %p237, %p238
      %p240 = scmp.ne.s32.totalorder %s228, %s229
      %p241 = scmp.eq.s32.totalorder %s30, 3
      %p242 = por %p240, %p241
      %p244 = scmp.ne.s32.totalorder %s229, %s243
      %p245 = scmp.eq.s32.totalorder %s30, 0
      %p246 = por %p244, %p245
      %s248 = sadd.s32 %s247, 1
      %p251 = scmp.eq.s32.totalorder %s24, 3
      %p252 = scmp.ne.s32.totalorder %s247, %s249
      %p253 = scmp.eq.s32.totalorder %s24, 0
      %p254 = por %p252, %p253
      %p255 = scmp.ne.s32.totalorder %s247, %s249
      %p256 = scmp.eq.s32.totalorder %s29, 3
      %p257 = por %p255, %p256
      %p258 = scmp.ne.s32.totalorder %s249, %s250
      %p259 = scmp.eq.s32.totalorder %s29, 0
      %p260 = por %p258, %p259
      %p261 = scmp.ne.s32.totalorder %s249, %s250
      %p262 = scmp.eq.s32.totalorder %s30, 3
      %p263 = por %p261, %p262
      %p265 = scmp.ne.s32.totalorder %s250, %s264
      %p266 = scmp.eq.s32.totalorder %s30, 0
      %p267 = por %p265, %p266
      %s269 = sadd.s32 %s268, 1
      %p272 = scmp.eq.s32.totalorder %s24, 3
      %p273 = scmp.ne.s32.totalorder %s268, %s270
      %p274 = scmp.eq.s32.totalorder %s24, 0
      %p275 = por %p273, %p274
      %p276 = scmp.ne.s32.totalorder %s268, %s270
      %p277 = scmp.eq.s32.totalorder %s29, 3
      %p278 = por %p276, %p277
      %p279 = scmp.ne.s32.totalorder %s270, %s271
      %p280 = scmp.eq.s32.totalorder %s29, 0
      %p281 = por %p279, %p280
      %p282 = scmp.ne.s32.totalorder %s270, %s271
      %p283 = scmp.eq.s32.totalorder %s30, 3
      %p284 = por %p282, %p283
      %p286 = scmp.ne.s32.totalorder %s271, %s285
      %p287 = scmp.eq.s32.totalorder %s30, 0
      %p288 = por %p286, %p287
      %s290 = sadd.s32 %s289, 1
      %p293 = scmp.eq.s32.totalorder %s24, 3
      %p294 = scmp.ne.s32.totalorder %s289, %s291
      %p295 = scmp.eq.s32.totalorder %s24, 0
      %p296 = por %p294, %p295
      %p297 = scmp.ne.s32.totalorder %s289, %s291
      %p298 = scmp.eq.s32.totalorder %s29, 3
      %p299 = por %p297, %p298
      %p300 = scmp.ne.s32.totalorder %s291, %s292
      %p301 = scmp.eq.s32.totalorder %s29, 0
      %p302 = por %p300, %p301
      %p303 = scmp.ne.s32.totalorder %s291, %s292
      %p304 = scmp.eq.s32.totalorder %s30, 3
      %p305 = por %p303, %p304
      %p307 = scmp.ne.s32.totalorder %s292, %s306
      %p308 = scmp.eq.s32.totalorder %s30, 0
      %p309 = por %p307, %p308
      %s311 = sadd.s32 %s310, 1
      %p314 = scmp.eq.s32.totalorder %s24, 3
      %p315 = scmp.ne.s32.totalorder %s310, %s312
      %p316 = scmp.eq.s32.totalorder %s24, 0
      %p317 = por %p315, %p316
      %p318 = scmp.ne.s32.totalorder %s310, %s312
      %p319 = scmp.eq.s32.totalorder %s29, 3
      %p320 = por %p318, %p319
      %p321 = scmp.ne.s32.totalorder %s312, %s313
      %p322 = scmp.eq.s32.totalorder %s29, 0
      %p323 = por %p321, %p322
      %p324 = scmp.ne.s32.totalorder %s312, %s313
      %p325 = scmp.eq.s32.totalorder %s30, 3
      %p326 = por %p324, %p325
      %p328 = scmp.ne.s32.totalorder %s313, %s327
      %p329 = scmp.eq.s32.totalorder %s30, 0
      %p330 = por %p328, %p329
      %s332 = sadd.s32 %s331, 1
      %p335 = scmp.eq.s32.totalorder %s24, 3
      %p336 = scmp.ne.s32.totalorder %s331, %s333
      %p337 = scmp.eq.s32.totalorder %s24, 0
      %p338 = por %p336, %p337
      %p339 = scmp.ne.s32.totalorder %s331, %s333
      %p340 = scmp.eq.s32.totalorder %s29, 3
      %p341 = por %p339, %p340
      %p342 = scmp.ne.s32.totalorder %s333, %s334
      %p343 = scmp.eq.s32.totalorder %s29, 0
      %p344 = por %p342, %p343
      %p345 = scmp.ne.s32.totalorder %s333, %s334
      %p346 = scmp.eq.s32.totalorder %s30, 3
      %p347 = por %p345, %p346
      %p349 = scmp.ne.s32.totalorder %s334, %s348
      %p350 = scmp.eq.s32.totalorder %s30, 0
      %p351 = por %p349, %p350
      %s352 = ssub.s32 %s24, %s31
      %p353 = scmp.eq.s32.totalorder %s352, 0
      %s355 = sadd.s32 %s354, 1
      %s356 = scalar_select %p353, %s354, %s355
      %p359 = pneg %p353
      %p360 = scmp.eq.s32.totalorder %s24, 3
      %p361 = por %p359, %p360
      %p362 = scmp.ne.s32.totalorder %s354, %s357
      %p363 = scmp.eq.s32.totalorder %s24, 0
      %p364 = por %p362, %p363
      %p365 = scmp.ne.s32.totalorder %s354, %s357
      %p366 = scmp.eq.s32.totalorder %s29, 3
      %p367 = por %p365, %p366
      %p368 = scmp.ne.s32.totalorder %s357, %s358
      %p369 = scmp.eq.s32.totalorder %s29, 0
      %p370 = por %p368, %p369
      %p371 = scmp.ne.s32.totalorder %s357, %s358
      %p372 = scmp.eq.s32.totalorder %s30, 3
      %p373 = por %p371, %p372
      %p375 = scmp.ne.s32.totalorder %s358, %s374
      %p376 = scmp.eq.s32.totalorder %s30, 0
      %p377 = por %p375, %p376
      %s378 = ssub.s32 %s24, %s31
      %p379 = scmp.eq.s32.totalorder %s378, 0
      %s381 = sadd.s32 %s380, 1
      %s382 = scalar_select %p379, %s380, %s381
      %p385 = pneg %p379
      %p386 = scmp.eq.s32.totalorder %s24, 3
      %p387 = por %p385, %p386
      %p388 = scmp.ne.s32.totalorder %s380, %s383
      %p389 = scmp.eq.s32.totalorder %s24, 0
      %p390 = por %p388, %p389
      %p391 = scmp.ne.s32.totalorder %s380, %s383
      %p392 = scmp.eq.s32.totalorder %s29, 3
      %p393 = por %p391, %p392
      %p394 = scmp.ne.s32.totalorder %s383, %s384
      %p395 = scmp.eq.s32.totalorder %s29, 0
      %p396 = por %p394, %p395
      %p397 = scmp.ne.s32.totalorder %s383, %s384
      %p398 = scmp.eq.s32.totalorder %s30, 3
      %p399 = por %p397, %p398
      %p401 = scmp.ne.s32.totalorder %s384, %s400
      %p402 = scmp.eq.s32.totalorder %s30, 0
      %p403 = por %p401, %p402
      %s404 = ssub.s32 %s24, %s31
      %p405 = scmp.eq.s32.totalorder %s404, 0
      %s407 = sadd.s32 %s406, 1
      %s408 = scalar_select %p405, %s406, %s407
      %p411 = pneg %p405
      %p412 = scmp.eq.s32.totalorder %s24, 3
      %p413 = por %p411, %p412
      %p414 = scmp.ne.s32.totalorder %s406, %s409
      %p415 = scmp.eq.s32.totalorder %s24, 0
      %p416 = por %p414, %p415
      %p417 = scmp.ne.s32.totalorder %s406, %s409
      %p418 = scmp.eq.s32.totalorder %s29, 3
      %p419 = por %p417, %p418
      %p420 = scmp.ne.s32.totalorder %s409, %s410
      %p421 = scmp.eq.s32.totalorder %s29, 0
      %p422 = por %p420, %p421
      %p423 = scmp.ne.s32.totalorder %s409, %s410
      %p424 = scmp.eq.s32.totalorder %s30, 3
      %p425 = por %p423, %p424
      %p427 = scmp.ne.s32.totalorder %s410, %s426
      %p428 = scmp.eq.s32.totalorder %s30, 0
      %p429 = por %p427, %p428
      %p430 = scmp.le.s32.totalorder 1, %s24
      %p431 = scmp.lt.s32.totalorder %s24, 5
      %p432 = pnand %p430, %p431
      %p433 = pneg %p432
      // Predicated region
      $region9: #{encoder_forward.1} parent=5 // pred_check
        _
      $region10: #{encoder_forward.1} parent=5 // pred_check_branch
        %435 = sbr.rel (%p432) target = $region12
      $region11: #{encoder_forward.1} parent=5 // pred_region
        %s436 = ssub.s32 %s24, 1
        // Predicated region
        $region13: #{encoder_forward.1} parent=11 // pred_check
          %p437 = pneg %p71
        $region14: #{encoder_forward.1} parent=11 // pred_check_branch
          %439 = sbr.rel (%p437) target = $region16
        $region15: #{encoder_forward.1} parent=11 // pred_region
          _
        $region16: #{encoder_forward.1} parent=11 // pred_fallthru
          _
        // Predicated region
        $region17: #{encoder_forward.1} parent=11 // pred_check
          %p440 = pneg %p92
        $region18: #{encoder_forward.1} parent=11 // pred_check_branch
          %442 = sbr.rel (%p440) target = $region20
        $region19: #{encoder_forward.1} parent=11 // pred_region
          _
        $region20: #{encoder_forward.1} parent=11 // pred_fallthru
          _
        // Predicated region
        $region21: #{encoder_forward.1} parent=11 // pred_check
          %p443 = pneg %p113
        $region22: #{encoder_forward.1} parent=11 // pred_check_branch
          %445 = sbr.rel (%p443) target = $region24
        $region23: #{encoder_forward.1} parent=11 // pred_region
          _
        $region24: #{encoder_forward.1} parent=11 // pred_fallthru
          _
        // Predicated region
        $region25: #{encoder_forward.1} parent=11 // pred_check
          %p446 = pneg %p134
        $region26: #{encoder_forward.1} parent=11 // pred_check_branch
          %448 = sbr.rel (%p446) target = $region28
        $region27: #{encoder_forward.1} parent=11 // pred_region
          _
        $region28: #{encoder_forward.1} parent=11 // pred_fallthru
          _
        // Predicated region
        $region29: #{encoder_forward.1} parent=11 // pred_check
          %p449 = pneg %p155
        $region30: #{encoder_forward.1} parent=11 // pred_check_branch
          %451 = sbr.rel (%p449) target = $region32
        $region31: #{encoder_forward.1} parent=11 // pred_region
          _
        $region32: #{encoder_forward.1} parent=11 // pred_fallthru
          _
        // Predicated region
        $region33: #{encoder_forward.1} parent=11 // pred_check
          %p452 = pneg %p176
        $region34: #{encoder_forward.1} parent=11 // pred_check_branch
          %454 = sbr.rel (%p452) target = $region36
        $region35: #{encoder_forward.1} parent=11 // pred_region
          _
        $region36: #{encoder_forward.1} parent=11 // pred_fallthru
          _
        // Predicated region
        $region37: #{encoder_forward.1} parent=11 // pred_check
          %p455 = pneg %p197
        $region38: #{encoder_forward.1} parent=11 // pred_check_branch
          %457 = sbr.rel (%p455) target = $region40
        $region39: #{encoder_forward.1} parent=11 // pred_region
          _
        $region40: #{encoder_forward.1} parent=11 // pred_fallthru
          _
        // Predicated region
        $region41: #{encoder_forward.1} parent=11 // pred_check
          %p458 = pneg %p218
        $region42: #{encoder_forward.1} parent=11 // pred_check_branch
          %460 = sbr.rel (%p458) target = $region44
        $region43: #{encoder_forward.1} parent=11 // pred_region
          _
        $region44: #{encoder_forward.1} parent=11 // pred_fallthru
          _
        // Predicated region
        $region45: #{encoder_forward.1} parent=11 // pred_check
          %p461 = pneg %p239
        $region46: #{encoder_forward.1} parent=11 // pred_check_branch
          %463 = sbr.rel (%p461) target = $region48
        $region47: #{encoder_forward.1} parent=11 // pred_region
          _
        $region48: #{encoder_forward.1} parent=11 // pred_fallthru
          _
        // Predicated region
        $region49: #{encoder_forward.1} parent=11 // pred_check
          %p464 = pneg %p260
        $region50: #{encoder_forward.1} parent=11 // pred_check_branch
          %466 = sbr.rel (%p464) target = $region52
        $region51: #{encoder_forward.1} parent=11 // pred_region
          _
        $region52: #{encoder_forward.1} parent=11 // pred_fallthru
          _
        // Predicated region
        $region53: #{encoder_forward.1} parent=11 // pred_check
          %p467 = pneg %p281
        $region54: #{encoder_forward.1} parent=11 // pred_check_branch
          %469 = sbr.rel (%p467) target = $region56
        $region55: #{encoder_forward.1} parent=11 // pred_region
          _
        $region56: #{encoder_forward.1} parent=11 // pred_fallthru
          _
        // Predicated region
        $region57: #{encoder_forward.1} parent=11 // pred_check
          %p470 = pneg %p302
        $region58: #{encoder_forward.1} parent=11 // pred_check_branch
          %472 = sbr.rel (%p470) target = $region60
        $region59: #{encoder_forward.1} parent=11 // pred_region
          _
        $region60: #{encoder_forward.1} parent=11 // pred_fallthru
          _
        // Predicated region
        $region61: #{encoder_forward.1} parent=11 // pred_check
          %p473 = pneg %p323
        $region62: #{encoder_forward.1} parent=11 // pred_check_branch
          %475 = sbr.rel (%p473) target = $region64
        $region63: #{encoder_forward.1} parent=11 // pred_region
          _
        $region64: #{encoder_forward.1} parent=11 // pred_fallthru
          _
        // Predicated region
        $region65: #{encoder_forward.1} parent=11 // pred_check
          %p476 = pneg %p344
        $region66: #{encoder_forward.1} parent=11 // pred_check_branch
          %478 = sbr.rel (%p476) target = $region68
        $region67: #{encoder_forward.1} parent=11 // pred_region
          _
        $region68: #{encoder_forward.1} parent=11 // pred_fallthru
          _
      $region12: #{encoder_forward.1} parent=5 // pred_fallthru
        _
      %p479 = scmp.lt.s32.totalorder %s24, 4
      // Predicated region
      $region69: #{encoder_forward.1} parent=5 // pred_check
        %p480 = pneg %p479
      $region70: #{encoder_forward.1} parent=5 // pred_check_branch
        %482 = sbr.rel (%p480) target = $region72
      $region71: #{encoder_forward.1} parent=5 // pred_region
        // Predicated region
        $region73: #{encoder_forward.1} parent=71 // pred_check
          %p483 = pneg %p44
        $region74: #{encoder_forward.1} parent=71 // pred_check_branch
          %485 = sbr.rel (%p483) target = $region76
        $region75: #{encoder_forward.1} parent=71 // pred_region
          %s486 = sand.u32 %s34, 1
          %s487 = sand.u32 %s34, 1
          %s488 = smul.addr %s487, 64
          %s489 = scalar_lea.vmem [#allocation2], %s488
          %s490 = smul.u32 4, %s24
          %s491 = smul.addr %s490, 8
          %s492 = scalar_lea.vmem %s0, %s491
          // Predicated region
          $region77: #{encoder_forward.1} parent=75 // pred_check
            _
          $region78: #{encoder_forward.1} parent=75 // pred_check_branch
            %494 = sbr.rel (0) target = $region80
          $region79: #{encoder_forward.1} parent=75 // pred_region
            // Predicated region
            $region81: #{encoder_forward.1} parent=79 // pred_check
              _
            $region82: #{encoder_forward.1} parent=79 // pred_check_branch
              %496 = sbr.rel (0) target = $region84
            $region83: #{encoder_forward.1} parent=79 // pred_region
              loop: start=0, step=1, limit=1
              $region85: #{encoder_forward.1} parent=83 // loop_pre_header
                _
              $region86: #{encoder_forward.1} parent=83 // loop_header
                %s498 = sphi 0, %s502
                %p499 = scmp.ge.s32.totalorder %s498, 1
                %s503 = sphi %s492, %s492
                %s504 = sphi %s489, %s489
              $region87: #{encoder_forward.1} parent=83 // loop_header_branch
                %501 = sbr.rel (%p499) target = $region91
              $region88: #{encoder_forward.1} parent=83 // loop_body
                %v505 = vld [vmem:[%s503] sm:$0xff]
                %506 = vst [vmem:[%s504] sm:$0xff] %v505
                %v507 = vld [vmem:[%s503 + $0x8] sm:$0xff]
                %508 = vst [vmem:[%s504 + $0x8] sm:$0xff] %v507
                %v509 = vld [vmem:[%s503 + $0x10] sm:$0xff]
                %510 = vst [vmem:[%s504 + $0x10] sm:$0xff] %v509
                %v511 = vld [vmem:[%s503 + $0x18] sm:$0xff]
                %512 = vst [vmem:[%s504 + $0x18] sm:$0xff] %v511
                %v513 = vld [vmem:[%s503 + $0x80] sm:$0xff]
                %514 = vst [vmem:[%s504 + $0x20] sm:$0xff] %v513
                %v515 = vld [vmem:[%s503 + $0x88] sm:$0xff]
                %516 = vst [vmem:[%s504 + $0x28] sm:$0xff] %v515
                %v517 = vld [vmem:[%s503 + $0x90] sm:$0xff]
                %518 = vst [vmem:[%s504 + $0x30] sm:$0xff] %v517
                %v519 = vld [vmem:[%s503 + $0x98] sm:$0xff]
                %520 = vst [vmem:[%s504 + $0x38] sm:$0xff] %v519
              $region89: #{encoder_forward.1} parent=83 // loop_footer
                %s502 = sadd.s32 1, %s498
              $region90: #{encoder_forward.1} parent=83 // loop_footer_branch
                %497 = sbr.rel target = $region86
              $region91: #{encoder_forward.1} parent=83 // loop_exit
                _
            $region84: #{encoder_forward.1} parent=79 // pred_fallthru
              _
            // Predicated region
            $region92: #{encoder_forward.1} parent=79 // pred_check
              _
            $region93: #{encoder_forward.1} parent=79 // pred_check_branch
              %522 = sbr.rel target = $region95
            $region94: #{encoder_forward.1} parent=79 // pred_region
              _
            $region95: #{encoder_forward.1} parent=79 // pred_fallthru
              _
          $region80: #{encoder_forward.1} parent=75 // pred_fallthru
            _
          %523 = vnop
        $region76: #{encoder_forward.1} parent=71 // pred_fallthru
          _
      $region72: #{encoder_forward.1} parent=5 // pred_fallthru
        _
      %p524 = scmp.le.s32.totalorder 1, %s24
      %p525 = scmp.lt.s32.totalorder %s24, 5
      %p526 = pnand %p524, %p525
      %p527 = pneg %p526
      // Predicated region
      $region96: #{encoder_forward.1} parent=5 // pred_check
        _
      $region97: #{encoder_forward.1} parent=5 // pred_check_branch
        %529 = sbr.rel (%p526) target = $region99
      $region98: #{encoder_forward.1} parent=5 // pred_region
        %s530 = ssub.s32 %s24, 1
        %s531 = sand.u32 %s37, 1
        %s532 = sand.u32 %s37, 1
        %s533 = smul.addr %s532, 64
        %s534 = scalar_lea.vmem [#allocation2], %s533
        // Predicated region
        $region100: #{encoder_forward.1} parent=98 // pred_check
          %p535 = pneg %p50
        $region101: #{encoder_forward.1} parent=98 // pred_check_branch
          %537 = sbr.rel (%p535) target = $region103
        $region102: #{encoder_forward.1} parent=98 // pred_region
          _
        $region103: #{encoder_forward.1} parent=98 // pred_fallthru
          _
        %s538 = sand.u32 %s37, 1
        %s539 = sand.u32 %s37, 1
        %s540 = smul.addr %s539, 64
        %s541 = scalar_lea.vmem [#allocation2], %s540
        %p542 = pneg %p50
        %p543 = pneg %p47
        %p544 = pneg %p71
        %p545 = pneg %p68
        %p546 = pneg %p92
        %p547 = pneg %p89
        %p548 = pneg %p113
        %p549 = pneg %p110
        %p550 = pneg %p134
        %p551 = pneg %p131
        %p552 = pneg %p155
        %p553 = pneg %p152
        %p554 = pneg %p176
        %p555 = pneg %p173
        %p556 = pneg %p197
        %p557 = pneg %p194
        %p558 = pneg %p218
        %p559 = pneg %p215
        %p560 = pneg %p239
        %p561 = pneg %p236
        %p562 = pneg %p260
        %p563 = pneg %p257
        %p564 = pneg %p281
        %p565 = pneg %p278
        %p566 = pneg %p302
        %p567 = pneg %p299
        %p568 = pneg %p323
        %p569 = pneg %p320
        %p570 = pneg %p344
        %p571 = pneg %p341
        %p572 = pneg %p370
        %p573 = pneg %p367
        %p574 = scmp.lt.s32.totalorder %s29, 3
        %s575 = scalar_select %p574, %s29, 3
        %s576 = smul.addr %s575, 4
        %s577 = smul.addr %s576, 8
        %s578 = scalar_lea.vmem %s15, %s577
        %p579 = pneg %p396
        %p580 = pneg %p393
        %p581 = scmp.lt.s32.totalorder %s29, 3
        %s582 = scalar_select %p581, %s29, 3
        %s583 = smul.addr %s582, 2
        %s584 = smul.addr %s583, 8
        %s585 = scalar_lea.vmem %s16, %s584
        %p586 = pneg %p422
        %p587 = pneg %p419
        %p588 = scmp.lt.s32.totalorder %s29, 3
        %s589 = scalar_select %p588, %s29, 3
        %s590 = smul.addr %s589, 8
        %s591 = scalar_lea.vmem %s17, %s590
        %s592 = smul.u32 4, %s29
        %p593 = scmp.lt.s32.totalorder %s29, 3
        %s594 = scalar_select %p593, %s29, 3
        %s595 = smul.addr %s594, 4
        %s596 = smul.addr %s595, 8
        %s597 = scalar_lea.vmem %s15, %s596
        %p598 = scmp.lt.s32.totalorder %s29, 3
        %s599 = scalar_select %p598, %s29, 3
        %s600 = smul.addr %s599, 2
        %s601 = smul.addr %s600, 8
        %s602 = scalar_lea.vmem %s16, %s601
        %p603 = scmp.lt.s32.totalorder %s29, 3
        %s604 = scalar_select %p603, %s29, 3
        %s605 = smul.addr %s604, 8
        %s606 = scalar_lea.vmem %s17, %s605
        %v607 = vld [vmem:[%s534] sm:$0xff]
        %v608 = vld [vmem:[%s534 + $0x8] sm:$0xff]
        %v609 = vld [vmem:[%s534 + $0x10] sm:$0xff]
        %v610 = vld [vmem:[%s534 + $0x18] sm:$0xff]
        %v611 = vld [vmem:[%s534 + $0x20] sm:$0xff]
        %v612 = vld [vmem:[%s534 + $0x28] sm:$0xff]
        %v613 = vld [vmem:[%s534 + $0x30] sm:$0xff]
        %v614 = vld [vmem:[%s534 + $0x38] sm:$0xff]
        %v615 = vld [vmem:[%s1] sm:$0xff]
        %624 = vrot.lane.b32.xlu0 %v607, 127
        %v625 = vpop.permute.xlu0 %624
        %626 = vrot.lane.b32.xlu0 %v608, 127
        %v627 = vpop.permute.xlu0 %626
        %628 = vrot.lane.b32.xlu0 %v609, 127
        %v629 = vpop.permute.xlu0 %628
        %630 = vrot.lane.b32.xlu0 %v610, 127
        %v631 = vpop.permute.xlu0 %630
        %632 = vrot.lane.b32.xlu0 %v611, 127
        %v633 = vpop.permute.xlu0 %632
        %634 = vrot.lane.b32.xlu0 %v612, 127
        %v635 = vpop.permute.xlu0 %634
        %636 = vrot.lane.b32.xlu0 %v613, 127
        %v637 = vpop.permute.xlu0 %636
        %638 = vrot.lane.b32.xlu0 %v614, 127
        %v639 = vpop.permute.xlu0 %638
        %vm640 = vcmask 1039360
        %v641 = vsel %vm640, %v625, %v627
        %v642 = vsel %vm640, %v627, %v629
        %v643 = vsel %vm640, %v629, %v631
        %v644 = vsel %vm640, %v633, %v635
        %v645 = vsel %vm640, %v635, %v637
        %v646 = vsel %vm640, %v637, %v639
        %655 = vrot.lane.b32.xlu0 %v607, 126
        %v656 = vpop.permute.xlu0 %655
        %657 = vrot.lane.b32.xlu0 %v608, 126
        %v658 = vpop.permute.xlu0 %657
        %659 = vrot.lane.b32.xlu0 %v609, 126
        %v660 = vpop.permute.xlu0 %659
        %661 = vrot.lane.b32.xlu0 %v610, 126
        %v662 = vpop.permute.xlu0 %661
        %663 = vrot.lane.b32.xlu0 %v611, 126
        %v664 = vpop.permute.xlu0 %663
        %665 = vrot.lane.b32.xlu0 %v612, 126
        %v666 = vpop.permute.xlu0 %665
        %667 = vrot.lane.b32.xlu0 %v613, 126
        %v668 = vpop.permute.xlu0 %667
        %669 = vrot.lane.b32.xlu0 %v614, 126
        %v670 = vpop.permute.xlu0 %669
        %vm671 = vcmask 1031168
        %v672 = vsel %vm671, %v656, %v658
        %v673 = vsel %vm671, %v658, %v660
        %v674 = vsel %vm671, %v660, %v662
        %v675 = vsel %vm671, %v664, %v666
        %v676 = vsel %vm671, %v666, %v668
        %v677 = vsel %vm671, %v668, %v670
        %v686 = vld [vmem:[%s2] sm:$0xff]
        %688 = vset.pattern.permute.xlu0 0
        %689 = vperm.xlu0 %688, %v686
        %v690 = vpop.permute.xlu0 %689
        %vm692 = vcmask 392192
        %v694 = vsel %vm692, %v615, 0
        %696 = vmatprep.subr.mxu0 %v608
        %697 = vmatpush1.msra.mxu0 %v607
        %698 = vmatprep.subr.mxu0 %v612
        %699 = vmatpush1.msra.mxu0 %v611
        %700 = vmatprep.subr.mxu0 %v642
        %701 = vmatpush1.msra.mxu0 %v641
        %702 = vmatprep.subr.mxu0 %v645
        %703 = vmatpush1.msra.mxu0 %v644
        %704 = vmatprep.subr.mxu0 %v673
        %705 = vmatpush1.msra.mxu0 %v672
        %706 = vmatprep.subr.mxu0 %v676
        %707 = vmatpush1.msra.mxu0 %v675
        %708 = vmatprep.subr.mxu0 0.0
        %709 = vmatpush1.msra.mxu0 0.0
        %710 = vmatprep.subr.mxu0 0.0
        %711 = vmatpush1.msra.mxu0 0.0
        %712 = vmatprep.subr.mxu0 0.0
        %713 = vmatpush1.msra.mxu0 0.0
        %714 = vmatprep.subr.mxu0 0.0
        %715 = vmatpush1.msra.mxu0 0.0
        %716 = vmatprep.subr.mxu0 0.0
        %717 = vmatpush1.msra.mxu0 0.0
        %718 = vmatprep.subr.mxu0 0.0
        %719 = vmatpush1.msra.mxu0 0.0
        %720 = vmatprep.subr.mxu0 0.0
        %721 = vmatpush1.msra.mxu0 0.0
        %722 = vmatprep.subr.mxu0 0.0
        %723 = vmatpush1.msra.mxu0 0.0
        %724 = vmatprep.subr.mxu0 0.0
        %725 = vmatpush1.msra.mxu0 0.0
        %726 = vmatprep.subr.mxu0 0.0
        %727 = vmatpush1.msra.mxu0 0.0
        %728 = vmatprep.subr.mxu0 0.0
        %729 = vmatpush1.msra.mxu0 0.0
        %730 = vmatprep.subr.mxu0 0.0
        %731 = vmatpush1.msra.mxu0 0.0
        %732 = vmatprep.subr.mxu0 0.0
        %733 = vmatpush1.msra.mxu0 0.0
        %734 = vmatprep.subr.mxu0 0.0
        %735 = vmatpush1.msra.mxu0 0.0
        %736 = vmatprep.subr.mxu0 0.0
        %737 = vmatpush1.msra.mxu0 0.0
        %738 = vmatprep.subr.mxu0 0.0
        %739 = vmatpush1.msra.mxu0 0.0
        %740 = vmatprep.subr.mxu0 0.0
        %741 = vmatpush1.msra.mxu0 0.0
        %742 = vmatprep.subr.mxu0 0.0
        %743 = vmatpush1.msra.mxu0 0.0
        %744 = vmatprep.subr.mxu0 0.0
        %745 = vmatpush1.msra.mxu0 0.0
        %746 = vmatprep.subr.mxu0 0.0
        %747 = vmatpush1.msra.mxu0 0.0
        %748 = vmatprep.subr.mxu0 0.0
        %749 = vmatpush1.msra.mxu0 0.0
        %750 = vmatprep.subr.mxu0 0.0
        %751 = vmatpush1.msra.mxu0 0.0
        %752 = vmatprep.subr.mxu0 0.0
        %753 = vmatpush1.msra.mxu0 0.0
        %754 = vmatprep.subr.mxu0 0.0
        %755 = vmatpush1.msra.mxu0 0.0
        %756 = vmatprep.subr.mxu0 0.0
        %757 = vmatpush1.msra.mxu0 0.0
        %758 = vmatprep.subr.mxu0 0.0
        %759 = vmatpush1.msra.mxu0 0.0
        %760 = vmatprep.mubr.f32.mxu0 0.0
        %761 = vmatmul.mubr.f32.gmra.mrb[0].mxu0 %v694
        %v762 = vpop.f32.mrb[0].mxu0
        %v763 = vadd.f32 %v690, %v762
        %v764 = vpop.f32.mrb[0].mxu0
        %v765 = vadd.f32 %v690, %v764
        %766 = vdwg.mxu0
        %767 = vmatprep.subr.mxu0 %v610
        %768 = vmatpush1.msra.mxu0 %v609
        %769 = vmatprep.subr.mxu0 %v614
        %770 = vmatpush1.msra.mxu0 %v613
        %771 = vmatprep.subr.mxu0 %v631
        %772 = vmatpush1.msra.mxu0 %v643
        %773 = vmatprep.subr.mxu0 %v639
        %774 = vmatpush1.msra.mxu0 %v646
        %775 = vmatprep.subr.mxu0 %v662
        %776 = vmatpush1.msra.mxu0 %v674
        %777 = vmatprep.subr.mxu0 %v670
        %778 = vmatpush1.msra.mxu0 %v677
        %779 = vmatprep.subr.mxu0 0.0
        %780 = vmatpush1.msra.mxu0 0.0
        %781 = vmatprep.subr.mxu0 0.0
        %782 = vmatpush1.msra.mxu0 0.0
        %783 = vmatprep.subr.mxu0 0.0
        %784 = vmatpush1.msra.mxu0 0.0
        %785 = vmatprep.subr.mxu0 0.0
        %786 = vmatpush1.msra.mxu0 0.0
        %787 = vmatprep.subr.mxu0 0.0
        %788 = vmatpush1.msra.mxu0 0.0
        %789 = vmatprep.subr.mxu0 0.0
        %790 = vmatpush1.msra.mxu0 0.0
        %791 = vmatprep.subr.mxu0 0.0
        %792 = vmatpush1.msra.mxu0 0.0
        %793 = vmatprep.subr.mxu0 0.0
        %794 = vmatpush1.msra.mxu0 0.0
        %795 = vmatprep.subr.mxu0 0.0
        %796 = vmatpush1.msra.mxu0 0.0
        %797 = vmatprep.subr.mxu0 0.0
        %798 = vmatpush1.msra.mxu0 0.0
        %799 = vmatprep.subr.mxu0 0.0
        %800 = vmatpush1.msra.mxu0 0.0
        %801 = vmatprep.subr.mxu0 0.0
        %802 = vmatpush1.msra.mxu0 0.0
        %803 = vmatprep.subr.mxu0 0.0
        %804 = vmatpush1.msra.mxu0 0.0
        %805 = vmatprep.subr.mxu0 0.0
        %806 = vmatpush1.msra.mxu0 0.0
        %807 = vmatprep.subr.mxu0 0.0
        %808 = vmatpush1.msra.mxu0 0.0
        %809 = vmatprep.subr.mxu0 0.0
        %810 = vmatpush1.msra.mxu0 0.0
        %811 = vmatprep.subr.mxu0 0.0
        %812 = vmatpush1.msra.mxu0 0.0
        %813 = vmatprep.subr.mxu0 0.0
        %814 = vmatpush1.msra.mxu0 0.0
        %815 = vmatprep.subr.mxu0 0.0
        %816 = vmatpush1.msra.mxu0 0.0
        %817 = vmatprep.subr.mxu0 0.0
        %818 = vmatpush1.msra.mxu0 0.0
        %819 = vmatprep.subr.mxu0 0.0
        %820 = vmatpush1.msra.mxu0 0.0
        %821 = vmatprep.subr.mxu0 0.0
        %822 = vmatpush1.msra.mxu0 0.0
        %823 = vmatprep.subr.mxu0 0.0
        %824 = vmatpush1.msra.mxu0 0.0
        %825 = vmatprep.subr.mxu0 0.0
        %826 = vmatpush1.msra.mxu0 0.0
        %827 = vmatprep.subr.mxu0 0.0
        %828 = vmatpush1.msra.mxu0 0.0
        %829 = vmatprep.subr.mxu0 0.0
        %830 = vmatpush1.msra.mxu0 0.0
        %831 = vmatprep.mubr.f32.mxu0 0.0
        %832 = vmatmul.mubr.f32.gmra.mrb[0].mxu0 %v694
        %v833 = vpop.f32.mrb[0].mxu0
        %v834 = vadd.f32 %v690, %v833
        %v835 = vpop.f32.mrb[0].mxu0
        %v836 = vadd.f32 %v690, %v835
        %837 = vdwg.mxu0
        %v838 = vmax.f32 %v763, 0.0
        %v839 = vmax.f32 %v765, 0.0
        %v840 = vmax.f32 %v834, 0.0
        %v841 = vmax.f32 %v836, 0.0
        %v842 = vld [vmem:[%s3] sm:$0xff]
        %847 = vrot.lane.b32.xlu0 %v838, 127
        %v848 = vpop.permute.xlu0 %847
        %849 = vrot.lane.b32.xlu0 %v839, 127
        %v850 = vpop.permute.xlu0 %849
        %851 = vrot.lane.b32.xlu0 %v840, 127
        %v852 = vpop.permute.xlu0 %851
        %853 = vrot.lane.b32.xlu0 %v841, 127
        %v854 = vpop.permute.xlu0 %853
        %v855 = vsel %vm640, %v848, %v850
        %v856 = vsel %vm640, %v850, %v852
        %v857 = vsel %vm640, %v852, %v854
        %862 = vrot.lane.b32.xlu0 %v838, 126
        %v863 = vpop.permute.xlu0 %862
        %864 = vrot.lane.b32.xlu0 %v839, 126
        %v865 = vpop.permute.xlu0 %864
        %866 = vrot.lane.b32.xlu0 %v840, 126
        %v867 = vpop.permute.xlu0 %866
        %868 = vrot.lane.b32.xlu0 %v841, 126
        %v869 = vpop.permute.xlu0 %868
        %v870 = vsel %vm671, %v863, %v865
        %v871 = vsel %vm671, %v865, %v867
        %v872 = vsel %vm671, %v867, %v869
        %v877 = vld [vmem:[%s4] sm:$0xff]
        %879 = vset.pattern.permute.xlu0 0
        %880 = vperm.xlu0 %879, %v877
        %v881 = vpop.permute.xlu0 %880
        %vm883 = vcmask 195584
        %v885 = vsel %vm883, %v842, 0
        %887 = vmatprep.subr.mxu0 %v839
        %888 = vmatpush1.msra.mxu0 %v838
        %889 = vmatprep.subr.mxu0 %v856
        %890 = vmatpush1.msra.mxu0 %v855
        %891 = vmatprep.subr.mxu0 %v871
        %892 = vmatpush1.msra.mxu0 %v870
        %893 = vmatprep.subr.mxu0 0.0
        %894 = vmatpush1.msra.mxu0 0.0
        %895 = vmatprep.subr.mxu0 0.0
        %896 = vmatpush1.msra.mxu0 0.0
        %897 = vmatprep.subr.mxu0 0.0
        %898 = vmatpush1.msra.mxu0 0.0
        %899 = vmatprep.subr.mxu0 0.0
        %900 = vmatpush1.msra.mxu0 0.0
        %901 = vmatprep.subr.mxu0 0.0
        %902 = vmatpush1.msra.mxu0 0.0
        %903 = vmatprep.subr.mxu0 0.0
        %904 = vmatpush1.msra.mxu0 0.0
        %905 = vmatprep.subr.mxu0 0.0
        %906 = vmatpush1.msra.mxu0 0.0
        %907 = vmatprep.subr.mxu0 0.0
        %908 = vmatpush1.msra.mxu0 0.0
        %909 = vmatprep.subr.mxu0 0.0
        %910 = vmatpush1.msra.mxu0 0.0
        %911 = vmatprep.subr.mxu0 0.0
        %912 = vmatpush1.msra.mxu0 0.0
        %913 = vmatprep.subr.mxu0 0.0
        %914 = vmatpush1.msra.mxu0 0.0
        %915 = vmatprep.subr.mxu0 0.0
        %916 = vmatpush1.msra.mxu0 0.0
        %917 = vmatprep.subr.mxu0 0.0
        %918 = vmatpush1.msra.mxu0 0.0
        %919 = vmatprep.subr.mxu0 0.0
        %920 = vmatpush1.msra.mxu0 0.0
        %921 = vmatprep.subr.mxu0 0.0
        %922 = vmatpush1.msra.mxu0 0.0
        %923 = vmatprep.subr.mxu0 0.0
        %924 = vmatpush1.msra.mxu0 0.0
        %925 = vmatprep.subr.mxu0 0.0
        %926 = vmatpush1.msra.mxu0 0.0
        %927 = vmatprep.subr.mxu0 0.0
        %928 = vmatpush1.msra.mxu0 0.0
        %929 = vmatprep.subr.mxu0 0.0
        %930 = vmatpush1.msra.mxu0 0.0
        %931 = vmatprep.subr.mxu0 0.0
        %932 = vmatpush1.msra.mxu0 0.0
        %933 = vmatprep.subr.mxu0 0.0
        %934 = vmatpush1.msra.mxu0 0.0
        %935 = vmatprep.subr.mxu0 0.0
        %936 = vmatpush1.msra.mxu0 0.0
        %937 = vmatprep.subr.mxu0 0.0
        %938 = vmatpush1.msra.mxu0 0.0
        %939 = vmatprep.subr.mxu0 0.0
        %940 = vmatpush1.msra.mxu0 0.0
        %941 = vmatprep.subr.mxu0 0.0
        %942 = vmatpush1.msra.mxu0 0.0
        %943 = vmatprep.subr.mxu0 0.0
        %944 = vmatpush1.msra.mxu0 0.0
        %945 = vmatprep.subr.mxu0 0.0
        %946 = vmatpush1.msra.mxu0 0.0
        %947 = vmatprep.subr.mxu0 0.0
        %948 = vmatpush1.msra.mxu0 0.0
        %949 = vmatprep.subr.mxu0 0.0
        %950 = vmatpush1.msra.mxu0 0.0
        %951 = vmatprep.mubr.f32.mxu0 0.0
        %952 = vmatmul.mubr.f32.gmra.mrb[0].mxu0 %v885
        %v953 = vpop.f32.mrb[0].mxu0
        %v954 = vadd.f32 %v881, %v953
        %v955 = vpop.f32.mrb[0].mxu0
        %v956 = vadd.f32 %v881, %v955
        %957 = vdwg.mxu0
        %958 = vmatprep.subr.mxu0 %v841
        %959 = vmatpush1.msra.mxu0 %v840
        %960 = vmatprep.subr.mxu0 %v854
        %961 = vmatpush1.msra.mxu0 %v857
        %962 = vmatprep.subr.mxu0 %v869
        %963 = vmatpush1.msra.mxu0 %v872
        %964 = vmatprep.subr.mxu0 0.0
        %965 = vmatpush1.msra.mxu0 0.0
        %966 = vmatprep.subr.mxu0 0.0
        %967 = vmatpush1.msra.mxu0 0.0
        %968 = vmatprep.subr.mxu0 0.0
        %969 = vmatpush1.msra.mxu0 0.0
        %970 = vmatprep.subr.mxu0 0.0
        %971 = vmatpush1.msra.mxu0 0.0
        %972 = vmatprep.subr.mxu0 0.0
        %973 = vmatpush1.msra.mxu0 0.0
        %974 = vmatprep.subr.mxu0 0.0
        %975 = vmatpush1.msra.mxu0 0.0
        %976 = vmatprep.subr.mxu0 0.0
        %977 = vmatpush1.msra.mxu0 0.0
        %978 = vmatprep.subr.mxu0 0.0
        %979 = vmatpush1.msra.mxu0 0.0
        %980 = vmatprep.subr.mxu0 0.0
        %981 = vmatpush1.msra.mxu0 0.0
        %982 = vmatprep.subr.mxu0 0.0
        %983 = vmatpush1.msra.mxu0 0.0
        %984 = vmatprep.subr.mxu0 0.0
        %985 = vmatpush1.msra.mxu0 0.0
        %986 = vmatprep.subr.mxu0 0.0
        %987 = vmatpush1.msra.mxu0 0.0
        %988 = vmatprep.subr.mxu0 0.0
        %989 = vmatpush1.msra.mxu0 0.0
        %990 = vmatprep.subr.mxu0 0.0
        %991 = vmatpush1.msra.mxu0 0.0
        %992 = vmatprep.subr.mxu0 0.0
        %993 = vmatpush1.msra.mxu0 0.0
        %994 = vmatprep.subr.mxu0 0.0
        %995 = vmatpush1.msra.mxu0 0.0
        %996 = vmatprep.subr.mxu0 0.0
        %997 = vmatpush1.msra.mxu0 0.0
        %998 = vmatprep.subr.mxu0 0.0
        %999 = vmatpush1.msra.mxu0 0.0
        %1000 = vmatprep.subr.mxu0 0.0
        %1001 = vmatpush1.msra.mxu0 0.0
        %1002 = vmatprep.subr.mxu0 0.0
        %1003 = vmatpush1.msra.mxu0 0.0
        %1004 = vmatprep.subr.mxu0 0.0
        %1005 = vmatpush1.msra.mxu0 0.0
        %1006 = vmatprep.subr.mxu0 0.0
        %1007 = vmatpush1.msra.mxu0 0.0
        %1008 = vmatprep.subr.mxu0 0.0
        %1009 = vmatpush1.msra.mxu0 0.0
        %1010 = vmatprep.subr.mxu0 0.0
        %1011 = vmatpush1.msra.mxu0 0.0
        %1012 = vmatprep.subr.mxu0 0.0
        %1013 = vmatpush1.msra.mxu0 0.0
        %1014 = vmatprep.subr.mxu0 0.0
        %1015 = vmatpush1.msra.mxu0 0.0
        %1016 = vmatprep.subr.mxu0 0.0
        %1017 = vmatpush1.msra.mxu0 0.0
        %1018 = vmatprep.subr.mxu0 0.0
        %1019 = vmatpush1.msra.mxu0 0.0
        %1020 = vmatprep.subr.mxu0 0.0
        %1021 = vmatpush1.msra.mxu0 0.0
        %1022 = vmatprep.mubr.f32.mxu0 0.0
        %1023 = vmatmul.mubr.f32.gmra.mrb[0].mxu0 %v885
        %v1024 = vpop.f32.mrb[0].mxu0
        %v1025 = vadd.f32 %v881, %v1024
        %v1026 = vpop.f32.mrb[0].mxu0
        %v1027 = vadd.f32 %v881, %v1026
        %1028 = vdwg.mxu0
        %v1029 = vmax.f32 %v954, 0.0
        %v1030 = vmax.f32 %v956, 0.0
        %v1031 = vmax.f32 %v1025, 0.0
        %v1032 = vmax.f32 %v1027, 0.0
        %1033 = vst [vmem:[%s597] sm:$0xff] %v1029
        %1034 = vst [vmem:[%s597 + $0x8] sm:$0xff] %v1030
        %1035 = vst [vmem:[%s597 + $0x10] sm:$0xff] %v1031
        %vm1036 = vcmask 1014784
        %1037 = vst.msk [vmem:[%s597 + $0x18] sm:$0xff] %vm1036, %v1032
        %1042 = vrot.lane.b32.xlu0 %v1029, 127
        %v1043 = vpop.permute.xlu0 %1042
        %1044 = vrot.lane.b32.xlu0 %v1030, 127
        %v1045 = vpop.permute.xlu0 %1044
        %1046 = vrot.lane.b32.xlu0 %v1031, 127
        %v1047 = vpop.permute.xlu0 %1046
        %1048 = vrot.lane.b32.xlu0 %v1032, 127
        %v1049 = vpop.permute.xlu0 %1048
        %v1050 = vsel %vm640, %v1043, %v1045
        %v1051 = vsel %vm640, %v1045, %v1047
        %v1052 = vsel %vm640, %v1047, %v1049
        %v1057 = vmax.f32 %v1029, %v1050
        %v1058 = vmax.f32 %v1030, %v1051
        %v1059 = vmax.f32 %v1031, %v1052
        %v1060 = vmax.f32 %v1032, %v1049
        %v1061 = vld [vmem:[%s13] sm:$0xff]
        %v1062 = vld [vmem:[%s13 + $0x8] sm:$0xff]
        %v1063 = vld [vmem:[%s13 + $0x10] sm:$0xff]
        %v1064 = vld [vmem:[%s13 + $0x18] sm:$0xff]
        %v1065 = vld [vmem:[%s13 + $0x20] sm:$0xff]
        %v1066 = vld [vmem:[%s13 + $0x28] sm:$0xff]
        %v1067 = vld [vmem:[%s13 + $0x30] sm:$0xff]
        %v1068 = vld [vmem:[%s13 + $0x38] sm:$0xff]
        %v1069 = vld [vmem:[%s13 + $0x40] sm:$0xff]
        %v1070 = vld [vmem:[%s13 + $0x48] sm:$0xff]
        %v1071 = vld [vmem:[%s13 + $0x50] sm:$0xff]
        %v1072 = vld [vmem:[%s13 + $0x58] sm:$0xff]
        %v1073 = vld [vmem:[%s13 + $0x60] sm:$0xff]
        %v1074 = vld [vmem:[%s13 + $0x68] sm:$0xff]
        %v1075 = vld [vmem:[%s13 + $0x70] sm:$0xff]
        %v1076 = vld [vmem:[%s13 + $0x78] sm:$0xff]
        %v1077 = vld [vmem:[%s13 + $0x80] sm:$0xff]
        %v1078 = vld [vmem:[%s13 + $0x88] sm:$0xff]
        %v1079 = vld [vmem:[%s13 + $0x90] sm:$0xff]
        %v1080 = vld [vmem:[%s13 + $0x98] sm:$0xff]
        %v1081 = vld [vmem:[%s13 + $0xa0] sm:$0xff]
        %v1082 = vld [vmem:[%s13 + $0xa8] sm:$0xff]
        %v1083 = vld [vmem:[%s13 + $0xb0] sm:$0xff]
        %v1084 = vld [vmem:[%s13 + $0xb8] sm:$0xff]
        %v1085 = vld [vmem:[%s13 + $0xc0] sm:$0xff]
        %v1086 = vld [vmem:[%s13 + $0xc8] sm:$0xff]
        %v1087 = vld [vmem:[%s13 + $0xd0] sm:$0xff]
        %v1088 = vld [vmem:[%s13 + $0xd8] sm:$0xff]
        %v1089 = vld [vmem:[%s13 + $0xe0] sm:$0xff]
        %v1090 = vld [vmem:[%s13 + $0xe8] sm:$0xff]
        %v1091 = vld [vmem:[%s13 + $0xf0] sm:$0xff]
        %v1092 = vld [vmem:[%s13 + $0xf8] sm:$0xff]
        %v1093 = vld [vmem:[%s13 + $0x100] sm:$0xff]
        %v1094 = vld [vmem:[%s13 + $0x108] sm:$0xff]
        %v1095 = vld [vmem:[%s13 + $0x110] sm:$0xff]
        %v1096 = vld [vmem:[%s13 + $0x118] sm:$0xff]
        %v1097 = vld [vmem:[%s13 + $0x120] sm:$0xff]
        %v1098 = vld [vmem:[%s13 + $0x128] sm:$0xff]
        %v1099 = vld [vmem:[%s13 + $0x130] sm:$0xff]
        %v1100 = vld [vmem:[%s13 + $0x138] sm:$0xff]
        %v1101 = vld [vmem:[%s13 + $0x140] sm:$0xff]
        %v1102 = vld [vmem:[%s13 + $0x148] sm:$0xff]
        %v1103 = vld [vmem:[%s13 + $0x150] sm:$0xff]
        %v1104 = vld [vmem:[%s13 + $0x158] sm:$0xff]
        %v1105 = vld [vmem:[%s13 + $0x160] sm:$0xff]
        %v1106 = vld [vmem:[%s13 + $0x168] sm:$0xff]
        %v1107 = vld [vmem:[%s13 + $0x170] sm:$0xff]
        %v1108 = vld [vmem:[%s13 + $0x178] sm:$0xff]
        %v1109 = vld [vmem:[%s13 + $0x180] sm:$0xff]
        %v1110 = vld [vmem:[%s13 + $0x188] sm:$0xff]
        %v1111 = vld [vmem:[%s13 + $0x190] sm:$0xff]
        %v1112 = vld [vmem:[%s13 + $0x198] sm:$0xff]
        %v1113 = vld [vmem:[%s13 + $0x1a0] sm:$0xff]
        %v1114 = vld [vmem:[%s13 + $0x1a8] sm:$0xff]
        %v1115 = vld [vmem:[%s13 + $0x1b0] sm:$0xff]
        %v1116 = vld [vmem:[%s13 + $0x1b8] sm:$0xff]
        %v1117 = vld [vmem:[%s13 + $0x1c0] sm:$0xff]
        %v1118 = vld [vmem:[%s13 + $0x1c8] sm:$0xff]
        %v1119 = vld [vmem:[%s13 + $0x1d0] sm:$0xff]
        %v1120 = vld [vmem:[%s13 + $0x1d8] sm:$0xff]
        %v1121 = vld [vmem:[%s13 + $0x1e0] sm:$0xff]
        %v1122 = vld [vmem:[%s13 + $0x1e8] sm:$0xff]
        %v1123 = vld [vmem:[%s13 + $0x1f0] sm:$0xff]
        %v1124 = vld [vmem:[%s13 + $0x1f8] sm:$0xff]
        %v1125 = vld [vmem:[%s13 + $0x200] sm:$0xff]
        %v1126 = vld [vmem:[%s13 + $0x208] sm:$0xff]
        %v1127 = vld [vmem:[%s13 + $0x210] sm:$0xff]
        %v1128 = vld [vmem:[%s13 + $0x218] sm:$0xff]
        %v1129 = vld [vmem:[%s13 + $0x220] sm:$0xff]
        %v1130 = vld [vmem:[%s13 + $0x228] sm:$0xff]
        %v1131 = vld [vmem:[%s13 + $0x230] sm:$0xff]
        %v1132 = vld [vmem:[%s13 + $0x238] sm:$0xff]
        %v1133 = vld [vmem:[%s13 + $0x240] sm:$0xff]
        %v1134 = vld [vmem:[%s13 + $0x248] sm:$0xff]
        %v1135 = vld [vmem:[%s13 + $0x250] sm:$0xff]
        %v1136 = vld [vmem:[%s13 + $0x258] sm:$0xff]
        %v1137 = vld [vmem:[%s13 + $0x260] sm:$0xff]
        %v1138 = vld [vmem:[%s13 + $0x268] sm:$0xff]
        %v1139 = vld [vmem:[%s13 + $0x270] sm:$0xff]
        %v1140 = vld [vmem:[%s13 + $0x278] sm:$0xff]
        %v1141 = vld [vmem:[%s13 + $0x280] sm:$0xff]
        %v1142 = vld [vmem:[%s13 + $0x288] sm:$0xff]
        %v1143 = vld [vmem:[%s13 + $0x290] sm:$0xff]
        %v1144 = vld [vmem:[%s13 + $0x298] sm:$0xff]
        %v1145 = vld [vmem:[%s13 + $0x2a0] sm:$0xff]
        %v1146 = vld [vmem:[%s13 + $0x2a8] sm:$0xff]
        %v1147 = vld [vmem:[%s13 + $0x2b0] sm:$0xff]
        %v1148 = vld [vmem:[%s13 + $0x2b8] sm:$0xff]
        %v1149 = vld [vmem:[%s13 + $0x2c0] sm:$0xff]
        %v1150 = vld [vmem:[%s13 + $0x2c8] sm:$0xff]
        %v1151 = vld [vmem:[%s13 + $0x2d0] sm:$0xff]
        %v1152 = vld [vmem:[%s13 + $0x2d8] sm:$0xff]
        %v1153 = vld [vmem:[%s13 + $0x2e0] sm:$0xff]
        %v1154 = vld [vmem:[%s13 + $0x2e8] sm:$0xff]
        %v1155 = vld [vmem:[%s13 + $0x2f0] sm:$0xff]
        %v1156 = vld [vmem:[%s13 + $0x2f8] sm:$0xff]
        %v1157 = vld [vmem:[%s13 + $0x300] sm:$0xff]
        %v1158 = vld [vmem:[%s13 + $0x308] sm:$0xff]
        %v1159 = vld [vmem:[%s13 + $0x310] sm:$0xff]
        %v1160 = vld [vmem:[%s13 + $0x318] sm:$0xff]
        %v1161 = vld [vmem:[%s13 + $0x320] sm:$0xff]
        %v1162 = vld [vmem:[%s13 + $0x328] sm:$0xff]
        %v1163 = vld [vmem:[%s13 + $0x330] sm:$0xff]
        %v1164 = vld [vmem:[%s13 + $0x338] sm:$0xff]
        %v1165 = vld [vmem:[%s13 + $0x340] sm:$0xff]
        %v1166 = vld [vmem:[%s13 + $0x348] sm:$0xff]
        %v1167 = vld [vmem:[%s13 + $0x350] sm:$0xff]
        %v1168 = vld [vmem:[%s13 + $0x358] sm:$0xff]
        %v1169 = vld [vmem:[%s13 + $0x360] sm:$0xff]
        %v1170 = vld [vmem:[%s13 + $0x368] sm:$0xff]
        %v1171 = vld [vmem:[%s13 + $0x370] sm:$0xff]
        %v1172 = vld [vmem:[%s13 + $0x378] sm:$0xff]
        %v1173 = vld [vmem:[%s13 + $0x380] sm:$0xff]
        %v1174 = vld [vmem:[%s13 + $0x388] sm:$0xff]
        %v1175 = vld [vmem:[%s13 + $0x390] sm:$0xff]
        %v1176 = vld [vmem:[%s13 + $0x398] sm:$0xff]
        %v1177 = vld [vmem:[%s13 + $0x3a0] sm:$0xff]
        %v1178 = vld [vmem:[%s13 + $0x3a8] sm:$0xff]
        %v1179 = vld [vmem:[%s13 + $0x3b0] sm:$0xff]
        %v1180 = vld [vmem:[%s13 + $0x3b8] sm:$0xff]
        %v1181 = vld [vmem:[%s13 + $0x3c0] sm:$0xff]
        %v1182 = vld [vmem:[%s13 + $0x3c8] sm:$0xff]
        %v1183 = vld [vmem:[%s13 + $0x3d0] sm:$0xff]
        %v1184 = vld [vmem:[%s13 + $0x3d8] sm:$0xff]
        %v1185 = vld [vmem:[%s13 + $0x3e0] sm:$0xff]
        %v1186 = vld [vmem:[%s13 + $0x3e8] sm:$0xff]
        %v1187 = vld [vmem:[%s13 + $0x3f0] sm:$0x7]
        %v1188 = vld [vmem:[%s13 + $0x3f8] sm:$0x7]
        %vm1189 = vcmask 1006592
        %v1191 = vsel %vm1189, %v1060, 0
        %vm1193 = vcmask 1042432
        %v1195 = vsel %vm1193, %v1187, 0
        %v1198 = vsel %vm1193, %v1188, 0
        %v1200 = vand.u32 %v1062, 4294901760
        %1201 = vmatprep.subr.mxu0 %v1200
        %v1202 = vand.u32 %v1061, 4294901760
        %1203 = vmatpush1.msra.mxu0 %v1202
        %v1204 = vand.u32 %v1064, 4294901760
        %1205 = vmatprep.subr.mxu0 %v1204
        %v1206 = vand.u32 %v1063, 4294901760
        %1207 = vmatpush1.msra.mxu0 %v1206
        %v1208 = vand.u32 %v1066, 4294901760
        %1209 = vmatprep.subr.mxu0 %v1208
        %v1210 = vand.u32 %v1065, 4294901760
        %1211 = vmatpush1.msra.mxu0 %v1210
        %v1212 = vand.u32 %v1068, 4294901760
        %1213 = vmatprep.subr.mxu0 %v1212
        %v1214 = vand.u32 %v1067, 4294901760
        %1215 = vmatpush1.msra.mxu0 %v1214
        %v1216 = vand.u32 %v1070, 4294901760
        %1217 = vmatprep.subr.mxu0 %v1216
        %v1218 = vand.u32 %v1069, 4294901760
        %1219 = vmatpush1.msra.mxu0 %v1218
        %v1220 = vand.u32 %v1072, 4294901760
        %1221 = vmatprep.subr.mxu0 %v1220
        %v1222 = vand.u32 %v1071, 4294901760
        %1223 = vmatpush1.msra.mxu0 %v1222
        %v1224 = vand.u32 %v1074, 4294901760
        %1225 = vmatprep.subr.mxu0 %v1224
        %v1226 = vand.u32 %v1073, 4294901760
        %1227 = vmatpush1.msra.mxu0 %v1226
        %v1228 = vand.u32 %v1076, 4294901760
        %1229 = vmatprep.subr.mxu0 %v1228
        %v1230 = vand.u32 %v1075, 4294901760
        %1231 = vmatpush1.msra.mxu0 %v1230
        %v1232 = vand.u32 %v1078, 4294901760
        %1233 = vmatprep.subr.mxu0 %v1232
        %v1234 = vand.u32 %v1077, 4294901760
        %1235 = vmatpush1.msra.mxu0 %v1234
        %v1236 = vand.u32 %v1080, 4294901760
        %1237 = vmatprep.subr.mxu0 %v1236
        %v1238 = vand.u32 %v1079, 4294901760
        %1239 = vmatpush1.msra.mxu0 %v1238
        %v1240 = vand.u32 %v1082, 4294901760
        %1241 = vmatprep.subr.mxu0 %v1240
        %v1242 = vand.u32 %v1081, 4294901760
        %1243 = vmatpush1.msra.mxu0 %v1242
        %v1244 = vand.u32 %v1084, 4294901760
        %1245 = vmatprep.subr.mxu0 %v1244
        %v1246 = vand.u32 %v1083, 4294901760
        %1247 = vmatpush1.msra.mxu0 %v1246
        %v1248 = vand.u32 %v1086, 4294901760
        %1249 = vmatprep.subr.mxu0 %v1248
        %v1250 = vand.u32 %v1085, 4294901760
        %1251 = vmatpush1.msra.mxu0 %v1250
        %v1252 = vand.u32 %v1088, 4294901760
        %1253 = vmatprep.subr.mxu0 %v1252
        %v1254 = vand.u32 %v1087, 4294901760
        %1255 = vmatpush1.msra.mxu0 %v1254
        %v1256 = vand.u32 %v1090, 4294901760
        %1257 = vmatprep.subr.mxu0 %v1256
        %v1258 = vand.u32 %v1089, 4294901760
        %1259 = vmatpush1.msra.mxu0 %v1258
        %v1260 = vand.u32 %v1092, 4294901760
        %1261 = vmatprep.subr.mxu0 %v1260
        %v1262 = vand.u32 %v1091, 4294901760
        %1263 = vmatpush1.msra.mxu0 %v1262
        %v1264 = vand.u32 %v1094, 4294901760
        %1265 = vmatprep.subr.mxu0 %v1264
        %v1266 = vand.u32 %v1093, 4294901760
        %1267 = vmatpush1.msra.mxu0 %v1266
        %v1268 = vand.u32 %v1096, 4294901760
        %1269 = vmatprep.subr.mxu0 %v1268
        %v1270 = vand.u32 %v1095, 4294901760
        %1271 = vmatpush1.msra.mxu0 %v1270
        %v1272 = vand.u32 %v1098, 4294901760
        %1273 = vmatprep.subr.mxu0 %v1272
        %v1274 = vand.u32 %v1097, 4294901760
        %1275 = vmatpush1.msra.mxu0 %v1274
        %v1276 = vand.u32 %v1100, 4294901760
        %1277 = vmatprep.subr.mxu0 %v1276
        %v1278 = vand.u32 %v1099, 4294901760
        %1279 = vmatpush1.msra.mxu0 %v1278
        %v1280 = vand.u32 %v1102, 4294901760
        %1281 = vmatprep.subr.mxu0 %v1280
        %v1282 = vand.u32 %v1101, 4294901760
        %1283 = vmatpush1.msra.mxu0 %v1282
        %v1284 = vand.u32 %v1104, 4294901760
        %1285 = vmatprep.subr.mxu0 %v1284
        %v1286 = vand.u32 %v1103, 4294901760
        %1287 = vmatpush1.msra.mxu0 %v1286
        %v1288 = vand.u32 %v1106, 4294901760
        %1289 = vmatprep.subr.mxu0 %v1288
        %v1290 = vand.u32 %v1105, 4294901760
        %1291 = vmatpush1.msra.mxu0 %v1290
        %v1292 = vand.u32 %v1108, 4294901760
        %1293 = vmatprep.subr.mxu0 %v1292
        %v1294 = vand.u32 %v1107, 4294901760
        %1295 = vmatpush1.msra.mxu0 %v1294
        %v1296 = vand.u32 %v1110, 4294901760
        %1297 = vmatprep.subr.mxu0 %v1296
        %v1298 = vand.u32 %v1109, 4294901760
        %1299 = vmatpush1.msra.mxu0 %v1298
        %v1300 = vand.u32 %v1112, 4294901760
        %1301 = vmatprep.subr.mxu0 %v1300
        %v1302 = vand.u32 %v1111, 4294901760
        %1303 = vmatpush1.msra.mxu0 %v1302
        %v1304 = vand.u32 %v1114, 4294901760
        %1305 = vmatprep.subr.mxu0 %v1304
        %v1306 = vand.u32 %v1113, 4294901760
        %1307 = vmatpush1.msra.mxu0 %v1306
        %v1308 = vand.u32 %v1116, 4294901760
        %1309 = vmatprep.subr.mxu0 %v1308
        %v1310 = vand.u32 %v1115, 4294901760
        %1311 = vmatpush1.msra.mxu0 %v1310
        %v1312 = vand.u32 %v1118, 4294901760
        %1313 = vmatprep.subr.mxu0 %v1312
        %v1314 = vand.u32 %v1117, 4294901760
        %1315 = vmatpush1.msra.mxu0 %v1314
        %v1316 = vand.u32 %v1120, 4294901760
        %1317 = vmatprep.subr.mxu0 %v1316
        %v1318 = vand.u32 %v1119, 4294901760
        %1319 = vmatpush1.msra.mxu0 %v1318
        %v1320 = vand.u32 %v1122, 4294901760
        %1321 = vmatprep.subr.mxu0 %v1320
        %v1322 = vand.u32 %v1121, 4294901760
        %1323 = vmatpush1.msra.mxu0 %v1322
        %v1324 = vand.u32 %v1124, 4294901760
        %1325 = vmatprep.subr.mxu0 %v1324
        %v1326 = vand.u32 %v1123, 4294901760
        %1327 = vmatpush1.msra.mxu0 %v1326
        %v1328 = vand.u32 %v1058, 4294901760
        %v1329 = vsub.f32 %v1058, %v1328
        %v1330 = vand.u32 %v1329, 4294901760
        %v1331 = vsub.f32 %v1329, %v1330
        %v1332 = vand.u32 %v1331, 4294901760
        %1333 = vmatprep.mubr.f32.mxu0 %v1332
        %v1334 = vand.u32 %v1057, 4294901760
        %v1335 = vsub.f32 %v1057, %v1334
        %v1336 = vand.u32 %v1335, 4294901760
        %v1337 = vsub.f32 %v1335, %v1336
        %v1338 = vand.u32 %v1337, 4294901760
        %1339 = vmatmul.mubr.f32.gmra.mrb[0].mxu0 %v1338
        %v1340 = vpop.f32.mrb[0].mxu0
        %v1341 = vadd.f32 0.0, %v1340
        %v1342 = vpop.f32.mrb[0].mxu0
        %v1343 = vadd.f32 0.0, %v1342
        %1344 = vdwg.mxu0
        %v1345 = vand.u32 %v1062, 4294901760
        %v1346 = vsub.f32 %v1062, %v1345
        %v1347 = vand.u32 %v1346, 4294901760
        %v1348 = vsub.f32 %v1346, %v1347
        %v1349 = vand.u32 %v1348, 4294901760
        %1350 = vmatprep.subr.mxu0 %v1349
        %v1351 = vand.u32 %v1061, 4294901760
        %v1352 = vsub.f32 %v1061, %v1351
        %v1353 = vand.u32 %v1352, 4294901760
        %v1354 = vsub.f32 %v1352, %v1353
        %v1355 = vand.u32 %v1354, 4294901760
        %1356 = vmatpush1.msra.mxu0 %v1355
        %v1357 = vand.u32 %v1064, 4294901760
        %v1358 = vsub.f32 %v1064, %v1357
        %v1359 = vand.u32 %v1358, 4294901760
        %v1360 = vsub.f32 %v1358, %v1359
        %v1361 = vand.u32 %v1360, 4294901760
        %1362 = vmatprep.subr.mxu0 %v1361
        %v1363 = vand.u32 %v1063, 4294901760
        %v1364 = vsub.f32 %v1063, %v1363
        %v1365 = vand.u32 %v1364, 4294901760
        %v1366 = vsub.f32 %v1364, %v1365
        %v1367 = vand.u32 %v1366, 4294901760
        %1368 = vmatpush1.msra.mxu0 %v1367
        %v1369 = vand.u32 %v1066, 4294901760
        %v1370 = vsub.f32 %v1066, %v1369
        %v1371 = vand.u32 %v1370, 4294901760
        %v1372 = vsub.f32 %v1370, %v1371
        %v1373 = vand.u32 %v1372, 4294901760
        %1374 = vmatprep.subr.mxu0 %v1373
        %v1375 = vand.u32 %v1065, 4294901760
        %v1376 = vsub.f32 %v1065, %v1375
        %v1377 = vand.u32 %v1376, 4294901760
        %v1378 = vsub.f32 %v1376, %v1377
        %v1379 = vand.u32 %v1378, 4294901760
        %1380 = vmatpush1.msra.mxu0 %v1379
        %v1381 = vand.u32 %v1068, 4294901760
        %v1382 = vsub.f32 %v1068, %v1381
        %v1383 = vand.u32 %v1382, 4294901760
        %v1384 = vsub.f32 %v1382, %v1383
        %v1385 = vand.u32 %v1384, 4294901760
        %1386 = vmatprep.subr.mxu0 %v1385
        %v1387 = vand.u32 %v1067, 4294901760
        %v1388 = vsub.f32 %v1067, %v1387
        %v1389 = vand.u32 %v1388, 4294901760
        %v1390 = vsub.f32 %v1388, %v1389
        %v1391 = vand.u32 %v1390, 4294901760
        %1392 = vmatpush1.msra.mxu0 %v1391
        %v1393 = vand.u32 %v1070, 4294901760
        %v1394 = vsub.f32 %v1070, %v1393
        %v1395 = vand.u32 %v1394, 4294901760
        %v1396 = vsub.f32 %v1394, %v1395
        %v1397 = vand.u32 %v1396, 4294901760
        %1398 = vmatprep.subr.mxu0 %v1397
        %v1399 = vand.u32 %v1069, 4294901760
        %v1400 = vsub.f32 %v1069, %v1399
        %v1401 = vand.u32 %v1400, 4294901760
        %v1402 = vsub.f32 %v1400, %v1401
        %v1403 = vand.u32 %v1402, 4294901760
        %1404 = vmatpush1.msra.mxu0 %v1403
        %v1405 = vand.u32 %v1072, 4294901760
        %v1406 = vsub.f32 %v1072, %v1405
        %v1407 = vand.u32 %v1406, 4294901760
        %v1408 = vsub.f32 %v1406, %v1407
        %v1409 = vand.u32 %v1408, 4294901760
        %1410 = vmatprep.subr.mxu0 %v1409
        %v1411 = vand.u32 %v1071, 4294901760
        %v1412 = vsub.f32 %v1071, %v1411
        %v1413 = vand.u32 %v1412, 4294901760
        %v1414 = vsub.f32 %v1412, %v1413
        %v1415 = vand.u32 %v1414, 4294901760
        %1416 = vmatpush1.msra.mxu0 %v1415
        %v1417 = vand.u32 %v1074, 4294901760
        %v1418 = vsub.f32 %v1074, %v1417
        %v1419 = vand.u32 %v1418, 4294901760
        %v1420 = vsub.f32 %v1418, %v1419
        %v1421 = vand.u32 %v1420, 4294901760
        %1422 = vmatprep.subr.mxu0 %v1421
        %v1423 = vand.u32 %v1073, 4294901760
        %v1424 = vsub.f32 %v1073, %v1423
        %v1425 = vand.u32 %v1424, 4294901760
        %v1426 = vsub.f32 %v1424, %v1425
        %v1427 = vand.u32 %v1426, 4294901760
        %1428 = vmatpush1.msra.mxu0 %v1427
        %v1429 = vand.u32 %v1076, 4294901760
        %v1430 = vsub.f32 %v1076, %v1429
        %v1431 = vand.u32 %v1430, 4294901760
        %v1432 = vsub.f32 %v1430, %v1431
        %v1433 = vand.u32 %v1432, 4294901760
        %1434 = vmatprep.subr.mxu0 %v1433
        %v1435 = vand.u32 %v1075, 4294901760
        %v1436 = vsub.f32 %v1075, %v1435
        %v1437 = vand.u32 %v1436, 4294901760
        %v1438 = vsub.f32 %v1436, %v1437
        %v1439 = vand.u32 %v1438, 4294901760
        %1440 = vmatpush1.msra.mxu0 %v1439
        %v1441 = vand.u32 %v1078, 4294901760
        %v1442 = vsub.f32 %v1078, %v1441
        %v1443 = vand.u32 %v1442, 4294901760
        %v1444 = vsub.f32 %v1442, %v1443
        %v1445 = vand.u32 %v1444, 4294901760
        %1446 = vmatprep.subr.mxu0 %v1445
        %v1447 = vand.u32 %v1077, 4294901760
        %v1448 = vsub.f32 %v1077, %v1447
        %v1449 = vand.u32 %v1448, 4294901760
        %v1450 = vsub.f32 %v1448, %v1449
        %v1451 = vand.u32 %v1450, 4294901760
        %1452 = vmatpush1.msra.mxu0 %v1451
        %v1453 = vand.u32 %v1080, 4294901760
        %v1454 = vsub.f32 %v1080, %v1453
        %v1455 = vand.u32 %v1454, 4294901760
        %v1456 = vsub.f32 %v1454, %v1455
        %v1457 = vand.u32 %v1456, 4294901760
        %1458 = vmatprep.subr.mxu0 %v1457
        %v1459 = vand.u32 %v1079, 4294901760
        %v1460 = vsub.f32 %v1079, %v1459
        %v1461 = vand.u32 %v1460, 4294901760
        %v1462 = vsub.f32 %v1460, %v1461
        %v1463 = vand.u32 %v1462, 4294901760
        %1464 = vmatpush1.msra.mxu0 %v1463
        %v1465 = vand.u32 %v1082, 4294901760
        %v1466 = vsub.f32 %v1082, %v1465
        %v1467 = vand.u32 %v1466, 4294901760
        %v1468 = vsub.f32 %v1466, %v1467
        %v1469 = vand.u32 %v1468, 4294901760
        %1470 = vmatprep.subr.mxu0 %v1469
        %v1471 = vand.u32 %v1081, 4294901760
        %v1472 = vsub.f32 %v1081, %v1471
        %v1473 = vand.u32 %v1472, 4294901760
        %v1474 = vsub.f32 %v1472, %v1473
        %v1475 = vand.u32 %v1474, 4294901760
        %1476 = vmatpush1.msra.mxu0 %v1475
        %v1477 = vand.u32 %v1084, 4294901760
        %v1478 = vsub.f32 %v1084, %v1477
        %v1479 = vand.u32 %v1478, 4294901760
        %v1480 = vsub.f32 %v1478, %v1479
        %v1481 = vand.u32 %v1480, 4294901760
        %1482 = vmatprep.subr.mxu0 %v1481
        %v1483 = vand.u32 %v1083, 4294901760
        %v1484 = vsub.f32 %v1083, %v1483
        %v1485 = vand.u32 %v1484, 4294901760
        %v1486 = vsub.f32 %v1484, %v1485
        %v1487 = vand.u32 %v1486, 4294901760
        %1488 = vmatpush1.msra.mxu0 %v1487
        %v1489 = vand.u32 %v1086, 4294901760
        %v1490 = vsub.f32 %v1086, %v1489
        %v1491 = vand.u32 %v1490, 4294901760
        %v1492 = vsub.f32 %v1490, %v1491
        %v1493 = vand.u32 %v1492, 4294901760
        %1494 = vmatprep.subr.mxu0 %v1493
        %v1495 = vand.u32 %v1085, 4294901760
        %v1496 = vsub.f32 %v1085, %v1495
        %v1497 = vand.u32 %v1496, 4294901760
        %v1498 = vsub.f32 %v1496, %v1497
        %v1499 = vand.u32 %v1498, 4294901760
        %1500 = vmatpush1.msra.mxu0 %v1499
        %v1501 = vand.u32 %v1088, 4294901760
        %v1502 = vsub.f32 %v1088, %v1501
        %v1503 = vand.u32 %v1502, 4294901760
        %v1504 = vsub.f32 %v1502, %v1503
        %v1505 = vand.u32 %v1504, 4294901760
        %1506 = vmatprep.subr.mxu0 %v1505
        %v1507 = vand.u32 %v1087, 4294901760
        %v1508 = vsub.f32 %v1087, %v1507
        %v1509 = vand.u32 %v1508, 4294901760
        %v1510 = vsub.f32 %v1508, %v1509
        %v1511 = vand.u32 %v1510, 4294901760
        %1512 = vmatpush1.msra.mxu0 %v1511
        %v1513 = vand.u32 %v1090, 4294901760
        %v1514 = vsub.f32 %v1090, %v1513
        %v1515 = vand.u32 %v1514, 4294901760
        %v1516 = vsub.f32 %v1514, %v1515
        %v1517 = vand.u32 %v1516, 4294901760
        %1518 = vmatprep.subr.mxu0 %v1517
        %v1519 = vand.u32 %v1089, 4294901760
        %v1520 = vsub.f32 %v1089, %v1519
        %v1521 = vand.u32 %v1520, 4294901760
        %v1522 = vsub.f32 %v1520, %v1521
        %v1523 = vand.u32 %v1522, 4294901760
        %1524 = vmatpush1.msra.mxu0 %v1523
        %v1525 = vand.u32 %v1092, 4294901760
        %v1526 = vsub.f32 %v1092, %v1525
        %v1527 = vand.u32 %v1526, 4294901760
        %v1528 = vsub.f32 %v1526, %v1527
        %v1529 = vand.u32 %v1528, 4294901760
        %1530 = vmatprep.subr.mxu0 %v1529
        %v1531 = vand.u32 %v1091, 4294901760
        %v1532 = vsub.f32 %v1091, %v1531
        %v1533 = vand.u32 %v1532, 4294901760
        %v1534 = vsub.f32 %v1532, %v1533
        %v1535 = vand.u32 %v1534, 4294901760
        %1536 = vmatpush1.msra.mxu0 %v1535
        %v1537 = vand.u32 %v1094, 4294901760
        %v1538 = vsub.f32 %v1094, %v1537
        %v1539 = vand.u32 %v1538, 4294901760
        %v1540 = vsub.f32 %v1538, %v1539
        %v1541 = vand.u32 %v1540, 4294901760
        %1542 = vmatprep.subr.mxu0 %v1541
        %v1543 = vand.u32 %v1093, 4294901760
        %v1544 = vsub.f32 %v1093, %v1543
        %v1545 = vand.u32 %v1544, 4294901760
        %v1546 = vsub.f32 %v1544, %v1545
        %v1547 = vand.u32 %v1546, 4294901760
        %1548 = vmatpush1.msra.mxu0 %v1547
        %v1549 = vand.u32 %v1096, 4294901760
        %v1550 = vsub.f32 %v1096, %v1549
        %v1551 = vand.u32 %v1550, 4294901760
        %v1552 = vsub.f32 %v1550, %v1551
        %v1553 = vand.u32 %v1552, 4294901760
        %1554 = vmatprep.subr.mxu0 %v1553
        %v1555 = vand.u32 %v1095, 4294901760
        %v1556 = vsub.f32 %v1095, %v1555
        %v1557 = vand.u32 %v1556, 4294901760
        %v1558 = vsub.f32 %v1556, %v1557
        %v1559 = vand.u32 %v1558, 4294901760
        %1560 = vmatpush1.msra.mxu0 %v1559
        %v1561 = vand.u32 %v1098, 4294901760
        %v1562 = vsub.f32 %v1098, %v1561
        %v1563 = vand.u32 %v1562, 4294901760
        %v1564 = vsub.f32 %v1562, %v1563
        %v1565 = vand.u32 %v1564, 4294901760
        %1566 = vmatprep.subr.mxu0 %v1565
        %v1567 = vand.u32 %v1097, 4294901760
        %v1568 = vsub.f32 %v1097, %v1567
        %v1569 = vand.u32 %v1568, 4294901760
        %v1570 = vsub.f32 %v1568, %v1569
        %v1571 = vand.u32 %v1570, 4294901760
        %1572 = vmatpush1.msra.mxu0 %v1571
        %v1573 = vand.u32 %v1100, 4294901760
        %v1574 = vsub.f32 %v1100, %v1573
        %v1575 = vand.u32 %v1574, 4294901760
        %v1576 = vsub.f32 %v1574, %v1575
        %v1577 = vand.u32 %v1576, 4294901760
        %1578 = vmatprep.subr.mxu0 %v1577
        %v1579 = vand.u32 %v1099, 4294901760
        %v1580 = vsub.f32 %v1099, %v1579
        %v1581 = vand.u32 %v1580, 4294901760
        %v1582 = vsub.f32 %v1580, %v1581
        %v1583 = vand.u32 %v1582, 4294901760
        %1584 = vmatpush1.msra.mxu0 %v1583
        %v1585 = vand.u32 %v1102, 4294901760
        %v1586 = vsub.f32 %v1102, %v1585
        %v1587 = vand.u32 %v1586, 4294901760
        %v1588 = vsub.f32 %v1586, %v1587
        %v1589 = vand.u32 %v1588, 4294901760
        %1590 = vmatprep.subr.mxu0 %v1589
        %v1591 = vand.u32 %v1101, 4294901760
        %v1592 = vsub.f32 %v1101, %v1591
        %v1593 = vand.u32 %v1592, 4294901760
        %v1594 = vsub.f32 %v1592, %v1593
        %v1595 = vand.u32 %v1594, 4294901760
        %1596 = vmatpush1.msra.mxu0 %v1595
        %v1597 = vand.u32 %v1104, 4294901760
        %v1598 = vsub.f32 %v1104, %v1597
        %v1599 = vand.u32 %v1598, 4294901760
        %v1600 = vsub.f32 %v1598, %v1599
        %v1601 = vand.u32 %v1600, 4294901760
        %1602 = vmatprep.subr.mxu0 %v1601
        %v1603 = vand.u32 %v1103, 4294901760
        %v1604 = vsub.f32 %v1103, %v1603
        %v1605 = vand.u32 %v1604, 4294901760
        %v1606 = vsub.f32 %v1604, %v1605
        %v1607 = vand.u32 %v1606, 4294901760
        %1608 = vmatpush1.msra.mxu0 %v1607
        %v1609 = vand.u32 %v1106, 4294901760
        %v1610 = vsub.f32 %v1106, %v1609
        %v1611 = vand.u32 %v1610, 4294901760
        %v1612 = vsub.f32 %v1610, %v1611
        %v1613 = vand.u32 %v1612, 4294901760
        %1614 = vmatprep.subr.mxu0 %v1613
        %v1615 = vand.u32 %v1105, 4294901760
        %v1616 = vsub.f32 %v1105, %v1615
        %v1617 = vand.u32 %v1616, 4294901760
        %v1618 = vsub.f32 %v1616, %v1617
        %v1619 = vand.u32 %v1618, 4294901760
        %1620 = vmatpush1.msra.mxu0 %v1619
        %v1621 = vand.u32 %v1108, 4294901760
        %v1622 = vsub.f32 %v1108, %v1621
        %v1623 = vand.u32 %v1622, 4294901760
        %v1624 = vsub.f32 %v1622, %v1623
        %v1625 = vand.u32 %v1624, 4294901760
        %1626 = vmatprep.subr.mxu0 %v1625
        %v1627 = vand.u32 %v1107, 4294901760
        %v1628 = vsub.f32 %v1107, %v1627
        %v1629 = vand.u32 %v1628, 4294901760
        %v1630 = vsub.f32 %v1628, %v1629
        %v1631 = vand.u32 %v1630, 4294901760
        %1632 = vmatpush1.msra.mxu0 %v1631
        %v1633 = vand.u32 %v1110, 4294901760
        %v1634 = vsub.f32 %v1110, %v1633
        %v1635 = vand.u32 %v1634, 4294901760
        %v1636 = vsub.f32 %v1634, %v1635
        %v1637 = vand.u32 %v1636, 4294901760
        %1638 = vmatprep.subr.mxu0 %v1637
        %v1639 = vand.u32 %v1109, 4294901760
        %v1640 = vsub.f32 %v1109, %v1639
        %v1641 = vand.u32 %v1640, 4294901760
        %v1642 = vsub.f32 %v1640, %v1641
        %v1643 = vand.u32 %v1642, 4294901760
        %1644 = vmatpush1.msra.mxu0 %v1643
        %v1645 = vand.u32 %v1112, 4294901760
        %v1646 = vsub.f32 %v1112, %v1645
        %v1647 = vand.u32 %v1646, 4294901760
        %v1648 = vsub.f32 %v1646, %v1647
        %v1649 = vand.u32 %v1648, 4294901760
        %1650 = vmatprep.subr.mxu0 %v1649
        %v1651 = vand.u32 %v1111, 4294901760
        %v1652 = vsub.f32 %v1111, %v1651
        %v1653 = vand.u32 %v1652, 4294901760
        %v1654 = vsub.f32 %v1652, %v1653
        %v1655 = vand.u32 %v1654, 4294901760
        %1656 = vmatpush1.msra.mxu0 %v1655
        %v1657 = vand.u32 %v1114, 4294901760
        %v1658 = vsub.f32 %v1114, %v1657
        %v1659 = vand.u32 %v1658, 4294901760
        %v1660 = vsub.f32 %v1658, %v1659
        %v1661 = vand.u32 %v1660, 4294901760
        %1662 = vmatprep.subr.mxu0 %v1661
        %v1663 = vand.u32 %v1113, 4294901760
        %v1664 = vsub.f32 %v1113, %v1663
        %v1665 = vand.u32 %v1664, 4294901760
        %v1666 = vsub.f32 %v1664, %v1665
        %v1667 = vand.u32 %v1666, 4294901760
        %1668 = vmatpush1.msra.mxu0 %v1667
        %v1669 = vand.u32 %v1116, 4294901760
        %v1670 = vsub.f32 %v1116, %v1669
        %v1671 = vand.u32 %v1670, 4294901760
        %v1672 = vsub.f32 %v1670, %v1671
        %v1673 = vand.u32 %v1672, 4294901760
        %1674 = vmatprep.subr.mxu0 %v1673
        %v1675 = vand.u32 %v1115, 4294901760
        %v1676 = vsub.f32 %v1115, %v1675
        %v1677 = vand.u32 %v1676, 4294901760
        %v1678 = vsub.f32 %v1676, %v1677
        %v1679 = vand.u32 %v1678, 4294901760
        %1680 = vmatpush1.msra.mxu0 %v1679
        %v1681 = vand.u32 %v1118, 4294901760
        %v1682 = vsub.f32 %v1118, %v1681
        %v1683 = vand.u32 %v1682, 4294901760
        %v1684 = vsub.f32 %v1682, %v1683
        %v1685 = vand.u32 %v1684, 4294901760
        %1686 = vmatprep.subr.mxu0 %v1685
        %v1687 = vand.u32 %v1117, 4294901760
        %v1688 = vsub.f32 %v1117, %v1687
        %v1689 = vand.u32 %v1688, 4294901760
        %v1690 = vsub.f32 %v1688, %v1689
        %v1691 = vand.u32 %v1690, 4294901760
        %1692 = vmatpush1.msra.mxu0 %v1691
        %v1693 = vand.u32 %v1120, 4294901760
        %v1694 = vsub.f32 %v1120, %v1693
        %v1695 = vand.u32 %v1694, 4294901760
        %v1696 = vsub.f32 %v1694, %v1695
        %v1697 = vand.u32 %v1696, 4294901760
        %1698 = vmatprep.subr.mxu0 %v1697
        %v1699 = vand.u32 %v1119, 4294901760
        %v1700 = vsub.f32 %v1119, %v1699
        %v1701 = vand.u32 %v1700, 4294901760
        %v1702 = vsub.f32 %v1700, %v1701
        %v1703 = vand.u32 %v1702, 4294901760
        %1704 = vmatpush1.msra.mxu0 %v1703
        %v1705 = vand.u32 %v1122, 4294901760
        %v1706 = vsub.f32 %v1122, %v1705
        %v1707 = vand.u32 %v1706, 4294901760
        %v1708 = vsub.f32 %v1706, %v1707
        %v1709 = vand.u32 %v1708, 4294901760
        %1710 = vmatprep.subr.mxu0 %v1709
        %v1711 = vand.u32 %v1121, 4294901760
        %v1712 = vsub.f32 %v1121, %v1711
        %v1713 = vand.u32 %v1712, 4294901760
        %v1714 = vsub.f32 %v1712, %v1713
        %v1715 = vand.u32 %v1714, 4294901760
        %1716 = vmatpush1.msra.mxu0 %v1715
        %v1717 = vand.u32 %v1124, 4294901760
        %v1718 = vsub.f32 %v1124, %v1717
        %v1719 = vand.u32 %v1718, 4294901760
        %v1720 = vsub.f32 %v1718, %v1719
        %v1721 = vand.u32 %v1720, 4294901760
        %1722 = vmatprep.subr.mxu0 %v1721
        %v1723 = vand.u32 %v1123, 4294901760
        %v1724 = vsub.f32 %v1123, %v1723
        %v1725 = vand.u32 %v1724, 4294901760
        %v1726 = vsub.f32 %v1724, %v1725
        %v1727 = vand.u32 %v1726, 4294901760
        %1728 = vmatpush1.msra.mxu0 %v1727
        %v1729 = vand.u32 %v1058, 4294901760
        %1730 = vmatprep.mubr.f32.mxu0 %v1729
        %v1731 = vand.u32 %v1057, 4294901760
        %1732 = vmatmul.mubr.f32.gmra.mrb[0].mxu0 %v1731
        %v1733 = vpop.f32.mrb[0].mxu0
        %v1734 = vadd.f32 %v1341, %v1733
        %v1735 = vpop.f32.mrb[0].mxu0
        %v1736 = vadd.f32 %v1343, %v1735
        %1737 = vdwg.mxu0
        %v1738 = vand.u32 %v1062, 4294901760
        %v1739 = vsub.f32 %v1062, %v1738
        %1740 = vmatprep.subr.mxu0 %v1739
        %v1741 = vand.u32 %v1061, 4294901760
        %v1742 = vsub.f32 %v1061, %v1741
        %1743 = vmatpush1.msra.mxu0 %v1742
        %v1744 = vand.u32 %v1064, 4294901760
        %v1745 = vsub.f32 %v1064, %v1744
        %1746 = vmatprep.subr.mxu0 %v1745
        %v1747 = vand.u32 %v1063, 4294901760
        %v1748 = vsub.f32 %v1063, %v1747
        %1749 = vmatpush1.msra.mxu0 %v1748
        %v1750 = vand.u32 %v1066, 4294901760
        %v1751 = vsub.f32 %v1066, %v1750
        %1752 = vmatprep.subr.mxu0 %v1751
        %v1753 = vand.u32 %v1065, 4294901760
        %v1754 = vsub.f32 %v1065, %v1753
        %1755 = vmatpush1.msra.mxu0 %v1754
        %v1756 = vand.u32 %v1068, 4294901760
        %v1757 = vsub.f32 %v1068, %v1756
        %1758 = vmatprep.subr.mxu0 %v1757
        %v1759 = vand.u32 %v1067, 4294901760
        %v1760 = vsub.f32 %v1067, %v1759
        %1761 = vmatpush1.msra.mxu0 %v1760
        %v1762 = vand.u32 %v1070, 4294901760
        %v1763 = vsub.f32 %v1070, %v1762
        %1764 = vmatprep.subr.mxu0 %v1763
        %v1765 = vand.u32 %v1069, 4294901760
        %v1766 = vsub.f32 %v1069, %v1765
        %1767 = vmatpush1.msra.mxu0 %v1766
        %v1768 = vand.u32 %v1072, 4294901760
        %v1769 = vsub.f32 %v1072, %v1768
        %1770 = vmatprep.subr.mxu0 %v1769
        %v1771 = vand.u32 %v1071, 4294901760
        %v1772 = vsub.f32 %v1071, %v1771
        %1773 = vmatpush1.msra.mxu0 %v1772
        %v1774 = vand.u32 %v1074, 4294901760
        %v1775 = vsub.f32 %v1074, %v1774
        %1776 = vmatprep.subr.mxu0 %v1775
        %v1777 = vand.u32 %v1073, 4294901760
        %v1778 = vsub.f32 %v1073, %v1777
        %1779 = vmatpush1.msra.mxu0 %v1778
        %v1780 = vand.u32 %v1076, 4294901760
        %v1781 = vsub.f32 %v1076, %v1780
        %1782 = vmatprep.subr.mxu0 %v1781
        %v1783 = vand.u32 %v1075, 4294901760
        %v1784 = vsub.f32 %v1075, %v1783
        %1785 = vmatpush1.msra.mxu0 %v1784
        %v1786 = vand.u32 %v1078, 4294901760
        %v1787 = vsub.f32 %v1078, %v1786
        %1788 = vmatprep.subr.mxu0 %v1787
        %v1789 = vand.u32 %v1077, 4294901760
        %v1790 = vsub.f32 %v1077, %v1789
        %1791 = vmatpush1.msra.mxu0 %v1790
        %v1792 = vand.u32 %v1080, 4294901760
        %v1793 = vsub.f32 %v1080, %v1792
        %1794 = vmatprep.subr.mxu0 %v1793
        %v1795 = vand.u32 %v1079, 4294901760
        %v1796 = vsub.f32 %v1079, %v1795
        %1797 = vmatpush1.msra.mxu0 %v1796
        %v1798 = vand.u32 %v1082, 4294901760
        %v1799 = vsub.f32 %v1082, %v1798
        %1800 = vmatprep.subr.mxu0 %v1799
        %v1801 = vand.u32 %v1081, 4294901760
        %v1802 = vsub.f32 %v1081, %v1801
        %1803 = vmatpush1.msra.mxu0 %v1802
        %v1804 = vand.u32 %v1084, 4294901760
        %v1805 = vsub.f32 %v1084, %v1804
        %1806 = vmatprep.subr.mxu0 %v1805
        %v1807 = vand.u32 %v1083, 4294901760
        %v1808 = vsub.f32 %v1083, %v1807
        %1809 = vmatpush1.msra.mxu0 %v1808
        %v1810 = vand.u32 %v1086, 4294901760
        %v1811 = vsub.f32 %v1086, %v1810
        %1812 = vmatprep.subr.mxu0 %v1811
        %v1813 = vand.u32 %v1085, 4294901760
        %v1814 = vsub.f32 %v1085, %v1813
        %1815 = vmatpush1.msra.mxu0 %v1814
        %v1816 = vand.u32 %v1088, 4294901760
        %v1817 = vsub.f32 %v1088, %v1816
        %1818 = vmatprep.subr.mxu0 %v1817
        %v1819 = vand.u32 %v1087, 4294901760
        %v1820 = vsub.f32 %v1087, %v1819
        %1821 = vmatpush1.msra.mxu0 %v1820
        %v1822 = vand.u32 %v1090, 4294901760
        %v1823 = vsub.f32 %v1090, %v1822
        %1824 = vmatprep.subr.mxu0 %v1823
        %v1825 = vand.u32 %v1089, 4294901760
        %v1826 = vsub.f32 %v1089, %v1825
        %1827 = vmatpush1.msra.mxu0 %v1826
        %v1828 = vand.u32 %v1092, 4294901760
        %v1829 = vsub.f32 %v1092, %v1828
        %1830 = vmatprep.subr.mxu0 %v1829
        %v1831 = vand.u32 %v1091, 4294901760
        %v1832 = vsub.f32 %v1091, %v1831
        %1833 = vmatpush1.msra.mxu0 %v1832
        %v1834 = vand.u32 %v1094, 4294901760
        %v1835 = vsub.f32 %v1094, %v1834
        %1836 = vmatprep.subr.mxu0 %v1835
        %v1837 = vand.u32 %v1093, 4294901760
        %v1838 = vsub.f32 %v1093, %v1837
        %1839 = vmatpush1.msra.mxu0 %v1838
        %v1840 = vand.u32 %v1096, 4294901760
        %v1841 = vsub.f32 %v1096, %v1840
        %1842 = vmatprep.subr.mxu0 %v1841
        %v1843 = vand.u32 %v1095, 4294901760
        %v1844 = vsub.f32 %v1095, %v1843
        %1845 = vmatpush1.msra.mxu0 %v1844
        %v1846 = vand.u32 %v1098, 4294901760
        %v1847 = vsub.f32 %v1098, %v1846
        %1848 = vmatprep.subr.mxu0 %v1847
        %v1849 = vand.u32 %v1097, 4294901760
        %v1850 = vsub.f32 %v1097, %v1849
        %1851 = vmatpush1.msra.mxu0 %v1850
        %v1852 = vand.u32 %v1100, 4294901760
        %v1853 = vsub.f32 %v1100, %v1852
        %1854 = vmatprep.subr.mxu0 %v1853
        %v1855 = vand.u32 %v1099, 4294901760
        %v1856 = vsub.f32 %v1099, %v1855
        %1857 = vmatpush1.msra.mxu0 %v1856
        %v1858 = vand.u32 %v1102, 4294901760
        %v1859 = vsub.f32 %v1102, %v1858
        %1860 = vmatprep.subr.mxu0 %v1859
        %v1861 = vand.u32 %v1101, 4294901760
        %v1862 = vsub.f32 %v1101, %v1861
        %1863 = vmatpush1.msra.mxu0 %v1862
        %v1864 = vand.u32 %v1104, 4294901760
        %v1865 = vsub.f32 %v1104, %v1864
        %1866 = vmatprep.subr.mxu0 %v1865
        %v1867 = vand.u32 %v1103, 4294901760
        %v1868 = vsub.f32 %v1103, %v1867
        %1869 = vmatpush1.msra.mxu0 %v1868
        %v1870 = vand.u32 %v1106, 4294901760
        %v1871 = vsub.f32 %v1106, %v1870
        %1872 = vmatprep.subr.mxu0 %v1871
        %v1873 = vand.u32 %v1105, 4294901760
        %v1874 = vsub.f32 %v1105, %v1873
        %1875 = vmatpush1.msra.mxu0 %v1874
        %v1876 = vand.u32 %v1108, 4294901760
        %v1877 = vsub.f32 %v1108, %v1876
        %1878 = vmatprep.subr.mxu0 %v1877
        %v1879 = vand.u32 %v1107, 4294901760
        %v1880 = vsub.f32 %v1107, %v1879
        %1881 = vmatpush1.msra.mxu0 %v1880
        %v1882 = vand.u32 %v1110, 4294901760
        %v1883 = vsub.f32 %v1110, %v1882
        %1884 = vmatprep.subr.mxu0 %v1883
        %v1885 = vand.u32 %v1109, 4294901760
        %v1886 = vsub.f32 %v1109, %v1885
        %1887 = vmatpush1.msra.mxu0 %v1886
        %v1888 = vand.u32 %v1112, 4294901760
        %v1889 = vsub.f32 %v1112, %v1888
        %1890 = vmatprep.subr.mxu0 %v1889
        %v1891 = vand.u32 %v1111, 4294901760
        %v1892 = vsub.f32 %v1111, %v1891
        %1893 = vmatpush1.msra.mxu0 %v1892
        %v1894 = vand.u32 %v1114, 4294901760
        %v1895 = vsub.f32 %v1114, %v1894
        %1896 = vmatprep.subr.mxu0 %v1895
        %v1897 = vand.u32 %v1113, 4294901760
        %v1898 = vsub.f32 %v1113, %v1897
        %1899 = vmatpush1.msra.mxu0 %v1898
        %v1900 = vand.u32 %v1116, 4294901760
        %v1901 = vsub.f32 %v1116, %v1900
        %1902 = vmatprep.subr.mxu0 %v1901
        %v1903 = vand.u32 %v1115, 4294901760
        %v1904 = vsub.f32 %v1115, %v1903
        %1905 = vmatpush1.msra.mxu0 %v1904
        %v1906 = vand.u32 %v1118, 4294901760
        %v1907 = vsub.f32 %v1118, %v1906
        %1908 = vmatprep.subr.mxu0 %v1907
        %v1909 = vand.u32 %v1117, 4294901760
        %v1910 = vsub.f32 %v1117, %v1909
        %1911 = vmatpush1.msra.mxu0 %v1910
        %v1912 = vand.u32 %v1120, 4294901760
        %v1913 = vsub.f32 %v1120, %v1912
        %1914 = vmatprep.subr.mxu0 %v1913
        %v1915 = vand.u32 %v1119, 4294901760
        %v1916 = vsub.f32 %v1119, %v1915
        %1917 = vmatpush1.msra.mxu0 %v1916
        %v1918 = vand.u32 %v1122, 4294901760
        %v1919 = vsub.f32 %v1122, %v1918
        %1920 = vmatprep.subr.mxu0 %v1919
        %v1921 = vand.u32 %v1121, 4294901760
        %v1922 = vsub.f32 %v1121, %v1921
        %1923 = vmatpush1.msra.mxu0 %v1922
        %v1924 = vand.u32 %v1124, 4294901760
        %v1925 = vsub.f32 %v1124, %v1924
        %1926 = vmatprep.subr.mxu0 %v1925
        %v1927 = vand.u32 %v1123, 4294901760
        %v1928 = vsub.f32 %v1123, %v1927
        %1929 = vmatpush1.msra.mxu0 %v1928
        %v1930 = vand.u32 %v1058, 4294901760
        %v1931 = vsub.f32 %v1058, %v1930
        %1932 = vmatprep.mubr.f32.mxu0 %v1931
        %v1933 = vand.u32 %v1057, 4294901760
        %v1934 = vsub.f32 %v1057, %v1933
        %1935 = vmatmul.mubr.f32.gmra.mrb[0].mxu0 %v1934
        %v1936 = vpop.f32.mrb[0].mxu0
        %v1937 = vadd.f32 %v1734, %v1936
        %v1938 = vpop.f32.mrb[0].mxu0
        %v1939 = vadd.f32 %v1736, %v1938
        %1940 = vdwg.mxu0
        %v1941 = vand.u32 %v1062, 4294901760
        %1942 = vmatprep.subr.mxu0 %v1941
        %v1943 = vand.u32 %v1061, 4294901760
        %1944 = vmatpush1.msra.mxu0 %v1943
        %v1945 = vand.u32 %v1064, 4294901760
        %1946 = vmatprep.subr.mxu0 %v1945
        %v1947 = vand.u32 %v1063, 4294901760
        %1948 = vmatpush1.msra.mxu0 %v1947
        %v1949 = vand.u32 %v1066, 4294901760
        %1950 = vmatprep.subr.mxu0 %v1949
        %v1951 = vand.u32 %v1065, 4294901760
        %1952 = vmatpush1.msra.mxu0 %v1951
        %v1953 = vand.u32 %v1068, 4294901760
        %1954 = vmatprep.subr.mxu0 %v1953
        %v1955 = vand.u32 %v1067, 4294901760
        %1956 = vmatpush1.msra.mxu0 %v1955
        %v1957 = vand.u32 %v1070, 4294901760
        %1958 = vmatprep.subr.mxu0 %v1957
        %v1959 = vand.u32 %v1069, 4294901760
        %1960 = vmatpush1.msra.mxu0 %v1959
        %v1961 = vand.u32 %v1072, 4294901760
        %1962 = vmatprep.subr.mxu0 %v1961
        %v1963 = vand.u32 %v1071, 4294901760
        %1964 = vmatpush1.msra.mxu0 %v1963
        %v1965 = vand.u32 %v1074, 4294901760
        %1966 = vmatprep.subr.mxu0 %v1965
        %v1967 = vand.u32 %v1073, 4294901760
        %1968 = vmatpush1.msra.mxu0 %v1967
        %v1969 = vand.u32 %v1076, 4294901760
        %1970 = vmatprep.subr.mxu0 %v1969
        %v1971 = vand.u32 %v1075, 4294901760
        %1972 = vmatpush1.msra.mxu0 %v1971
        %v1973 = vand.u32 %v1078, 4294901760
        %1974 = vmatprep.subr.mxu0 %v1973
        %v1975 = vand.u32 %v1077, 4294901760
        %1976 = vmatpush1.msra.mxu0 %v1975
        %v1977 = vand.u32 %v1080, 4294901760
        %1978 = vmatprep.subr.mxu0 %v1977
        %v1979 = vand.u32 %v1079, 4294901760
        %1980 = vmatpush1.msra.mxu0 %v1979
        %v1981 = vand.u32 %v1082, 4294901760
        %1982 = vmatprep.subr.mxu0 %v1981
        %v1983 = vand.u32 %v1081, 4294901760
        %1984 = vmatpush1.msra.mxu0 %v1983
        %v1985 = vand.u32 %v1084, 4294901760
        %1986 = vmatprep.subr.mxu0 %v1985
        %v1987 = vand.u32 %v1083, 4294901760
        %1988 = vmatpush1.msra.mxu0 %v1987
        %v1989 = vand.u32 %v1086, 4294901760
        %1990 = vmatprep.subr.mxu0 %v1989
        %v1991 = vand.u32 %v1085, 4294901760
        %1992 = vmatpush1.msra.mxu0 %v1991
        %v1993 = vand.u32 %v1088, 4294901760
        %1994 = vmatprep.subr.mxu0 %v1993
        %v1995 = vand.u32 %v1087, 4294901760
        %1996 = vmatpush1.msra.mxu0 %v1995
        %v1997 = vand.u32 %v1090, 4294901760
        %1998 = vmatprep.subr.mxu0 %v1997
        %v1999 = vand.u32 %v1089, 4294901760
        %2000 = vmatpush1.msra.mxu0 %v1999
        %v2001 = vand.u32 %v1092, 4294901760
        %2002 = vmatprep.subr.mxu0 %v2001
        %v2003 = vand.u32 %v1091, 4294901760
        %2004 = vmatpush1.msra.mxu0 %v2003
        %v2005 = vand.u32 %v1094, 4294901760
        %2006 = vmatprep.subr.mxu0 %v2005
        %v2007 = vand.u32 %v1093, 4294901760
        %2008 = vmatpush1.msra.mxu0 %v2007
        %v2009 = vand.u32 %v1096, 4294901760
        %2010 = vmatprep.subr.mxu0 %v2009
        %v2011 = vand.u32 %v1095, 4294901760
        %2012 = vmatpush1.msra.mxu0 %v2011
        %v2013 = vand.u32 %v1098, 4294901760
        %2014 = vmatprep.subr.mxu0 %v2013
        %v2015 = vand.u32 %v1097, 4294901760
        %2016 = vmatpush1.msra.mxu0 %v2015
        %v2017 = vand.u32 %v1100, 4294901760
        %2018 = vmatprep.subr.mxu0 %v2017
        %v2019 = vand.u32 %v1099, 4294901760
        %2020 = vmatpush1.msra.mxu0 %v2019
        %v2021 = vand.u32 %v1102, 4294901760
        %2022 = vmatprep.subr.mxu0 %v2021
        %v2023 = vand.u32 %v1101, 4294901760
        %2024 = vmatpush1.msra.mxu0 %v2023
        %v2025 = vand.u32 %v1104, 4294901760
        %2026 = vmatprep.subr.mxu0 %v2025
        %v2027 = vand.u32 %v1103, 4294901760
        %2028 = vmatpush1.msra.mxu0 %v2027
        %v2029 = vand.u32 %v1106, 4294901760
        %2030 = vmatprep.subr.mxu0 %v2029
        %v2031 = vand.u32 %v1105, 4294901760
        %2032 = vmatpush1.msra.mxu0 %v2031
        %v2033 = vand.u32 %v1108, 4294901760
        %2034 = vmatprep.subr.mxu0 %v2033
        %v2035 = vand.u32 %v1107, 4294901760
        %2036 = vmatpush1.msra.mxu0 %v2035
        %v2037 = vand.u32 %v1110, 4294901760
        %2038 = vmatprep.subr.mxu0 %v2037
        %v2039 = vand.u32 %v1109, 4294901760
        %2040 = vmatpush1.msra.mxu0 %v2039
        %v2041 = vand.u32 %v1112, 4294901760
        %2042 = vmatprep.subr.mxu0 %v2041
        %v2043 = vand.u32 %v1111, 4294901760
        %2044 = vmatpush1.msra.mxu0 %v2043
        %v2045 = vand.u32 %v1114, 4294901760
        %2046 = vmatprep.subr.mxu0 %v2045
        %v2047 = vand.u32 %v1113, 4294901760
        %2048 = vmatpush1.msra.mxu0 %v2047
        %v2049 = vand.u32 %v1116, 4294901760
        %2050 = vmatprep.subr.mxu0 %v2049
        %v2051 = vand.u32 %v1115, 4294901760
        %2052 = vmatpush1.msra.mxu0 %v2051
        %v2053 = vand.u32 %v1118, 4294901760
        %2054 = vmatprep.subr.mxu0 %v2053
        %v2055 = vand.u32 %v1117, 4294901760
        %2056 = vmatpush1.msra.mxu0 %v2055
        %v2057 = vand.u32 %v1120, 4294901760
        %2058 = vmatprep.subr.mxu0 %v2057
        %v2059 = vand.u32 %v1119, 4294901760
        %2060 = vmatpush1.msra.mxu0 %v2059
        %v2061 = vand.u32 %v1122, 4294901760
        %2062 = vmatprep.subr.mxu0 %v2061
        %v2063 = vand.u32 %v1121, 4294901760
        %2064 = vmatpush1.msra.mxu0 %v2063
        %v2065 = vand.u32 %v1124, 4294901760
        %2066 = vmatprep.subr.mxu0 %v2065
        %v2067 = vand.u32 %v1123, 4294901760
        %2068 = vmatpush1.msra.mxu0 %v2067
        %v2069 = vand.u32 %v1058, 4294901760
        %v2070 = vsub.f32 %v1058, %v2069
        %v2071 = vand.u32 %v2070, 4294901760
        %2072 = vmatprep.mubr.f32.mxu0 %v2071
        %v2073 = vand.u32 %v1057, 4294901760
        %v2074 = vsub.f32 %v1057, %v2073
        %v2075 = vand.u32 %v2074, 4294901760
        %2076 = vmatmul.mubr.f32.gmra.mrb[0].mxu0 %v2075
        %v2077 = vpop.f32.mrb[0].mxu0
        %v2078 = vadd.f32 %v1937, %v2077
        %v2079 = vpop.f32.mrb[0].mxu0
        %v2080 = vadd.f32 %v1939, %v2079
        %2081 = vdwg.mxu0
        %v2082 = vand.u32 %v1062, 4294901760
        %v2083 = vsub.f32 %v1062, %v2082
        %v2084 = vand.u32 %v2083, 4294901760
        %2085 = vmatprep.subr.mxu0 %v2084
        %v2086 = vand.u32 %v1061, 4294901760
        %v2087 = vsub.f32 %v1061, %v2086
        %v2088 = vand.u32 %v2087, 4294901760
        %2089 = vmatpush1.msra.mxu0 %v2088
        %v2090 = vand.u32 %v1064, 4294901760
        %v2091 = vsub.f32 %v1064, %v2090
        %v2092 = vand.u32 %v2091, 4294901760
        %2093 = vmatprep.subr.mxu0 %v2092
        %v2094 = vand.u32 %v1063, 4294901760
        %v2095 = vsub.f32 %v1063, %v2094
        %v2096 = vand.u32 %v2095, 4294901760
        %2097 = vmatpush1.msra.mxu0 %v2096
        %v2098 = vand.u32 %v1066, 4294901760
        %v2099 = vsub.f32 %v1066, %v2098
        %v2100 = vand.u32 %v2099, 4294901760
        %2101 = vmatprep.subr.mxu0 %v2100
        %v2102 = vand.u32 %v1065, 4294901760
        %v2103 = vsub.f32 %v1065, %v2102
        %v2104 = vand.u32 %v2103, 4294901760
        %2105 = vmatpush1.msra.mxu0 %v2104
        %v2106 = vand.u32 %v1068, 4294901760
        %v2107 = vsub.f32 %v1068, %v2106
        %v2108 = vand.u32 %v2107, 4294901760
        %2109 = vmatprep.subr.mxu0 %v2108
        %v2110 = vand.u32 %v1067, 4294901760
        %v2111 = vsub.f32 %v1067, %v2110
        %v2112 = vand.u32 %v2111, 4294901760
        %2113 = vmatpush1.msra.mxu0 %v2112
        %v2114 = vand.u32 %v1070, 4294901760
        %v2115 = vsub.f32 %v1070, %v2114
        %v2116 = vand.u32 %v2115, 4294901760
        %2117 = vmatprep.subr.mxu0 %v2116
        %v2118 = vand.u32 %v1069, 4294901760
        %v2119 = vsub.f32 %v1069, %v2118
        %v2120 = vand.u32 %v2119, 4294901760
        %2121 = vmatpush1.msra.mxu0 %v2120
        %v2122 = vand.u32 %v1072, 4294901760
        %v2123 = vsub.f32 %v1072, %v2122
        %v2124 = vand.u32 %v2123, 4294901760
        %2125 = vmatprep.subr.mxu0 %v2124
        %v2126 = vand.u32 %v1071, 4294901760
        %v2127 = vsub.f32 %v1071, %v2126
        %v2128 = vand.u32 %v2127, 4294901760
        %2129 = vmatpush1.msra.mxu0 %v2128
        %v2130 = vand.u32 %v1074, 4294901760
        %v2131 = vsub.f32 %v1074, %v2130
        %v2132 = vand.u32 %v2131, 4294901760
        %2133 = vmatprep.subr.mxu0 %v2132
        %v2134 = vand.u32 %v1073, 4294901760
        %v2135 = vsub.f32 %v1073, %v2134
        %v2136 = vand.u32 %v2135, 4294901760
        %2137 = vmatpush1.msra.mxu0 %v2136
        %v2138 = vand.u32 %v1076, 4294901760
        %v2139 = vsub.f32 %v1076, %v2138
        %v2140 = vand.u32 %v2139, 4294901760
        %2141 = vmatprep.subr.mxu0 %v2140
        %v2142 = vand.u32 %v1075, 4294901760
        %v2143 = vsub.f32 %v1075, %v2142
        %v2144 = vand.u32 %v2143, 4294901760
        %2145 = vmatpush1.msra.mxu0 %v2144
        %v2146 = vand.u32 %v1078, 4294901760
        %v2147 = vsub.f32 %v1078, %v2146
        %v2148 = vand.u32 %v2147, 4294901760
        %2149 = vmatprep.subr.mxu0 %v2148
        %v2150 = vand.u32 %v1077, 4294901760
        %v2151 = vsub.f32 %v1077, %v2150
        %v2152 = vand.u32 %v2151, 4294901760
        %2153 = vmatpush1.msra.mxu0 %v2152
        %v2154 = vand.u32 %v1080, 4294901760
        %v2155 = vsub.f32 %v1080, %v2154
        %v2156 = vand.u32 %v2155, 4294901760
        %2157 = vmatprep.subr.mxu0 %v2156
        %v2158 = vand.u32 %v1079, 4294901760
        %v2159 = vsub.f32 %v1079, %v2158
        %v2160 = vand.u32 %v2159, 4294901760
        %2161 = vmatpush1.msra.mxu0 %v2160
        %v2162 = vand.u32 %v1082, 4294901760
        %v2163 = vsub.f32 %v1082, %v2162
        %v2164 = vand.u32 %v2163, 4294901760
        %2165 = vmatprep.subr.mxu0 %v2164
        %v2166 = vand.u32 %v1081, 4294901760
        %v2167 = vsub.f32 %v1081, %v2166
        %v2168 = vand.u32 %v2167, 4294901760
        %2169 = vmatpush1.msra.mxu0 %v2168
        %v2170 = vand.u32 %v1084, 4294901760
        %v2171 = vsub.f32 %v1084, %v2170
        %v2172 = vand.u32 %v2171, 4294901760
        %2173 = vmatprep.subr.mxu0 %v2172
        %v2174 = vand.u32 %v1083, 4294901760
        %v2175 = vsub.f32 %v1083, %v2174
        %v2176 = vand.u32 %v2175, 4294901760
        %2177 = vmatpush1.msra.mxu0 %v2176
        %v2178 = vand.u32 %v1086, 4294901760
        %v2179 = vsub.f32 %v1086, %v2178
        %v2180 = vand.u32 %v2179, 4294901760
        %2181 = vmatprep.subr.mxu0 %v2180
        %v2182 = vand.u32 %v1085, 4294901760
        %v2183 = vsub.f32 %v1085, %v2182
        %v2184 = vand.u32 %v2183, 4294901760
        %2185 = vmatpush1.msra.mxu0 %v2184
        %v2186 = vand.u32 %v1088, 4294901760
        %v2187 = vsub.f32 %v1088, %v2186
        %v2188 = vand.u32 %v2187, 4294901760
        %2189 = vmatprep.subr.mxu0 %v2188
        %v2190 = vand.u32 %v1087, 4294901760
        %v2191 = vsub.f32 %v1087, %v2190
        %v2192 = vand.u32 %v2191, 4294901760
        %2193 = vmatpush1.msra.mxu0 %v2192
        %v2194 = vand.u32 %v1090, 4294901760
        %v2195 = vsub.f32 %v1090, %v2194
        %v2196 = vand.u32 %v2195, 4294901760
        %2197 = vmatprep.subr.mxu0 %v2196
        %v2198 = vand.u32 %v1089, 4294901760
        %v2199 = vsub.f32 %v1089, %v2198
        %v2200 = vand.u32 %v2199, 4294901760
        %2201 = vmatpush1.msra.mxu0 %v2200
        %v2202 = vand.u32 %v1092, 4294901760
        %v2203 = vsub.f32 %v1092, %v2202
        %v2204 = vand.u32 %v2203, 4294901760
        %2205 = vmatprep.subr.mxu0 %v2204
        %v2206 = vand.u32 %v1091, 4294901760
        %v2207 = vsub.f32 %v1091, %v2206
        %v2208 = vand.u32 %v2207, 4294901760
        %2209 = vmatpush1.msra.mxu0 %v2208
        %v2210 = vand.u32 %v1094, 4294901760
        %v2211 = vsub.f32 %v1094, %v2210
        %v2212 = vand.u32 %v2211, 4294901760
        %2213 = vmatprep.subr.mxu0 %v2212
        %v2214 = vand.u32 %v1093, 4294901760
        %v2215 = vsub.f32 %v1093, %v2214
        %v2216 = vand.u32 %v2215, 4294901760
        %2217 = vmatpush1.msra.mxu0 %v2216
        %v2218 = vand.u32 %v1096, 4294901760
        %v2219 = vsub.f32 %v1096, %v2218
        %v2220 = vand.u32 %v2219, 4294901760
        %2221 = vmatprep.subr.mxu0 %v2220
        %v2222 = vand.u32 %v1095, 4294901760
        %v2223 = vsub.f32 %v1095, %v2222
        %v2224 = vand.u32 %v2223, 4294901760
        %2225 = vmatpush1.msra.mxu0 %v2224
        %v2226 = vand.u32 %v1098, 4294901760
        %v2227 = vsub.f32 %v1098, %v2226
        %v2228 = vand.u32 %v2227, 4294901760
        %2229 = vmatprep.subr.mxu0 %v2228
        %v2230 = vand.u32 %v1097, 4294901760
        %v2231 = vsub.f32 %v1097, %v2230
        %v2232 = vand.u32 %v2231, 4294901760
        %2233 = vmatpush1.msra.mxu0 %v2232
        %v2234 = vand.u32 %v1100, 4294901760
        %v2235 = vsub.f32 %v1100, %v2234
        %v2236 = vand.u32 %v2235, 4294901760
        %2237 = vmatprep.subr.mxu0 %v2236
        %v2238 = vand.u32 %v1099, 4294901760
        %v2239 = vsub.f32 %v1099, %v2238
        %v2240 = vand.u32 %v2239, 4294901760
        %2241 = vmatpush1.msra.mxu0 %v2240
        %v2242 = vand.u32 %v1102, 4294901760
        %v2243 = vsub.f32 %v1102, %v2242
        %v2244 = vand.u32 %v2243, 4294901760
        %2245 = vmatprep.subr.mxu0 %v2244
        %v2246 = vand.u32 %v1101, 4294901760
        %v2247 = vsub.f32 %v1101, %v2246
        %v2248 = vand.u32 %v2247, 4294901760
        %2249 = vmatpush1.msra.mxu0 %v2248
        %v2250 = vand.u32 %v1104, 4294901760
        %v2251 = vsub.f32 %v1104, %v2250
        %v2252 = vand.u32 %v2251, 4294901760
        %2253 = vmatprep.subr.mxu0 %v2252
        %v2254 = vand.u32 %v1103, 4294901760
        %v2255 = vsub.f32 %v1103, %v2254
        %v2256 = vand.u32 %v2255, 4294901760
        %2257 = vmatpush1.msra.mxu0 %v2256
        %v2258 = vand.u32 %v1106, 4294901760
        %v2259 = vsub.f32 %v1106, %v2258
        %v2260 = vand.u32 %v2259, 4294901760
        %2261 = vmatprep.subr.mxu0 %v2260
        %v2262 = vand.u32 %v1105, 4294901760
        %v2263 = vsub.f32 %v1105, %v2262
        %v2264 = vand.u32 %v2263, 4294901760
        %2265 = vmatpush1.msra.mxu0 %v2264
        %v2266 = vand.u32 %v1108, 4294901760
        %v2267 = vsub.f32 %v1108, %v2266
        %v2268 = vand.u32 %v2267, 4294901760
        %2269 = vmatprep.subr.mxu0 %v2268
        %v2270 = vand.u32 %v1107, 4294901760
        %v2271 = vsub.f32 %v1107, %v2270
        %v2272 = vand.u32 %v2271, 4294901760
        %2273 = vmatpush1.msra.mxu0 %v2272
        %v2274 = vand.u32 %v1110, 4294901760
        %v2275 = vsub.f32 %v1110, %v2274
        %v2276 = vand.u32 %v2275, 4294901760
        %2277 = vmatprep.subr.mxu0 %v2276
        %v2278 = vand.u32 %v1109, 4294901760
        %v2279 = vsub.f32 %v1109, %v2278
        %v2280 = vand.u32 %v2279, 4294901760
        %2281 = vmatpush1.msra.mxu0 %v2280
        %v2282 = vand.u32 %v1112, 4294901760
        %v2283 = vsub.f32 %v1112, %v2282
        %v2284 = vand.u32 %v2283, 4294901760
        %2285 = vmatprep.subr.mxu0 %v2284
        %v2286 = vand.u32 %v1111, 4294901760
        %v2287 = vsub.f32 %v1111, %v2286
        %v2288 = vand.u32 %v2287, 4294901760
        %2289 = vmatpush1.msra.mxu0 %v2288
        %v2290 = vand.u32 %v1114, 4294901760
        %v2291 = vsub.f32 %v1114, %v2290
        %v2292 = vand.u32 %v2291, 4294901760
        %2293 = vmatprep.subr.mxu0 %v2292
        %v2294 = vand.u32 %v1113, 4294901760
        %v2295 = vsub.f32 %v1113, %v2294
        %v2296 = vand.u32 %v2295, 4294901760
        %2297 = vmatpush1.msra.mxu0 %v2296
        %v2298 = vand.u32 %v1116, 4294901760
        %v2299 = vsub.f32 %v1116, %v2298
        %v2300 = vand.u32 %v2299, 4294901760
        %2301 = vmatprep.subr.mxu0 %v2300
        %v2302 = vand.u32 %v1115, 4294901760
        %v2303 = vsub.f32 %v1115, %v2302
        %v2304 = vand.u32 %v2303, 4294901760
        %2305 = vmatpush1.msra.mxu0 %v2304
        %v2306 = vand.u32 %v1118, 4294901760
        %v2307 = vsub.f32 %v1118, %v2306
        %v2308 = vand.u32 %v2307, 4294901760
        %2309 = vmatprep.subr.mxu0 %v2308
        %v2310 = vand.u32 %v1117, 4294901760
        %v2311 = vsub.f32 %v1117, %v2310
        %v2312 = vand.u32 %v2311, 4294901760
        %2313 = vmatpush1.msra.mxu0 %v2312
        %v2314 = vand.u32 %v1120, 4294901760
        %v2315 = vsub.f32 %v1120, %v2314
        %v2316 = vand.u32 %v2315, 4294901760
        %2317 = vmatprep.subr.mxu0 %v2316
        %v2318 = vand.u32 %v1119, 4294901760
        %v2319 = vsub.f32 %v1119, %v2318
        %v2320 = vand.u32 %v2319, 4294901760
        %2321 = vmatpush1.msra.mxu0 %v2320
        %v2322 = vand.u32 %v1122, 4294901760
        %v2323 = vsub.f32 %v1122, %v2322
        %v2324 = vand.u32 %v2323, 4294901760
        %2325 = vmatprep.subr.mxu0 %v2324
        %v2326 = vand.u32 %v1121, 4294901760
        %v2327 = vsub.f32 %v1121, %v2326
        %v2328 = vand.u32 %v2327, 4294901760
        %2329 = vmatpush1.msra.mxu0 %v2328
        %v2330 = vand.u32 %v1124, 4294901760
        %v2331 = vsub.f32 %v1124, %v2330
        %v2332 = vand.u32 %v2331, 4294901760
        %2333 = vmatprep.subr.mxu0 %v2332
        %v2334 = vand.u32 %v1123, 4294901760
        %v2335 = vsub.f32 %v1123, %v2334
        %v2336 = vand.u32 %v2335, 4294901760
        %2337 = vmatpush1.msra.mxu0 %v2336
        %v2338 = vand.u32 %v1058, 4294901760
        %2339 = vmatprep.mubr.f32.mxu0 %v2338
        %v2340 = vand.u32 %v1057, 4294901760
        %2341 = vmatmul.mubr.f32.gmra.mrb[0].mxu0 %v2340
        %v2342 = vpop.f32.mrb[0].mxu0
        %v2343 = vadd.f32 %v2078, %v2342
        %v2344 = vpop.f32.mrb[0].mxu0
        %v2345 = vadd.f32 %v2080, %v2344
        %2346 = vdwg.mxu0
        %v2347 = vand.u32 %v1062, 4294901760
        %2348 = vmatprep.subr.mxu0 %v2347
        %v2349 = vand.u32 %v1061, 4294901760
        %2350 = vmatpush1.msra.mxu0 %v2349
        %v2351 = vand.u32 %v1064, 4294901760
        %2352 = vmatprep.subr.mxu0 %v2351
        %v2353 = vand.u32 %v1063, 4294901760
        %2354 = vmatpush1.msra.mxu0 %v2353
        %v2355 = vand.u32 %v1066, 4294901760
        %2356 = vmatprep.subr.mxu0 %v2355
        %v2357 = vand.u32 %v1065, 4294901760
        %2358 = vmatpush1.msra.mxu0 %v2357
        %v2359 = vand.u32 %v1068, 4294901760
        %2360 = vmatprep.subr.mxu0 %v2359
        %v2361 = vand.u32 %v1067, 4294901760
        %2362 = vmatpush1.msra.mxu0 %v2361
        %v2363 = vand.u32 %v1070, 4294901760
        %2364 = vmatprep.subr.mxu0 %v2363
        %v2365 = vand.u32 %v1069, 4294901760
        %2366 = vmatpush1.msra.mxu0 %v2365
        %v2367 = vand.u32 %v1072, 4294901760
        %2368 = vmatprep.subr.mxu0 %v2367
        %v2369 = vand.u32 %v1071, 4294901760
        %2370 = vmatpush1.msra.mxu0 %v2369
        %v2371 = vand.u32 %v1074, 4294901760
        %2372 = vmatprep.subr.mxu0 %v2371
        %v2373 = vand.u32 %v1073, 4294901760
        %2374 = vmatpush1.msra.mxu0 %v2373
        %v2375 = vand.u32 %v1076, 4294901760
        %2376 = vmatprep.subr.mxu0 %v2375
        %v2377 = vand.u32 %v1075, 4294901760
        %2378 = vmatpush1.msra.mxu0 %v2377
        %v2379 = vand.u32 %v1078, 4294901760
        %2380 = vmatprep.subr.mxu0 %v2379
        %v2381 = vand.u32 %v1077, 4294901760
        %2382 = vmatpush1.msra.mxu0 %v2381
        %v2383 = vand.u32 %v1080, 4294901760
        %2384 = vmatprep.subr.mxu0 %v2383
        %v2385 = vand.u32 %v1079, 4294901760
        %2386 = vmatpush1.msra.mxu0 %v2385
        %v2387 = vand.u32 %v1082, 4294901760
        %2388 = vmatprep.subr.mxu0 %v2387
        %v2389 = vand.u32 %v1081, 4294901760
        %2390 = vmatpush1.msra.mxu0 %v2389
        %v2391 = vand.u32 %v1084, 4294901760
        %2392 = vmatprep.subr.mxu0 %v2391
        %v2393 = vand.u32 %v1083, 4294901760
        %2394 = vmatpush1.msra.mxu0 %v2393
        %v2395 = vand.u32 %v1086, 4294901760
        %2396 = vmatprep.subr.mxu0 %v2395
        %v2397 = vand.u32 %v1085, 4294901760
        %2398 = vmatpush1.msra.mxu0 %v2397
        %v2399 = vand.u32 %v1088, 4294901760
        %2400 = vmatprep.subr.mxu0 %v2399
        %v2401 = vand.u32 %v1087, 4294901760
        %2402 = vmatpush1.msra.mxu0 %v2401
        %v2403 = vand.u32 %v1090, 4294901760
        %2404 = vmatprep.subr.mxu0 %v2403
        %v2405 = vand.u32 %v1089, 4294901760
        %2406 = vmatpush1.msra.mxu0 %v2405
        %v2407 = vand.u32 %v1092, 4294901760
        %2408 = vmatprep.subr.mxu0 %v2407
        %v2409 = vand.u32 %v1091, 4294901760
        %2410 = vmatpush1.msra.mxu0 %v2409
        %v2411 = vand.u32 %v1094, 4294901760
        %2412 = vmatprep.subr.mxu0 %v2411
        %v2413 = vand.u32 %v1093, 4294901760
        %2414 = vmatpush1.msra.mxu0 %v2413
        %v2415 = vand.u32 %v1096, 4294901760
        %2416 = vmatprep.subr.mxu0 %v2415
        %v2417 = vand.u32 %v1095, 4294901760
        %2418 = vmatpush1.msra.mxu0 %v2417
        %v2419 = vand.u32 %v1098, 4294901760
        %2420 = vmatprep.subr.mxu0 %v2419
        %v2421 = vand.u32 %v1097, 4294901760
        %2422 = vmatpush1.msra.mxu0 %v2421
        %v2423 = vand.u32 %v1100, 4294901760
        %2424 = vmatprep.subr.mxu0 %v2423
        %v2425 = vand.u32 %v1099, 4294901760
        %2426 = vmatpush1.msra.mxu0 %v2425
        %v2427 = vand.u32 %v1102, 4294901760
        %2428 = vmatprep.subr.mxu0 %v2427
        %v2429 = vand.u32 %v1101, 4294901760
        %2430 = vmatpush1.msra.mxu0 %v2429
        %v2431 = vand.u32 %v1104, 4294901760
        %2432 = vmatprep.subr.mxu0 %v2431
        %v2433 = vand.u32 %v1103, 4294901760
        %2434 = vmatpush1.msra.mxu0 %v2433
        %v2435 = vand.u32 %v1106, 4294901760
        %2436 = vmatprep.subr.mxu0 %v2435
        %v2437 = vand.u32 %v1105, 4294901760
        %2438 = vmatpush1.msra.mxu0 %v2437
        %v2439 = vand.u32 %v1108, 4294901760
        %2440 = vmatprep.subr.mxu0 %v2439
        %v2441 = vand.u32 %v1107, 4294901760
        %2442 = vmatpush1.msra.mxu0 %v2441
        %v2443 = vand.u32 %v1110, 4294901760
        %2444 = vmatprep.subr.mxu0 %v2443
        %v2445 = vand.u32 %v1109, 4294901760
        %2446 = vmatpush1.msra.mxu0 %v2445
        %v2447 = vand.u32 %v1112, 4294901760
        %2448 = vmatprep.subr.mxu0 %v2447
        %v2449 = vand.u32 %v1111, 4294901760
        %2450 = vmatpush1.msra.mxu0 %v2449
        %v2451 = vand.u32 %v1114, 4294901760
        %2452 = vmatprep.subr.mxu0 %v2451
        %v2453 = vand.u32 %v1113, 4294901760
        %2454 = vmatpush1.msra.mxu0 %v2453
        %v2455 = vand.u32 %v1116, 4294901760
        %2456 = vmatprep.subr.mxu0 %v2455
        %v2457 = vand.u32 %v1115, 4294901760
        %2458 = vmatpush1.msra.mxu0 %v2457
        %v2459 = vand.u32 %v1118, 4294901760
        %2460 = vmatprep.subr.mxu0 %v2459
        %v2461 = vand.u32 %v1117, 4294901760
        %2462 = vmatpush1.msra.mxu0 %v2461
        %v2463 = vand.u32 %v1120, 4294901760
        %2464 = vmatprep.subr.mxu0 %v2463
        %v2465 = vand.u32 %v1119, 4294901760
        %2466 = vmatpush1.msra.mxu0 %v2465
        %v2467 = vand.u32 %v1122, 4294901760
        %2468 = vmatprep.subr.mxu0 %v2467
        %v2469 = vand.u32 %v1121, 4294901760
        %2470 = vmatpush1.msra.mxu0 %v2469
        %v2471 = vand.u32 %v1124, 4294901760
        %2472 = vmatprep.subr.mxu0 %v2471
        %v2473 = vand.u32 %v1123, 4294901760
        %2474 = vmatpush1.msra.mxu0 %v2473
        %v2475 = vand.u32 %v1058, 4294901760
        %2476 = vmatprep.mubr.f32.mxu0 %v2475
        %v2477 = vand.u32 %v1057, 4294901760
        %2478 = vmatmul.mubr.f32.gmra.mrb[0].mxu0 %v2477
        %v2479 = vpop.f32.mrb[0].mxu0
        %v2480 = vadd.f32 %v2343, %v2479
        %v2481 = vpop.f32.mrb[0].mxu0
        %v2482 = vadd.f32 %v2345, %v2481
        %2483 = vdwg.mxu0
        %v2484 = vand.u32 %v1126, 4294901760
        %2485 = vmatprep.subr.mxu0 %v2484
        %v2486 = vand.u32 %v1125, 4294901760
        %2487 = vmatpush1.msra.mxu0 %v2486
        %v2488 = vand.u32 %v1128, 4294901760
        %2489 = vmatprep.subr.mxu0 %v2488
        %v2490 = vand.u32 %v1127, 4294901760
        %2491 = vmatpush1.msra.mxu0 %v2490
        %v2492 = vand.u32 %v1130, 4294901760
        %2493 = vmatprep.subr.mxu0 %v2492
        %v2494 = vand.u32 %v1129, 4294901760
        %2495 = vmatpush1.msra.mxu0 %v2494
        %v2496 = vand.u32 %v1132, 4294901760
        %2497 = vmatprep.subr.mxu0 %v2496
        %v2498 = vand.u32 %v1131, 4294901760
        %2499 = vmatpush1.msra.mxu0 %v2498
        %v2500 = vand.u32 %v1134, 4294901760
        %2501 = vmatprep.subr.mxu0 %v2500
        %v2502 = vand.u32 %v1133, 4294901760
        %2503 = vmatpush1.msra.mxu0 %v2502
        %v2504 = vand.u32 %v1136, 4294901760
        %2505 = vmatprep.subr.mxu0 %v2504
        %v2506 = vand.u32 %v1135, 4294901760
        %2507 = vmatpush1.msra.mxu0 %v2506
        %v2508 = vand.u32 %v1138, 4294901760
        %2509 = vmatprep.subr.mxu0 %v2508
        %v2510 = vand.u32 %v1137, 4294901760
        %2511 = vmatpush1.msra.mxu0 %v2510
        %v2512 = vand.u32 %v1140, 4294901760
        %2513 = vmatprep.subr.mxu0 %v2512
        %v2514 = vand.u32 %v1139, 4294901760
        %2515 = vmatpush1.msra.mxu0 %v2514
        %v2516 = vand.u32 %v1142, 4294901760
        %2517 = vmatprep.subr.mxu0 %v2516
        %v2518 = vand.u32 %v1141, 4294901760
        %2519 = vmatpush1.msra.mxu0 %v2518
        %v2520 = vand.u32 %v1144, 4294901760
        %2521 = vmatprep.subr.mxu0 %v2520
        %v2522 = vand.u32 %v1143, 4294901760
        %2523 = vmatpush1.msra.mxu0 %v2522
        %v2524 = vand.u32 %v1146, 4294901760
        %2525 = vmatprep.subr.mxu0 %v2524
        %v2526 = vand.u32 %v1145, 4294901760
        %2527 = vmatpush1.msra.mxu0 %v2526
        %v2528 = vand.u32 %v1148, 4294901760
        %2529 = vmatprep.subr.mxu0 %v2528
        %v2530 = vand.u32 %v1147, 4294901760
        %2531 = vmatpush1.msra.mxu0 %v2530
        %v2532 = vand.u32 %v1150, 4294901760
        %2533 = vmatprep.subr.mxu0 %v2532
        %v2534 = vand.u32 %v1149, 4294901760
        %2535 = vmatpush1.msra.mxu0 %v2534
        %v2536 = vand.u32 %v1152, 4294901760
        %2537 = vmatprep.subr.mxu0 %v2536
        %v2538 = vand.u32 %v1151, 4294901760
        %2539 = vmatpush1.msra.mxu0 %v2538
        %v2540 = vand.u32 %v1154, 4294901760
        %2541 = vmatprep.subr.mxu0 %v2540
        %v2542 = vand.u32 %v1153, 4294901760
        %2543 = vmatpush1.msra.mxu0 %v2542
        %v2544 = vand.u32 %v1156, 4294901760
        %2545 = vmatprep.subr.mxu0 %v2544
        %v2546 = vand.u32 %v1155, 4294901760
        %2547 = vmatpush1.msra.mxu0 %v2546
        %v2548 = vand.u32 %v1158, 4294901760
        %2549 = vmatprep.subr.mxu0 %v2548
        %v2550 = vand.u32 %v1157, 4294901760
        %2551 = vmatpush1.msra.mxu0 %v2550
        %v2552 = vand.u32 %v1160, 4294901760
        %2553 = vmatprep.subr.mxu0 %v2552
        %v2554 = vand.u32 %v1159, 4294901760
        %2555 = vmatpush1.msra.mxu0 %v2554
        %v2556 = vand.u32 %v1162, 4294901760
        %2557 = vmatprep.subr.mxu0 %v2556
        %v2558 = vand.u32 %v1161, 4294901760
        %2559 = vmatpush1.msra.mxu0 %v2558
        %v2560 = vand.u32 %v1164, 4294901760
        %2561 = vmatprep.subr.mxu0 %v2560
        %v2562 = vand.u32 %v1163, 4294901760
        %2563 = vmatpush1.msra.mxu0 %v2562
        %v2564 = vand.u32 %v1166, 4294901760
        %2565 = vmatprep.subr.mxu0 %v2564
        %v2566 = vand.u32 %v1165, 4294901760
        %2567 = vmatpush1.msra.mxu0 %v2566
        %v2568 = vand.u32 %v1168, 4294901760
        %2569 = vmatprep.subr.mxu0 %v2568
        %v2570 = vand.u32 %v1167, 4294901760
        %2571 = vmatpush1.msra.mxu0 %v2570
        %v2572 = vand.u32 %v1170, 4294901760
        %2573 = vmatprep.subr.mxu0 %v2572
        %v2574 = vand.u32 %v1169, 4294901760
        %2575 = vmatpush1.msra.mxu0 %v2574
        %v2576 = vand.u32 %v1172, 4294901760
        %2577 = vmatprep.subr.mxu0 %v2576
        %v2578 = vand.u32 %v1171, 4294901760
        %2579 = vmatpush1.msra.mxu0 %v2578
        %v2580 = vand.u32 %v1174, 4294901760
        %2581 = vmatprep.subr.mxu0 %v2580
        %v2582 = vand.u32 %v1173, 4294901760
        %2583 = vmatpush1.msra.mxu0 %v2582
        %v2584 = vand.u32 %v1176, 4294901760
        %2585 = vmatprep.subr.mxu0 %v2584
        %v2586 = vand.u32 %v1175, 4294901760
        %2587 = vmatpush1.msra.mxu0 %v2586
        %v2588 = vand.u32 %v1178, 4294901760
        %2589 = vmatprep.subr.mxu0 %v2588
        %v2590 = vand.u32 %v1177, 4294901760
        %2591 = vmatpush1.msra.mxu0 %v2590
        %v2592 = vand.u32 %v1180, 4294901760
        %2593 = vmatprep.subr.mxu0 %v2592
        %v2594 = vand.u32 %v1179, 4294901760
        %2595 = vmatpush1.msra.mxu0 %v2594
        %v2596 = vand.u32 %v1182, 4294901760
        %2597 = vmatprep.subr.mxu0 %v2596
        %v2598 = vand.u32 %v1181, 4294901760
        %2599 = vmatpush1.msra.mxu0 %v2598
        %v2600 = vand.u32 %v1184, 4294901760
        %2601 = vmatprep.subr.mxu0 %v2600
        %v2602 = vand.u32 %v1183, 4294901760
        %2603 = vmatpush1.msra.mxu0 %v2602
        %v2604 = vand.u32 %v1186, 4294901760
        %2605 = vmatprep.subr.mxu0 %v2604
        %v2606 = vand.u32 %v1185, 4294901760
        %2607 = vmatpush1.msra.mxu0 %v2606
        %v2608 = vand.u32 %v1198, 4294901760
        %2609 = vmatprep.subr.mxu0 %v2608
        %v2610 = vand.u32 %v1195, 4294901760
        %2611 = vmatpush1.msra.mxu0 %v2610
        %v2612 = vand.u32 %v1191, 4294901760
        %v2613 = vsub.f32 %v1191, %v2612
        %v2614 = vand.u32 %v2613, 4294901760
        %v2615 = vsub.f32 %v2613, %v2614
        %v2616 = vand.u32 %v2615, 4294901760
        %2617 = vmatprep.mubr.f32.mxu0 %v2616
        %v2618 = vand.u32 %v1059, 4294901760
        %v2619 = vsub.f32 %v1059, %v2618
        %v2620 = vand.u32 %v2619, 4294901760
        %v2621 = vsub.f32 %v2619, %v2620
        %v2622 = vand.u32 %v2621, 4294901760
        %2623 = vmatmul.mubr.f32.gmra.mrb[0].mxu0 %v2622
        %v2624 = vpop.f32.mrb[0].mxu0
        %v2625 = vadd.f32 %v2480, %v2624
        %v2626 = vpop.f32.mrb[0].mxu0
        %v2627 = vadd.f32 %v2482, %v2626
        %2628 = vdwg.mxu0
        %v2629 = vand.u32 %v1126, 4294901760
        %v2630 = vsub.f32 %v1126, %v2629
        %v2631 = vand.u32 %v2630, 4294901760
        %v2632 = vsub.f32 %v2630, %v2631
        %v2633 = vand.u32 %v2632, 4294901760
        %2634 = vmatprep.subr.mxu0 %v2633
        %v2635 = vand.u32 %v1125, 4294901760
        %v2636 = vsub.f32 %v1125, %v2635
        %v2637 = vand.u32 %v2636, 4294901760
        %v2638 = vsub.f32 %v2636, %v2637
        %v2639 = vand.u32 %v2638, 4294901760
        %2640 = vmatpush1.msra.mxu0 %v2639
        %v2641 = vand.u32 %v1128, 4294901760
        %v2642 = vsub.f32 %v1128, %v2641
        %v2643 = vand.u32 %v2642, 4294901760
        %v2644 = vsub.f32 %v2642, %v2643
        %v2645 = vand.u32 %v2644, 4294901760
        %2646 = vmatprep.subr.mxu0 %v2645
        %v2647 = vand.u32 %v1127, 4294901760
        %v2648 = vsub.f32 %v1127, %v2647
        %v2649 = vand.u32 %v2648, 4294901760
        %v2650 = vsub.f32 %v2648, %v2649
        %v2651 = vand.u32 %v2650, 4294901760
        %2652 = vmatpush1.msra.mxu0 %v2651
        %v2653 = vand.u32 %v1130, 4294901760
        %v2654 = vsub.f32 %v1130, %v2653
        %v2655 = vand.u32 %v2654, 4294901760
        %v2656 = vsub.f32 %v2654, %v2655
        %v2657 = vand.u32 %v2656, 4294901760
        %2658 = vmatprep.subr.mxu0 %v2657
        %v2659 = vand.u32 %v1129, 4294901760
        %v2660 = vsub.f32 %v1129, %v2659
        %v2661 = vand.u32 %v2660, 4294901760
        %v2662 = vsub.f32 %v2660, %v2661
        %v2663 = vand.u32 %v2662, 4294901760
        %2664 = vmatpush1.msra.mxu0 %v2663
        %v2665 = vand.u32 %v1132, 4294901760
        %v2666 = vsub.f32 %v1132, %v2665
        %v2667 = vand.u32 %v2666, 4294901760
        %v2668 = vsub.f32 %v2666, %v2667
        %v2669 = vand.u32 %v2668, 4294901760
        %2670 = vmatprep.subr.mxu0 %v2669
        %v2671 = vand.u32 %v1131, 4294901760
        %v2672 = vsub.f32 %v1131, %v2671
        %v2673 = vand.u32 %v2672, 4294901760
        %v2674 = vsub.f32 %v2672, %v2673
        %v2675 = vand.u32 %v2674, 4294901760
        %2676 = vmatpush1.msra.mxu0 %v2675
        %v2677 = vand.u32 %v1134, 4294901760
        %v2678 = vsub.f32 %v1134, %v2677
        %v2679 = vand.u32 %v2678, 4294901760
        %v2680 = vsub.f32 %v2678, %v2679
        %v2681 = vand.u32 %v2680, 4294901760
        %2682 = vmatprep.subr.mxu0 %v2681
        %v2683 = vand.u32 %v1133, 4294901760
        %v2684 = vsub.f32 %v1133, %v2683
        %v2685 = vand.u32 %v2684, 4294901760
        %v2686 = vsub.f32 %v2684, %v2685
        %v2687 = vand.u32 %v2686, 4294901760
        %2688 = vmatpush1.msra.mxu0 %v2687
        %v2689 = vand.u32 %v1136, 4294901760
        %v2690 = vsub.f32 %v1136, %v2689
        %v2691 = vand.u32 %v2690, 4294901760
        %v2692 = vsub.f32 %v2690, %v2691
        %v2693 = vand.u32 %v2692, 4294901760
        %2694 = vmatprep.subr.mxu0 %v2693
        %v2695 = vand.u32 %v1135, 4294901760
        %v2696 = vsub.f32 %v1135, %v2695
        %v2697 = vand.u32 %v2696, 4294901760
        %v2698 = vsub.f32 %v2696, %v2697
        %v2699 = vand.u32 %v2698, 4294901760
        %2700 = vmatpush1.msra.mxu0 %v2699
        %v2701 = vand.u32 %v1138, 4294901760
        %v2702 = vsub.f32 %v1138, %v2701
        %v2703 = vand.u32 %v2702, 4294901760
        %v2704 = vsub.f32 %v2702, %v2703
        %v2705 = vand.u32 %v2704, 4294901760
        %2706 = vmatprep.subr.mxu0 %v2705
        %v2707 = vand.u32 %v1137, 4294901760
        %v2708 = vsub.f32 %v1137, %v2707
        %v2709 = vand.u32 %v2708, 4294901760
        %v2710 = vsub.f32 %v2708, %v2709
        %v2711 = vand.u32 %v2710, 4294901760
        %2712 = vmatpush1.msra.mxu0 %v2711
        %v2713 = vand.u32 %v1140, 4294901760
        %v2714 = vsub.f32 %v1140, %v2713
        %v2715 = vand.u32 %v2714, 4294901760
        %v2716 = vsub.f32 %v2714, %v2715
        %v2717 = vand.u32 %v2716, 4294901760
        %2718 = vmatprep.subr.mxu0 %v2717
        %v2719 = vand.u32 %v1139, 4294901760
        %v2720 = vsub.f32 %v1139, %v2719
        %v2721 = vand.u32 %v2720, 4294901760
        %v2722 = vsub.f32 %v2720, %v2721
        %v2723 = vand.u32 %v2722, 4294901760
        %2724 = vmatpush1.msra.mxu0 %v2723
        %v2725 = vand.u32 %v1142, 4294901760
        %v2726 = vsub.f32 %v1142, %v2725
        %v2727 = vand.u32 %v2726, 4294901760
        %v2728 = vsub.f32 %v2726, %v2727
        %v2729 = vand.u32 %v2728, 4294901760
        %2730 = vmatprep.subr.mxu0 %v2729
        %v2731 = vand.u32 %v1141, 4294901760
        %v2732 = vsub.f32 %v1141, %v2731
        %v2733 = vand.u32 %v2732, 4294901760
        %v2734 = vsub.f32 %v2732, %v2733
        %v2735 = vand.u32 %v2734, 4294901760
        %2736 = vmatpush1.msra.mxu0 %v2735
        %v2737 = vand.u32 %v1144, 4294901760
        %v2738 = vsub.f32 %v1144, %v2737
        %v2739 = vand.u32 %v2738, 4294901760
        %v2740 = vsub.f32 %v2738, %v2739
        %v2741 = vand.u32 %v2740, 4294901760
        %2742 = vmatprep.subr.mxu0 %v2741
        %v2743 = vand.u32 %v1143, 4294901760
        %v2744 = vsub.f32 %v1143, %v2743
        %v2745 = vand.u32 %v2744, 4294901760
        %v2746 = vsub.f32 %v2744, %v2745
        %v2747 = vand.u32 %v2746, 4294901760
        %2748 = vmatpush1.msra.mxu0 %v2747
        %v2749 = vand.u32 %v1146, 4294901760
        %v2750 = vsub.f32 %v1146, %v2749
        %v2751 = vand.u32 %v2750, 4294901760
        %v2752 = vsub.f32 %v2750, %v2751
        %v2753 = vand.u32 %v2752, 4294901760
        %2754 = vmatprep.subr.mxu0 %v2753
        %v2755 = vand.u32 %v1145, 4294901760
        %v2756 = vsub.f32 %v1145, %v2755
        %v2757 = vand.u32 %v2756, 4294901760
        %v2758 = vsub.f32 %v2756, %v2757
        %v2759 = vand.u32 %v2758, 4294901760
        %2760 = vmatpush1.msra.mxu0 %v2759
        %v2761 = vand.u32 %v1148, 4294901760
        %v2762 = vsub.f32 %v1148, %v2761
        %v2763 = vand.u32 %v2762, 4294901760
        %v2764 = vsub.f32 %v2762, %v2763
        %v2765 = vand.u32 %v2764, 4294901760
        %2766 = vmatprep.subr.mxu0 %v2765
        %v2767 = vand.u32 %v1147, 4294901760
        %v2768 = vsub.f32 %v1147, %v2767
        %v2769 = vand.u32 %v2768, 4294901760
        %v2770 = vsub.f32 %v2768, %v2769
        %v2771 = vand.u32 %v2770, 4294901760
        %2772 = vmatpush1.msra.mxu0 %v2771
        %v2773 = vand.u32 %v1150, 4294901760
        %v2774 = vsub.f32 %v1150, %v2773
        %v2775 = vand.u32 %v2774, 4294901760
        %v2776 = vsub.f32 %v2774, %v2775
        %v2777 = vand.u32 %v2776, 4294901760
        %2778 = vmatprep.subr.mxu0 %v2777
        %v2779 = vand.u32 %v1149, 4294901760
        %v2780 = vsub.f32 %v1149, %v2779
        %v2781 = vand.u32 %v2780, 4294901760
        %v2782 = vsub.f32 %v2780, %v2781
        %v2783 = vand.u32 %v2782, 4294901760
        %2784 = vmatpush1.msra.mxu0 %v2783
        %v2785 = vand.u32 %v1152, 4294901760
        %v2786 = vsub.f32 %v1152, %v2785
        %v2787 = vand.u32 %v2786, 4294901760
        %v2788 = vsub.f32 %v2786, %v2787
        %v2789 = vand.u32 %v2788, 4294901760
        %2790 = vmatprep.subr.mxu0 %v2789
        %v2791 = vand.u32 %v1151, 4294901760
        %v2792 = vsub.f32 %v1151, %v2791
        %v2793 = vand.u32 %v2792, 4294901760
        %v2794 = vsub.f32 %v2792, %v2793
        %v2795 = vand.u32 %v2794, 4294901760
        %2796 = vmatpush1.msra.mxu0 %v2795
        %v2797 = vand.u32 %v1154, 4294901760
        %v2798 = vsub.f32 %v1154, %v2797
        %v2799 = vand.u32 %v2798, 4294901760
        %v2800 = vsub.f32 %v2798, %v2799
        %v2801 = vand.u32 %v2800, 4294901760
        %2802 = vmatprep.subr.mxu0 %v2801
        %v2803 = vand.u32 %v1153, 4294901760
        %v2804 = vsub.f32 %v1153, %v2803
        %v2805 = vand.u32 %v2804, 4294901760
        %v2806 = vsub.f32 %v2804, %v2805
        %v2807 = vand.u32 %v2806, 4294901760
        %2808 = vmatpush1.msra.mxu0 %v2807
        %v2809 = vand.u32 %v1156, 4294901760
        %v2810 = vsub.f32 %v1156, %v2809
        %v2811 = vand.u32 %v2810, 4294901760
        %v2812 = vsub.f32 %v2810, %v2811
        %v2813 = vand.u32 %v2812, 4294901760
        %2814 = vmatprep.subr.mxu0 %v2813
        %v2815 = vand.u32 %v1155, 4294901760
        %v2816 = vsub.f32 %v1155, %v2815
        %v2817 = vand.u32 %v2816, 4294901760
        %v2818 = vsub.f32 %v2816, %v2817
        %v2819 = vand.u32 %v2818, 4294901760
        %2820 = vmatpush1.msra.mxu0 %v2819
        %v2821 = vand.u32 %v1158, 4294901760
        %v2822 = vsub.f32 %v1158, %v2821
        %v2823 = vand.u32 %v2822, 4294901760
        %v2824 = vsub.f32 %v2822, %v2823
        %v2825 = vand.u32 %v2824, 4294901760
        %2826 = vmatprep.subr.mxu0 %v2825
        %v2827 = vand.u32 %v1157, 4294901760
        %v2828 = vsub.f32 %v1157, %v2827
        %v2829 = vand.u32 %v2828, 4294901760
        %v2830 = vsub.f32 %v2828, %v2829
        %v2831 = vand.u32 %v2830, 4294901760
        %2832 = vmatpush1.msra.mxu0 %v2831
        %v2833 = vand.u32 %v1160, 4294901760
        %v2834 = vsub.f32 %v1160, %v2833
        %v2835 = vand.u32 %v2834, 4294901760
        %v2836 = vsub.f32 %v2834, %v2835
        %v2837 = vand.u32 %v2836, 4294901760
        %2838 = vmatprep.subr.mxu0 %v2837
        %v2839 = vand.u32 %v1159, 4294901760
        %v2840 = vsub.f32 %v1159, %v2839
        %v2841 = vand.u32 %v2840, 4294901760
        %v2842 = vsub.f32 %v2840, %v2841
        %v2843 = vand.u32 %v2842, 4294901760
        %2844 = vmatpush1.msra.mxu0 %v2843
        %v2845 = vand.u32 %v1162, 4294901760
        %v2846 = vsub.f32 %v1162, %v2845
        %v2847 = vand.u32 %v2846, 4294901760
        %v2848 = vsub.f32 %v2846, %v2847
        %v2849 = vand.u32 %v2848, 4294901760
        %2850 = vmatprep.subr.mxu0 %v2849
        %v2851 = vand.u32 %v1161, 4294901760
        %v2852 = vsub.f32 %v1161, %v2851
        %v2853 = vand.u32 %v2852, 4294901760
        %v2854 = vsub.f32 %v2852, %v2853
        %v2855 = vand.u32 %v2854, 4294901760
        %2856 = vmatpush1.msra.mxu0 %v2855
        %v2857 = vand.u32 %v1164, 4294901760
        %v2858 = vsub.f32 %v1164, %v2857
        %v2859 = vand.u32 %v2858, 4294901760
        %v2860 = vsub.f32 %v2858, %v2859
        %v2861 = vand.u32 %v2860, 4294901760
        %2862 = vmatprep.subr.mxu0 %v2861
        %v2863 = vand.u32 %v1163, 4294901760
        %v2864 = vsub.f32 %v1163, %v2863
        %v2865 = vand.u32 %v2864, 4294901760
        %v2866 = vsub.f32 %v2864, %v2865
        %v2867 = vand.u32 %v2866, 4294901760
        %2868 = vmatpush1.msra.mxu0 %v2867
        %v2869 = vand.u32 %v1166, 4294901760
        %v2870 = vsub.f32 %v1166, %v2869
        %v2871 = vand.u32 %v2870, 4294901760
        %v2872 = vsub.f32 %v2870, %v2871
        %v2873 = vand.u32 %v2872, 4294901760
        %2874 = vmatprep.subr.mxu0 %v2873
        %v2875 = vand.u32 %v1165, 4294901760
        %v2876 = vsub.f32 %v1165, %v2875
        %v2877 = vand.u32 %v2876, 4294901760
        %v2878 = vsub.f32 %v2876, %v2877
        %v2879 = vand.u32 %v2878, 4294901760
        %2880 = vmatpush1.msra.mxu0 %v2879
        %v2881 = vand.u32 %v1168, 4294901760
        %v2882 = vsub.f32 %v1168, %v2881
        %v2883 = vand.u32 %v2882, 4294901760
        %v2884 = vsub.f32 %v2882, %v2883
        %v2885 = vand.u32 %v2884, 4294901760
        %2886 = vmatprep.subr.mxu0 %v2885
        %v2887 = vand.u32 %v1167, 4294901760
        %v2888 = vsub.f32 %v1167, %v2887
        %v2889 = vand.u32 %v2888, 4294901760
        %v2890 = vsub.f32 %v2888, %v2889
        %v2891 = vand.u32 %v2890, 4294901760
        %2892 = vmatpush1.msra.mxu0 %v2891
        %v2893 = vand.u32 %v1170, 4294901760
        %v2894 = vsub.f32 %v1170, %v2893
        %v2895 = vand.u32 %v2894, 4294901760
        %v2896 = vsub.f32 %v2894, %v2895
        %v2897 = vand.u32 %v2896, 4294901760
        %2898 = vmatprep.subr.mxu0 %v2897
        %v2899 = vand.u32 %v1169, 4294901760
        %v2900 = vsub.f32 %v1169, %v2899
        %v2901 = vand.u32 %v2900, 4294901760
        %v2902 = vsub.f32 %v2900, %v2901
        %v2903 = vand.u32 %v2902, 4294901760
        %2904 = vmatpush1.msra.mxu0 %v2903
        %v2905 = vand.u32 %v1172, 4294901760
        %v2906 = vsub.f32 %v1172, %v2905
        %v2907 = vand.u32 %v2906, 4294901760
        %v2908 = vsub.f32 %v2906, %v2907
        %v2909 = vand.u32 %v2908, 4294901760
        %2910 = vmatprep.subr.mxu0 %v2909
        %v2911 = vand.u32 %v1171, 4294901760
        %v2912 = vsub.f32 %v1171, %v2911
        %v2913 = vand.u32 %v2912, 4294901760
        %v2914 = vsub.f32 %v2912, %v2913
        %v2915 = vand.u32 %v2914, 4294901760
        %2916 = vmatpush1.msra.mxu0 %v2915
        %v2917 = vand.u32 %v1174, 4294901760
        %v2918 = vsub.f32 %v1174, %v2917
        %v2919 = vand.u32 %v2918, 4294901760
        %v2920 = vsub.f32 %v2918, %v2919
        %v2921 = vand.u32 %v2920, 4294901760
        %2922 = vmatprep.subr.mxu0 %v2921
        %v2923 = vand.u32 %v1173, 4294901760
        %v2924 = vsub.f32 %v1173, %v2923
        %v2925 = vand.u32 %v2924, 4294901760
        %v2926 = vsub.f32 %v2924, %v2925
        %v2927 = vand.u32 %v2926, 4294901760
        %2928 = vmatpush1.msra.mxu0 %v2927
        %v2929 = vand.u32 %v1176, 4294901760
        %v2930 = vsub.f32 %v1176, %v2929
        %v2931 = vand.u32 %v2930, 4294901760
        %v2932 = vsub.f32 %v2930, %v2931
        %v2933 = vand.u32 %v2932, 4294901760
        %2934 = vmatprep.subr.mxu0 %v2933
        %v2935 = vand.u32 %v1175, 4294901760
        %v2936 = vsub.f32 %v1175, %v2935
        %v2937 = vand.u32 %v2936, 4294901760
        %v2938 = vsub.f32 %v2936, %v2937
        %v2939 = vand.u32 %v2938, 4294901760
        %2940 = vmatpush1.msra.mxu0 %v2939
        %v2941 = vand.u32 %v1178, 4294901760
        %v2942 = vsub.f32 %v1178, %v2941
        %v2943 = vand.u32 %v2942, 4294901760
        %v2944 = vsub.f32 %v2942, %v2943
        %v2945 = vand.u32 %v2944, 4294901760
        %2946 = vmatprep.subr.mxu0 %v2945
        %v2947 = vand.u32 %v1177, 4294901760
        %v2948 = vsub.f32 %v1177, %v2947
        %v2949 = vand.u32 %v2948, 4294901760
        %v2950 = vsub.f32 %v2948, %v2949
        %v2951 = vand.u32 %v2950, 4294901760
        %2952 = vmatpush1.msra.mxu0 %v2951
        %v2953 = vand.u32 %v1180, 4294901760
        %v2954 = vsub.f32 %v1180, %v2953
        %v2955 = vand.u32 %v2954, 4294901760
        %v2956 = vsub.f32 %v2954, %v2955
        %v2957 = vand.u32 %v2956, 4294901760
        %2958 = vmatprep.subr.mxu0 %v2957
        %v2959 = vand.u32 %v1179, 4294901760
        %v2960 = vsub.f32 %v1179, %v2959
        %v2961 = vand.u32 %v2960, 4294901760
        %v2962 = vsub.f32 %v2960, %v2961
        %v2963 = vand.u32 %v2962, 4294901760
        %2964 = vmatpush1.msra.mxu0 %v2963
        %v2965 = vand.u32 %v1182, 4294901760
        %v2966 = vsub.f32 %v1182, %v2965
        %v2967 = vand.u32 %v2966, 4294901760
        %v2968 = vsub.f32 %v2966, %v2967
        %v2969 = vand.u32 %v2968, 4294901760
        %2970 = vmatprep.subr.mxu0 %v2969
        %v2971 = vand.u32 %v1181, 4294901760
        %v2972 = vsub.f32 %v1181, %v2971
        %v2973 = vand.u32 %v2972, 4294901760
        %v2974 = vsub.f32 %v2972, %v2973
        %v2975 = vand.u32 %v2974, 4294901760
        %2976 = vmatpush1.msra.mxu0 %v2975
        %v2977 = vand.u32 %v1184, 4294901760
        %v2978 = vsub.f32 %v1184, %v2977
        %v2979 = vand.u32 %v2978, 4294901760
        %v2980 = vsub.f32 %v2978, %v2979
        %v2981 = vand.u32 %v2980, 4294901760
        %2982 = vmatprep.subr.mxu0 %v2981
        %v2983 = vand.u32 %v1183, 4294901760
        %v2984 = vsub.f32 %v1183, %v2983
        %v2985 = vand.u32 %v2984, 4294901760
        %v2986 = vsub.f32 %v2984, %v2985
        %v2987 = vand.u32 %v2986, 4294901760
        %2988 = vmatpush1.msra.mxu0 %v2987
        %v2989 = vand.u32 %v1186, 4294901760
        %v2990 = vsub.f32 %v1186, %v2989
        %v2991 = vand.u32 %v2990, 4294901760
        %v2992 = vsub.f32 %v2990, %v2991
        %v2993 = vand.u32 %v2992, 4294901760
        %2994 = vmatprep.subr.mxu0 %v2993
        %v2995 = vand.u32 %v1185, 4294901760
        %v2996 = vsub.f32 %v1185, %v2995
        %v2997 = vand.u32 %v2996, 4294901760
        %v2998 = vsub.f32 %v2996, %v2997
        %v2999 = vand.u32 %v2998, 4294901760
        %3000 = vmatpush1.msra.mxu0 %v2999
        %v3001 = vand.u32 %v1198, 4294901760
        %v3002 = vsub.f32 %v1198, %v3001
        %v3003 = vand.u32 %v3002, 4294901760
        %v3004 = vsub.f32 %v3002, %v3003
        %v3005 = vand.u32 %v3004, 4294901760
        %3006 = vmatprep.subr.mxu0 %v3005
        %v3007 = vand.u32 %v1195, 4294901760
        %v3008 = vsub.f32 %v1195, %v3007
        %v3009 = vand.u32 %v3008, 4294901760
        %v3010 = vsub.f32 %v3008, %v3009
        %v3011 = vand.u32 %v3010, 4294901760
        %3012 = vmatpush1.msra.mxu0 %v3011
        %v3013 = vand.u32 %v1191, 4294901760
        %3014 = vmatprep.mubr.f32.mxu0 %v3013
        %v3015 = vand.u32 %v1059, 4294901760
        %3016 = vmatmul.mubr.f32.gmra.mrb[0].mxu0 %v3015
        %v3017 = vpop.f32.mrb[0].mxu0
        %v3018 = vadd.f32 %v2625, %v3017
        %v3019 = vpop.f32.mrb[0].mxu0
        %v3020 = vadd.f32 %v2627, %v3019
        %3021 = vdwg.mxu0
        %v3022 = vand.u32 %v1126, 4294901760
        %v3023 = vsub.f32 %v1126, %v3022
        %3024 = vmatprep.subr.mxu0 %v3023
        %v3025 = vand.u32 %v1125, 4294901760
        %v3026 = vsub.f32 %v1125, %v3025
        %3027 = vmatpush1.msra.mxu0 %v3026
        %v3028 = vand.u32 %v1128, 4294901760
        %v3029 = vsub.f32 %v1128, %v3028
        %3030 = vmatprep.subr.mxu0 %v3029
        %v3031 = vand.u32 %v1127, 4294901760
        %v3032 = vsub.f32 %v1127, %v3031
        %3033 = vmatpush1.msra.mxu0 %v3032
        %v3034 = vand.u32 %v1130, 4294901760
        %v3035 = vsub.f32 %v1130, %v3034
        %3036 = vmatprep.subr.mxu0 %v3035
        %v3037 = vand.u32 %v1129, 4294901760
        %v3038 = vsub.f32 %v1129, %v3037
        %3039 = vmatpush1.msra.mxu0 %v3038
        %v3040 = vand.u32 %v1132, 4294901760
        %v3041 = vsub.f32 %v1132, %v3040
        %3042 = vmatprep.subr.mxu0 %v3041
        %v3043 = vand.u32 %v1131, 4294901760
        %v3044 = vsub.f32 %v1131, %v3043
        %3045 = vmatpush1.msra.mxu0 %v3044
        %v3046 = vand.u32 %v1134, 4294901760
        %v3047 = vsub.f32 %v1134, %v3046
        %3048 = vmatprep.subr.mxu0 %v3047
        %v3049 = vand.u32 %v1133, 4294901760
        %v3050 = vsub.f32 %v1133, %v3049
        %3051 = vmatpush1.msra.mxu0 %v3050
        %v3052 = vand.u32 %v1136, 4294901760
        %v3053 = vsub.f32 %v1136, %v3052
        %3054 = vmatprep.subr.mxu0 %v3053
        %v3055 = vand.u32 %v1135, 4294901760
        %v3056 = vsub.f32 %v1135, %v3055
        %3057 = vmatpush1.msra.mxu0 %v3056
        %v3058 = vand.u32 %v1138, 4294901760
        %v3059 = vsub.f32 %v1138, %v3058
        %3060 = vmatprep.subr.mxu0 %v3059
        %v3061 = vand.u32 %v1137, 4294901760
        %v3062 = vsub.f32 %v1137, %v3061
        %3063 = vmatpush1.msra.mxu0 %v3062
        %v3064 = vand.u32 %v1140, 4294901760
        %v3065 = vsub.f32 %v1140, %v3064
        %3066 = vmatprep.subr.mxu0 %v3065
        %v3067 = vand.u32 %v1139, 4294901760
        %v3068 = vsub.f32 %v1139, %v3067
        %3069 = vmatpush1.msra.mxu0 %v3068
        %v3070 = vand.u32 %v1142, 4294901760
        %v3071 = vsub.f32 %v1142, %v3070
        %3072 = vmatprep.subr.mxu0 %v3071
        %v3073 = vand.u32 %v1141, 4294901760
        %v3074 = vsub.f32 %v1141, %v3073
        %3075 = vmatpush1.msra.mxu0 %v3074
        %v3076 = vand.u32 %v1144, 4294901760
        %v3077 = vsub.f32 %v1144, %v3076
        %3078 = vmatprep.subr.mxu0 %v3077
        %v3079 = vand.u32 %v1143, 4294901760
        %v3080 = vsub.f32 %v1143, %v3079
        %3081 = vmatpush1.msra.mxu0 %v3080
        %v3082 = vand.u32 %v1146, 4294901760
        %v3083 = vsub.f32 %v1146, %v3082
        %3084 = vmatprep.subr.mxu0 %v3083
        %v3085 = vand.u32 %v1145, 4294901760
        %v3086 = vsub.f32 %v1145, %v3085
        %3087 = vmatpush1.msra.mxu0 %v3086
        %v3088 = vand.u32 %v1148, 4294901760
        %v3089 = vsub.f32 %v1148, %v3088
        %3090 = vmatprep.subr.mxu0 %v3089
        %v3091 = vand.u32 %v1147, 4294901760
        %v3092 = vsub.f32 %v1147, %v3091
        %3093 = vmatpush1.msra.mxu0 %v3092
        %v3094 = vand.u32 %v1150, 4294901760
        %v3095 = vsub.f32 %v1150, %v3094
        %3096 = vmatprep.subr.mxu0 %v3095
        %v3097 = vand.u32 %v1149, 4294901760
        %v3098 = vsub.f32 %v1149, %v3097
        %3099 = vmatpush1.msra.mxu0 %v3098
        %v3100 = vand.u32 %v1152, 4294901760
        %v3101 = vsub.f32 %v1152, %v3100
        %3102 = vmatprep.subr.mxu0 %v3101
        %v3103 = vand.u32 %v1151, 4294901760
        %v3104 = vsub.f32 %v1151, %v3103
        %3105 = vmatpush1.msra.mxu0 %v3104
        %v3106 = vand.u32 %v1154, 4294901760
        %v3107 = vsub.f32 %v1154, %v3106
        %3108 = vmatprep.subr.mxu0 %v3107
        %v3109 = vand.u32 %v1153, 4294901760
        %v3110 = vsub.f32 %v1153, %v3109
        %3111 = vmatpush1.msra.mxu0 %v3110
        %v3112 = vand.u32 %v1156, 4294901760
        %v3113 = vsub.f32 %v1156, %v3112
        %3114 = vmatprep.subr.mxu0 %v3113
        %v3115 = vand.u32 %v1155, 4294901760
        %v3116 = vsub.f32 %v1155, %v3115
        %3117 = vmatpush1.msra.mxu0 %v3116
        %v3118 = vand.u32 %v1158, 4294901760
        %v3119 = vsub.f32 %v1158, %v3118
        %3120 = vmatprep.subr.mxu0 %v3119
        %v3121 = vand.u32 %v1157, 4294901760
        %v3122 = vsub.f32 %v1157, %v3121
        %3123 = vmatpush1.msra.mxu0 %v3122
        %v3124 = vand.u32 %v1160, 4294901760
        %v3125 = vsub.f32 %v1160, %v3124
        %3126 = vmatprep.subr.mxu0 %v3125
        %v3127 = vand.u32 %v1159, 4294901760
        %v3128 = vsub.f32 %v1159, %v3127
        %3129 = vmatpush1.msra.mxu0 %v3128
        %v3130 = vand.u32 %v1162, 4294901760
        %v3131 = vsub.f32 %v1162, %v3130
        %3132 = vmatprep.subr.mxu0 %v3131
        %v3133 = vand.u32 %v1161, 4294901760
        %v3134 = vsub.f32 %v1161, %v3133
        %3135 = vmatpush1.msra.mxu0 %v3134
        %v3136 = vand.u32 %v1164, 4294901760
        %v3137 = vsub.f32 %v1164, %v3136
        %3138 = vmatprep.subr.mxu0 %v3137
        %v3139 = vand.u32 %v1163, 4294901760
        %v3140 = vsub.f32 %v1163, %v3139
        %3141 = vmatpush1.msra.mxu0 %v3140
        %v3142 = vand.u32 %v1166, 4294901760
        %v3143 = vsub.f32 %v1166, %v3142
        %3144 = vmatprep.subr.mxu0 %v3143
        %v3145 = vand.u32 %v1165, 4294901760
        %v3146 = vsub.f32 %v1165, %v3145
        %3147 = vmatpush1.msra.mxu0 %v3146
        %v3148 = vand.u32 %v1168, 4294901760
        %v3149 = vsub.f32 %v1168, %v3148
        %3150 = vmatprep.subr.mxu0 %v3149
        %v3151 = vand.u32 %v1167, 4294901760
        %v3152 = vsub.f32 %v1167, %v3151
        %3153 = vmatpush1.msra.mxu0 %v3152
        %v3154 = vand.u32 %v1170, 4294901760
        %v3155 = vsub.f32 %v1170, %v3154
        %3156 = vmatprep.subr.mxu0 %v3155
        %v3157 = vand.u32 %v1169, 4294901760
        %v3158 = vsub.f32 %v1169, %v3157
        %3159 = vmatpush1.msra.mxu0 %v3158
        %v3160 = vand.u32 %v1172, 4294901760
        %v3161 = vsub.f32 %v1172, %v3160
        %3162 = vmatprep.subr.mxu0 %v3161
        %v3163 = vand.u32 %v1171, 4294901760
        %v3164 = vsub.f32 %v1171, %v3163
        %3165 = vmatpush1.msra.mxu0 %v3164
        %v3166 = vand.u32 %v1174, 4294901760
        %v3167 = vsub.f32 %v1174, %v3166
        %3168 = vmatprep.subr.mxu0 %v3167
        %v3169 = vand.u32 %v1173, 4294901760
        %v3170 = vsub.f32 %v1173, %v3169
        %3171 = vmatpush1.msra.mxu0 %v3170
        %v3172 = vand.u32 %v1176, 4294901760
        %v3173 = vsub.f32 %v1176, %v3172
        %3174 = vmatprep.subr.mxu0 %v3173
        %v3175 = vand.u32 %v1175, 4294901760
        %v3176 = vsub.f32 %v1175, %v3175
        %3177 = vmatpush1.msra.mxu0 %v3176
        %v3178 = vand.u32 %v1178, 4294901760
        %v3179 = vsub.f32 %v1178, %v3178
        %3180 = vmatprep.subr.mxu0 %v3179
        %v3181 = vand.u32 %v1177, 4294901760
        %v3182 = vsub.f32 %v1177, %v3181
        %3183 = vmatpush1.msra.mxu0 %v3182
        %v3184 = vand.u32 %v1180, 4294901760
        %v3185 = vsub.f32 %v1180, %v3184
        %3186 = vmatprep.subr.mxu0 %v3185
        %v3187 = vand.u32 %v1179, 4294901760
        %v3188 = vsub.f32 %v1179, %v3187
        %3189 = vmatpush1.msra.mxu0 %v3188
        %v3190 = vand.u32 %v1182, 4294901760
        %v3191 = vsub.f32 %v1182, %v3190
        %3192 = vmatprep.subr.mxu0 %v3191
        %v3193 = vand.u32 %v1181, 4294901760
        %v3194 = vsub.f32 %v1181, %v3193
        %3195 = vmatpush1.msra.mxu0 %v3194
        %v3196 = vand.u32 %v1184, 4294901760
        %v3197 = vsub.f32 %v1184, %v3196
        %3198 = vmatprep.subr.mxu0 %v3197
        %v3199 = vand.u32 %v1183, 4294901760
        %v3200 = vsub.f32 %v1183, %v3199
        %3201 = vmatpush1.msra.mxu0 %v3200
        %v3202 = vand.u32 %v1186, 4294901760
        %v3203 = vsub.f32 %v1186, %v3202
        %3204 = vmatprep.subr.mxu0 %v3203
        %v3205 = vand.u32 %v1185, 4294901760
        %v3206 = vsub.f32 %v1185, %v3205
        %3207 = vmatpush1.msra.mxu0 %v3206
        %v3208 = vand.u32 %v1198, 4294901760
        %v3209 = vsub.f32 %v1198, %v3208
        %3210 = vmatprep.subr.mxu0 %v3209
        %v3211 = vand.u32 %v1195, 4294901760
        %v3212 = vsub.f32 %v1195, %v3211
        %3213 = vmatpush1.msra.mxu0 %v3212
        %v3214 = vand.u32 %v1191, 4294901760
        %v3215 = vsub.f32 %v1191, %v3214
        %3216 = vmatprep.mubr.f32.mxu0 %v3215
        %v3217 = vand.u32 %v1059, 4294901760
        %v3218 = vsub.f32 %v1059, %v3217
        %3219 = vmatmul.mubr.f32.gmra.mrb[0].mxu0 %v3218
        %v3220 = vpop.f32.mrb[0].mxu0
        %v3221 = vadd.f32 %v3018, %v3220
        %v3222 = vpop.f32.mrb[0].mxu0
        %v3223 = vadd.f32 %v3020, %v3222
        %3224 = vdwg.mxu0
        %v3225 = vand.u32 %v1126, 4294901760
        %3226 = vmatprep.subr.mxu0 %v3225
        %v3227 = vand.u32 %v1125, 4294901760
        %3228 = vmatpush1.msra.mxu0 %v3227
        %v3229 = vand.u32 %v1128, 4294901760
        %3230 = vmatprep.subr.mxu0 %v3229
        %v3231 = vand.u32 %v1127, 4294901760
        %3232 = vmatpush1.msra.mxu0 %v3231
        %v3233 = vand.u32 %v1130, 4294901760
        %3234 = vmatprep.subr.mxu0 %v3233
        %v3235 = vand.u32 %v1129, 4294901760
        %3236 = vmatpush1.msra.mxu0 %v3235
        %v3237 = vand.u32 %v1132, 4294901760
        %3238 = vmatprep.subr.mxu0 %v3237
        %v3239 = vand.u32 %v1131, 4294901760
        %3240 = vmatpush1.msra.mxu0 %v3239
        %v3241 = vand.u32 %v1134, 4294901760
        %3242 = vmatprep.subr.mxu0 %v3241
        %v3243 = vand.u32 %v1133, 4294901760
        %3244 = vmatpush1.msra.mxu0 %v3243
        %v3245 = vand.u32 %v1136, 4294901760
        %3246 = vmatprep.subr.mxu0 %v3245
        %v3247 = vand.u32 %v1135, 4294901760
        %3248 = vmatpush1.msra.mxu0 %v3247
        %v3249 = vand.u32 %v1138, 4294901760
        %3250 = vmatprep.subr.mxu0 %v3249
        %v3251 = vand.u32 %v1137, 4294901760
        %3252 = vmatpush1.msra.mxu0 %v3251
        %v3253 = vand.u32 %v1140, 4294901760
        %3254 = vmatprep.subr.mxu0 %v3253
        %v3255 = vand.u32 %v1139, 4294901760
        %3256 = vmatpush1.msra.mxu0 %v3255
        %v3257 = vand.u32 %v1142, 4294901760
        %3258 = vmatprep.subr.mxu0 %v3257
        %v3259 = vand.u32 %v1141, 4294901760
        %3260 = vmatpush1.msra.mxu0 %v3259
        %v3261 = vand.u32 %v1144, 4294901760
        %3262 = vmatprep.subr.mxu0 %v3261
        %v3263 = vand.u32 %v1143, 4294901760
        %3264 = vmatpush1.msra.mxu0 %v3263
        %v3265 = vand.u32 %v1146, 4294901760
        %3266 = vmatprep.subr.mxu0 %v3265
        %v3267 = vand.u32 %v1145, 4294901760
        %3268 = vmatpush1.msra.mxu0 %v3267
        %v3269 = vand.u32 %v1148, 4294901760
        %3270 = vmatprep.subr.mxu0 %v3269
        %v3271 = vand.u32 %v1147, 4294901760
        %3272 = vmatpush1.msra.mxu0 %v3271
        %v3273 = vand.u32 %v1150, 4294901760
        %3274 = vmatprep.subr.mxu0 %v3273
        %v3275 = vand.u32 %v1149, 4294901760
        %3276 = vmatpush1.msra.mxu0 %v3275
        %v3277 = vand.u32 %v1152, 4294901760
        %3278 = vmatprep.subr.mxu0 %v3277
        %v3279 = vand.u32 %v1151, 4294901760
        %3280 = vmatpush1.msra.mxu0 %v3279
        %v3281 = vand.u32 %v1154, 4294901760
        %3282 = vmatprep.subr.mxu0 %v3281
        %v3283 = vand.u32 %v1153, 4294901760
        %3284 = vmatpush1.msra.mxu0 %v3283
        %v3285 = vand.u32 %v1156, 4294901760
        %3286 = vmatprep.subr.mxu0 %v3285
        %v3287 = vand.u32 %v1155, 4294901760
        %3288 = vmatpush1.msra.mxu0 %v3287
        %v3289 = vand.u32 %v1158, 4294901760
        %3290 = vmatprep.subr.mxu0 %v3289
        %v3291 = vand.u32 %v1157, 4294901760
        %3292 = vmatpush1.msra.mxu0 %v3291
        %v3293 = vand.u32 %v1160, 4294901760
        %3294 = vmatprep.subr.mxu0 %v3293
        %v3295 = vand.u32 %v1159, 4294901760
        %3296 = vmatpush1.msra.mxu0 %v3295
        %v3297 = vand.u32 %v1162, 4294901760
        %3298 = vmatprep.subr.mxu0 %v3297
        %v3299 = vand.u32 %v1161, 4294901760
        %3300 = vmatpush1.msra.mxu0 %v3299
        %v3301 = vand.u32 %v1164, 4294901760
        %3302 = vmatprep.subr.mxu0 %v3301
        %v3303 = vand.u32 %v1163, 4294901760
        %3304 = vmatpush1.msra.mxu0 %v3303
        %v3305 = vand.u32 %v1166, 4294901760
        %3306 = vmatprep.subr.mxu0 %v3305
        %v3307 = vand.u32 %v1165, 4294901760
        %3308 = vmatpush1.msra.mxu0 %v3307
        %v3309 = vand.u32 %v1168, 4294901760
        %3310 = vmatprep.subr.mxu0 %v3309
        %v3311 = vand.u32 %v1167, 4294901760
        %3312 = vmatpush1.msra.mxu0 %v3311
        %v3313 = vand.u32 %v1170, 4294901760
        %3314 = vmatprep.subr.mxu0 %v3313
        %v3315 = vand.u32 %v1169, 4294901760
        %3316 = vmatpush1.msra.mxu0 %v3315
        %v3317 = vand.u32 %v1172, 4294901760
        %3318 = vmatprep.subr.mxu0 %v3317
        %v3319 = vand.u32 %v1171, 4294901760
        %3320 = vmatpush1.msra.mxu0 %v3319
        %v3321 = vand.u32 %v1174, 4294901760
        %3322 = vmatprep.subr.mxu0 %v3321
        %v3323 = vand.u32 %v1173, 4294901760
        %3324 = vmatpush1.msra.mxu0 %v3323
        %v3325 = vand.u32 %v1176, 4294901760
        %3326 = vmatprep.subr.mxu0 %v3325
        %v3327 = vand.u32 %v1175, 4294901760
        %3328 = vmatpush1.msra.mxu0 %v3327
        %v3329 = vand.u32 %v1178, 4294901760
        %3330 = vmatprep.subr.mxu0 %v3329
        %v3331 = vand.u32 %v1177, 4294901760
        %3332 = vmatpush1.msra.mxu0 %v3331
        %v3333 = vand.u32 %v1180, 4294901760
        %3334 = vmatprep.subr.mxu0 %v3333
        %v3335 = vand.u32 %v1179, 4294901760
        %3336 = vmatpush1.msra.mxu0 %v3335
        %v3337 = vand.u32 %v1182, 4294901760
        %3338 = vmatprep.subr.mxu0 %v3337
        %v3339 = vand.u32 %v1181, 4294901760
        %3340 = vmatpush1.msra.mxu0 %v3339
        %v3341 = vand.u32 %v1184, 4294901760
        %3342 = vmatprep.subr.mxu0 %v3341
        %v3343 = vand.u32 %v1183, 4294901760
        %3344 = vmatpush1.msra.mxu0 %v3343
        %v3345 = vand.u32 %v1186, 4294901760
        %3346 = vmatprep.subr.mxu0 %v3345
        %v3347 = vand.u32 %v1185, 4294901760
        %3348 = vmatpush1.msra.mxu0 %v3347
        %v3349 = vand.u32 %v1198, 4294901760
        %3350 = vmatprep.subr.mxu0 %v3349
        %v3351 = vand.u32 %v1195, 4294901760
        %3352 = vmatpush1.msra.mxu0 %v3351
        %v3353 = vand.u32 %v1191, 4294901760
        %v3354 = vsub.f32 %v1191, %v3353
        %v3355 = vand.u32 %v3354, 4294901760
        %3356 = vmatprep.mubr.f32.mxu0 %v3355
        %v3357 = vand.u32 %v1059, 4294901760
        %v3358 = vsub.f32 %v1059, %v3357
        %v3359 = vand.u32 %v3358, 4294901760
        %3360 = vmatmul.mubr.f32.gmra.mrb[0].mxu0 %v3359
        %v3361 = vpop.f32.mrb[0].mxu0
        %v3362 = vadd.f32 %v3221, %v3361
        %v3363 = vpop.f32.mrb[0].mxu0
        %v3364 = vadd.f32 %v3223, %v3363
        %3365 = vdwg.mxu0
        %v3366 = vand.u32 %v1126, 4294901760
        %v3367 = vsub.f32 %v1126, %v3366
        %v3368 = vand.u32 %v3367, 4294901760
        %3369 = vmatprep.subr.mxu0 %v3368
        %v3370 = vand.u32 %v1125, 4294901760
        %v3371 = vsub.f32 %v1125, %v3370
        %v3372 = vand.u32 %v3371, 4294901760
        %3373 = vmatpush1.msra.mxu0 %v3372
        %v3374 = vand.u32 %v1128, 4294901760
        %v3375 = vsub.f32 %v1128, %v3374
        %v3376 = vand.u32 %v3375, 4294901760
        %3377 = vmatprep.subr.mxu0 %v3376
        %v3378 = vand.u32 %v1127, 4294901760
        %v3379 = vsub.f32 %v1127, %v3378
        %v3380 = vand.u32 %v3379, 4294901760
        %3381 = vmatpush1.msra.mxu0 %v3380
        %v3382 = vand.u32 %v1130, 4294901760
        %v3383 = vsub.f32 %v1130, %v3382
        %v3384 = vand.u32 %v3383, 4294901760
        %3385 = vmatprep.subr.mxu0 %v3384
        %v3386 = vand.u32 %v1129, 4294901760
        %v3387 = vsub.f32 %v1129, %v3386
        %v3388 = vand.u32 %v3387, 4294901760
        %3389 = vmatpush1.msra.mxu0 %v3388
        %v3390 = vand.u32 %v1132, 4294901760
        %v3391 = vsub.f32 %v1132, %v3390
        %v3392 = vand.u32 %v3391, 4294901760
        %3393 = vmatprep.subr.mxu0 %v3392
        %v3394 = vand.u32 %v1131, 4294901760
        %v3395 = vsub.f32 %v1131, %v3394
        %v3396 = vand.u32 %v3395, 4294901760
        %3397 = vmatpush1.msra.mxu0 %v3396
        %v3398 = vand.u32 %v1134, 4294901760
        %v3399 = vsub.f32 %v1134, %v3398
        %v3400 = vand.u32 %v3399, 4294901760
        %3401 = vmatprep.subr.mxu0 %v3400
        %v3402 = vand.u32 %v1133, 4294901760
        %v3403 = vsub.f32 %v1133, %v3402
        %v3404 = vand.u32 %v3403, 4294901760
        %3405 = vmatpush1.msra.mxu0 %v3404
        %v3406 = vand.u32 %v1136, 4294901760
        %v3407 = vsub.f32 %v1136, %v3406
        %v3408 = vand.u32 %v3407, 4294901760
        %3409 = vmatprep.subr.mxu0 %v3408
        %v3410 = vand.u32 %v1135, 4294901760
        %v3411 = vsub.f32 %v1135, %v3410
        %v3412 = vand.u32 %v3411, 4294901760
        %3413 = vmatpush1.msra.mxu0 %v3412
        %v3414 = vand.u32 %v1138, 4294901760
        %v3415 = vsub.f32 %v1138, %v3414
        %v3416 = vand.u32 %v3415, 4294901760
        %3417 = vmatprep.subr.mxu0 %v3416
        %v3418 = vand.u32 %v1137, 4294901760
        %v3419 = vsub.f32 %v1137, %v3418
        %v3420 = vand.u32 %v3419, 4294901760
        %3421 = vmatpush1.msra.mxu0 %v3420
        %v3422 = vand.u32 %v1140, 4294901760
        %v3423 = vsub.f32 %v1140, %v3422
        %v3424 = vand.u32 %v3423, 4294901760
        %3425 = vmatprep.subr.mxu0 %v3424
        %v3426 = vand.u32 %v1139, 4294901760
        %v3427 = vsub.f32 %v1139, %v3426
        %v3428 = vand.u32 %v3427, 4294901760
        %3429 = vmatpush1.msra.mxu0 %v3428
        %v3430 = vand.u32 %v1142, 4294901760
        %v3431 = vsub.f32 %v1142, %v3430
        %v3432 = vand.u32 %v3431, 4294901760
        %3433 = vmatprep.subr.mxu0 %v3432
        %v3434 = vand.u32 %v1141, 4294901760
        %v3435 = vsub.f32 %v1141, %v3434
        %v3436 = vand.u32 %v3435, 4294901760
        %3437 = vmatpush1.msra.mxu0 %v3436
        %v3438 = vand.u32 %v1144, 4294901760
        %v3439 = vsub.f32 %v1144, %v3438
        %v3440 = vand.u32 %v3439, 4294901760
        %3441 = vmatprep.subr.mxu0 %v3440
        %v3442 = vand.u32 %v1143, 4294901760
        %v3443 = vsub.f32 %v1143, %v3442
        %v3444 = vand.u32 %v3443, 4294901760
        %3445 = vmatpush1.msra.mxu0 %v3444
        %v3446 = vand.u32 %v1146, 4294901760
        %v3447 = vsub.f32 %v1146, %v3446
        %v3448 = vand.u32 %v3447, 4294901760
        %3449 = vmatprep.subr.mxu0 %v3448
        %v3450 = vand.u32 %v1145, 4294901760
        %v3451 = vsub.f32 %v1145, %v3450
        %v3452 = vand.u32 %v3451, 4294901760
        %3453 = vmatpush1.msra.mxu0 %v3452
        %v3454 = vand.u32 %v1148, 4294901760
        %v3455 = vsub.f32 %v1148, %v3454
        %v3456 = vand.u32 %v3455, 4294901760
        %3457 = vmatprep.subr.mxu0 %v3456
        %v3458 = vand.u32 %v1147, 4294901760
        %v3459 = vsub.f32 %v1147, %v3458
        %v3460 = vand.u32 %v3459, 4294901760
        %3461 = vmatpush1.msra.mxu0 %v3460
        %v3462 = vand.u32 %v1150, 4294901760
        %v3463 = vsub.f32 %v1150, %v3462
        %v3464 = vand.u32 %v3463, 4294901760
        %3465 = vmatprep.subr.mxu0 %v3464
        %v3466 = vand.u32 %v1149, 4294901760
        %v3467 = vsub.f32 %v1149, %v3466
        %v3468 = vand.u32 %v3467, 4294901760
        %3469 = vmatpush1.msra.mxu0 %v3468
        %v3470 = vand.u32 %v1152, 4294901760
        %v3471 = vsub.f32 %v1152, %v3470
        %v3472 = vand.u32 %v3471, 4294901760
        %3473 = vmatprep.subr.mxu0 %v3472
        %v3474 = vand.u32 %v1151, 4294901760
        %v3475 = vsub.f32 %v1151, %v3474
        %v3476 = vand.u32 %v3475, 4294901760
        %3477 = vmatpush1.msra.mxu0 %v3476
        %v3478 = vand.u32 %v1154, 4294901760
        %v3479 = vsub.f32 %v1154, %v3478
        %v3480 = vand.u32 %v3479, 4294901760
        %3481 = vmatprep.subr.mxu0 %v3480
        %v3482 = vand.u32 %v1153, 4294901760
        %v3483 = vsub.f32 %v1153, %v3482
        %v3484 = vand.u32 %v3483, 4294901760
        %3485 = vmatpush1.msra.mxu0 %v3484
        %v3486 = vand.u32 %v1156, 4294901760
        %v3487 = vsub.f32 %v1156, %v3486
        %v3488 = vand.u32 %v3487, 4294901760
        %3489 = vmatprep.subr.mxu0 %v3488
        %v3490 = vand.u32 %v1155, 4294901760
        %v3491 = vsub.f32 %v1155, %v3490
        %v3492 = vand.u32 %v3491, 4294901760
        %3493 = vmatpush1.msra.mxu0 %v3492
        %v3494 = vand.u32 %v1158, 4294901760
        %v3495 = vsub.f32 %v1158, %v3494
        %v3496 = vand.u32 %v3495, 4294901760
        %3497 = vmatprep.subr.mxu0 %v3496
        %v3498 = vand.u32 %v1157, 4294901760
        %v3499 = vsub.f32 %v1157, %v3498
        %v3500 = vand.u32 %v3499, 4294901760
        %3501 = vmatpush1.msra.mxu0 %v3500
        %v3502 = vand.u32 %v1160, 4294901760
        %v3503 = vsub.f32 %v1160, %v3502
        %v3504 = vand.u32 %v3503, 4294901760
        %3505 = vmatprep.subr.mxu0 %v3504
        %v3506 = vand.u32 %v1159, 4294901760
        %v3507 = vsub.f32 %v1159, %v3506
        %v3508 = vand.u32 %v3507, 4294901760
        %3509 = vmatpush1.msra.mxu0 %v3508
        %v3510 = vand.u32 %v1162, 4294901760
        %v3511 = vsub.f32 %v1162, %v3510
        %v3512 = vand.u32 %v3511, 4294901760
        %3513 = vmatprep.subr.mxu0 %v3512
        %v3514 = vand.u32 %v1161, 4294901760
        %v3515 = vsub.f32 %v1161, %v3514
        %v3516 = vand.u32 %v3515, 4294901760
        %3517 = vmatpush1.msra.mxu0 %v3516
        %v3518 = vand.u32 %v1164, 4294901760
        %v3519 = vsub.f32 %v1164, %v3518
        %v3520 = vand.u32 %v3519, 4294901760
        %3521 = vmatprep.subr.mxu0 %v3520
        %v3522 = vand.u32 %v1163, 4294901760
        %v3523 = vsub.f32 %v1163, %v3522
        %v3524 = vand.u32 %v3523, 4294901760
        %3525 = vmatpush1.msra.mxu0 %v3524
        %v3526 = vand.u32 %v1166, 4294901760
        %v3527 = vsub.f32 %v1166, %v3526
        %v3528 = vand.u32 %v3527, 4294901760
        %3529 = vmatprep.subr.mxu0 %v3528
        %v3530 = vand.u32 %v1165, 4294901760
        %v3531 = vsub.f32 %v1165, %v3530
        %v3532 = vand.u32 %v3531, 4294901760
        %3533 = vmatpush1.msra.mxu0 %v3532
        %v3534 = vand.u32 %v1168, 4294901760
        %v3535 = vsub.f32 %v1168, %v3534
        %v3536 = vand.u32 %v3535, 4294901760
        %3537 = vmatprep.subr.mxu0 %v3536
        %v3538 = vand.u32 %v1167, 4294901760
        %v3539 = vsub.f32 %v1167, %v3538
        %v3540 = vand.u32 %v3539, 4294901760
        %3541 = vmatpush1.msra.mxu0 %v3540
        %v3542 = vand.u32 %v1170, 4294901760
        %v3543 = vsub.f32 %v1170, %v3542
        %v3544 = vand.u32 %v3543, 4294901760
        %3545 = vmatprep.subr.mxu0 %v3544
        %v3546 = vand.u32 %v1169, 4294901760
        %v3547 = vsub.f32 %v1169, %v3546
        %v3548 = vand.u32 %v3547, 4294901760
        %3549 = vmatpush1.msra.mxu0 %v3548
        %v3550 = vand.u32 %v1172, 4294901760
        %v3551 = vsub.f32 %v1172, %v3550
        %v3552 = vand.u32 %v3551, 4294901760
        %3553 = vmatprep.subr.mxu0 %v3552
        %v3554 = vand.u32 %v1171, 4294901760
        %v3555 = vsub.f32 %v1171, %v3554
        %v3556 = vand.u32 %v3555, 4294901760
        %3557 = vmatpush1.msra.mxu0 %v3556
        %v3558 = vand.u32 %v1174, 4294901760
        %v3559 = vsub.f32 %v1174, %v3558
        %v3560 = vand.u32 %v3559, 4294901760
        %3561 = vmatprep.subr.mxu0 %v3560
        %v3562 = vand.u32 %v1173, 4294901760
        %v3563 = vsub.f32 %v1173, %v3562
        %v3564 = vand.u32 %v3563, 4294901760
        %3565 = vmatpush1.msra.mxu0 %v3564
        %v3566 = vand.u32 %v1176, 4294901760
        %v3567 = vsub.f32 %v1176, %v3566
        %v3568 = vand.u32 %v3567, 4294901760
        %3569 = vmatprep.subr.mxu0 %v3568
        %v3570 = vand.u32 %v1175, 4294901760
        %v3571 = vsub.f32 %v1175, %v3570
        %v3572 = vand.u32 %v3571, 4294901760
        %3573 = vmatpush1.msra.mxu0 %v3572
        %v3574 = vand.u32 %v1178, 4294901760
        %v3575 = vsub.f32 %v1178, %v3574
        %v3576 = vand.u32 %v3575, 4294901760
        %3577 = vmatprep.subr.mxu0 %v3576
        %v3578 = vand.u32 %v1177, 4294901760
        %v3579 = vsub.f32 %v1177, %v3578
        %v3580 = vand.u32 %v3579, 4294901760
        %3581 = vmatpush1.msra.mxu0 %v3580
        %v3582 = vand.u32 %v1180, 4294901760
        %v3583 = vsub.f32 %v1180, %v3582
        %v3584 = vand.u32 %v3583, 4294901760
        %3585 = vmatprep.subr.mxu0 %v3584
        %v3586 = vand.u32 %v1179, 4294901760
        %v3587 = vsub.f32 %v1179, %v3586
        %v3588 = vand.u32 %v3587, 4294901760
        %3589 = vmatpush1.msra.mxu0 %v3588
        %v3590 = vand.u32 %v1182, 4294901760
        %v3591 = vsub.f32 %v1182, %v3590
        %v3592 = vand.u32 %v3591, 4294901760
        %3593 = vmatprep.subr.mxu0 %v3592
        %v3594 = vand.u32 %v1181, 4294901760
        %v3595 = vsub.f32 %v1181, %v3594
        %v3596 = vand.u32 %v3595, 4294901760
        %3597 = vmatpush1.msra.mxu0 %v3596
        %v3598 = vand.u32 %v1184, 4294901760
        %v3599 = vsub.f32 %v1184, %v3598
        %v3600 = vand.u32 %v3599, 4294901760
        %3601 = vmatprep.subr.mxu0 %v3600
        %v3602 = vand.u32 %v1183, 4294901760
        %v3603 = vsub.f32 %v1183, %v3602
        %v3604 = vand.u32 %v3603, 4294901760
        %3605 = vmatpush1.msra.mxu0 %v3604
        %v3606 = vand.u32 %v1186, 4294901760
        %v3607 = vsub.f32 %v1186, %v3606
        %v3608 = vand.u32 %v3607, 4294901760
        %3609 = vmatprep.subr.mxu0 %v3608
        %v3610 = vand.u32 %v1185, 4294901760
        %v3611 = vsub.f32 %v1185, %v3610
        %v3612 = vand.u32 %v3611, 4294901760
        %3613 = vmatpush1.msra.mxu0 %v3612
        %v3614 = vand.u32 %v1198, 4294901760
        %v3615 = vsub.f32 %v1198, %v3614
        %v3616 = vand.u32 %v3615, 4294901760
        %3617 = vmatprep.subr.mxu0 %v3616
        %v3618 = vand.u32 %v1195, 4294901760
        %v3619 = vsub.f32 %v1195, %v3618
        %v3620 = vand.u32 %v3619, 4294901760
        %3621 = vmatpush1.msra.mxu0 %v3620
        %v3622 = vand.u32 %v1191, 4294901760
        %3623 = vmatprep.mubr.f32.mxu0 %v3622
        %v3624 = vand.u32 %v1059, 4294901760
        %3625 = vmatmul.mubr.f32.gmra.mrb[0].mxu0 %v3624
        %v3626 = vpop.f32.mrb[0].mxu0
        %v3627 = vadd.f32 %v3362, %v3626
        %v3628 = vpop.f32.mrb[0].mxu0
        %v3629 = vadd.f32 %v3364, %v3628
        %3630 = vdwg.mxu0
        %v3631 = vand.u32 %v1126, 4294901760
        %3632 = vmatprep.subr.mxu0 %v3631
        %v3633 = vand.u32 %v1125, 4294901760
        %3634 = vmatpush1.msra.mxu0 %v3633
        %v3635 = vand.u32 %v1128, 4294901760
        %3636 = vmatprep.subr.mxu0 %v3635
        %v3637 = vand.u32 %v1127, 4294901760
        %3638 = vmatpush1.msra.mxu0 %v3637
        %v3639 = vand.u32 %v1130, 4294901760
        %3640 = vmatprep.subr.mxu0 %v3639
        %v3641 = vand.u32 %v1129, 4294901760
        %3642 = vmatpush1.msra.mxu0 %v3641
        %v3643 = vand.u32 %v1132, 4294901760
        %3644 = vmatprep.subr.mxu0 %v3643
        %v3645 = vand.u32 %v1131, 4294901760
        %3646 = vmatpush1.msra.mxu0 %v3645
        %v3647 = vand.u32 %v1134, 4294901760
        %3648 = vmatprep.subr.mxu0 %v3647
        %v3649 = vand.u32 %v1133, 4294901760
        %3650 = vmatpush1.msra.mxu0 %v3649
        %v3651 = vand.u32 %v1136, 4294901760
        %3652 = vmatprep.subr.mxu0 %v3651
        %v3653 = vand.u32 %v1135, 4294901760
        %3654 = vmatpush1.msra.mxu0 %v3653
        %v3655 = vand.u32 %v1138, 4294901760
        %3656 = vmatprep.subr.mxu0 %v3655
        %v3657 = vand.u32 %v1137, 4294901760
        %3658 = vmatpush1.msra.mxu0 %v3657
        %v3659 = vand.u32 %v1140, 4294901760
        %3660 = vmatprep.subr.mxu0 %v3659
        %v3661 = vand.u32 %v1139, 4294901760
        %3662 = vmatpush1.msra.mxu0 %v3661
        %v3663 = vand.u32 %v1142, 4294901760
        %3664 = vmatprep.subr.mxu0 %v3663
        %v3665 = vand.u32 %v1141, 4294901760
        %3666 = vmatpush1.msra.mxu0 %v3665
        %v3667 = vand.u32 %v1144, 4294901760
        %3668 = vmatprep.subr.mxu0 %v3667
        %v3669 = vand.u32 %v1143, 4294901760
        %3670 = vmatpush1.msra.mxu0 %v3669
        %v3671 = vand.u32 %v1146, 4294901760
        %3672 = vmatprep.subr.mxu0 %v3671
        %v3673 = vand.u32 %v1145, 4294901760
        %3674 = vmatpush1.msra.mxu0 %v3673
        %v3675 = vand.u32 %v1148, 4294901760
        %3676 = vmatprep.subr.mxu0 %v3675
        %v3677 = vand.u32 %v1147, 4294901760
        %3678 = vmatpush1.msra.mxu0 %v3677
        %v3679 = vand.u32 %v1150, 4294901760
        %3680 = vmatprep.subr.mxu0 %v3679
        %v3681 = vand.u32 %v1149, 4294901760
        %3682 = vmatpush1.msra.mxu0 %v3681
        %v3683 = vand.u32 %v1152, 4294901760
        %3684 = vmatprep.subr.mxu0 %v3683
        %v3685 = vand.u32 %v1151, 4294901760
        %3686 = vmatpush1.msra.mxu0 %v3685
        %v3687 = vand.u32 %v1154, 4294901760
        %3688 = vmatprep.subr.mxu0 %v3687
        %v3689 = vand.u32 %v1153, 4294901760
        %3690 = vmatpush1.msra.mxu0 %v3689
        %v3691 = vand.u32 %v1156, 4294901760
        %3692 = vmatprep.subr.mxu0 %v3691
        %v3693 = vand.u32 %v1155, 4294901760
        %3694 = vmatpush1.msra.mxu0 %v3693
        %v3695 = vand.u32 %v1158, 4294901760
        %3696 = vmatprep.subr.mxu0 %v3695
        %v3697 = vand.u32 %v1157, 4294901760
        %3698 = vmatpush1.msra.mxu0 %v3697
        %v3699 = vand.u32 %v1160, 4294901760
        %3700 = vmatprep.subr.mxu0 %v3699
        %v3701 = vand.u32 %v1159, 4294901760
        %3702 = vmatpush1.msra.mxu0 %v3701
        %v3703 = vand.u32 %v1162, 4294901760
        %3704 = vmatprep.subr.mxu0 %v3703
        %v3705 = vand.u32 %v1161, 4294901760
        %3706 = vmatpush1.msra.mxu0 %v3705
        %v3707 = vand.u32 %v1164, 4294901760
        %3708 = vmatprep.subr.mxu0 %v3707
        %v3709 = vand.u32 %v1163, 4294901760
        %3710 = vmatpush1.msra.mxu0 %v3709
        %v3711 = vand.u32 %v1166, 4294901760
        %3712 = vmatprep.subr.mxu0 %v3711
        %v3713 = vand.u32 %v1165, 4294901760
        %3714 = vmatpush1.msra.mxu0 %v3713
        %v3715 = vand.u32 %v1168, 4294901760
        %3716 = vmatprep.subr.mxu0 %v3715
        %v3717 = vand.u32 %v1167, 4294901760
        %3718 = vmatpush1.msra.mxu0 %v3717
        %v3719 = vand.u32 %v1170, 4294901760
        %3720 = vmatprep.subr.mxu0 %v3719
        %v3721 = vand.u32 %v1169, 4294901760
        %3722 = vmatpush1.msra.mxu0 %v3721
        %v3723 = vand.u32 %v1172, 4294901760
        %3724 = vmatprep.subr.mxu0 %v3723
        %v3725 = vand.u32 %v1171, 4294901760
        %3726 = vmatpush1.msra.mxu0 %v3725
        %v3727 = vand.u32 %v1174, 4294901760
        %3728 = vmatprep.subr.mxu0 %v3727
        %v3729 = vand.u32 %v1173, 4294901760
        %3730 = vmatpush1.msra.mxu0 %v3729
        %v3731 = vand.u32 %v1176, 4294901760
        %3732 = vmatprep.subr.mxu0 %v3731
        %v3733 = vand.u32 %v1175, 4294901760
        %3734 = vmatpush1.msra.mxu0 %v3733
        %v3735 = vand.u32 %v1178, 4294901760
        %3736 = vmatprep.subr.mxu0 %v3735
        %v3737 = vand.u32 %v1177, 4294901760
        %3738 = vmatpush1.msra.mxu0 %v3737
        %v3739 = vand.u32 %v1180, 4294901760
        %3740 = vmatprep.subr.mxu0 %v3739
        %v3741 = vand.u32 %v1179, 4294901760
        %3742 = vmatpush1.msra.mxu0 %v3741
        %v3743 = vand.u32 %v1182, 4294901760
        %3744 = vmatprep.subr.mxu0 %v3743
        %v3745 = vand.u32 %v1181, 4294901760
        %3746 = vmatpush1.msra.mxu0 %v3745
        %v3747 = vand.u32 %v1184, 4294901760
        %3748 = vmatprep.subr.mxu0 %v3747
        %v3749 = vand.u32 %v1183, 4294901760
        %3750 = vmatpush1.msra.mxu0 %v3749
        %v3751 = vand.u32 %v1186, 4294901760
        %3752 = vmatprep.subr.mxu0 %v3751
        %v3753 = vand.u32 %v1185, 4294901760
        %3754 = vmatpush1.msra.mxu0 %v3753
        %v3755 = vand.u32 %v1198, 4294901760
        %3756 = vmatprep.subr.mxu0 %v3755
        %v3757 = vand.u32 %v1195, 4294901760
        %3758 = vmatpush1.msra.mxu0 %v3757
        %v3759 = vand.u32 %v1191, 4294901760
        %3760 = vmatprep.mubr.f32.mxu0 %v3759
        %v3761 = vand.u32 %v1059, 4294901760
        %3762 = vmatmul.mubr.f32.gmra.mrb[0].mxu0 %v3761
        %v3763 = vpop.f32.mrb[0].mxu0
        %v3764 = vadd.f32 %v3627, %v3763
        %v3765 = vpop.f32.mrb[0].mxu0
        %v3766 = vadd.f32 %v3629, %v3765
        %3767 = vdwg.mxu0
        %v3768 = vld [vmem:[%s5] sm:$0xff]
        %3771 = vrot.lane.b32.xlu0 %v3764, 127
        %v3772 = vpop.permute.xlu0 %3771
        %3773 = vrot.lane.b32.xlu0 %v3766, 127
        %v3774 = vpop.permute.xlu0 %3773
        %v3775 = vsel %vm640, %v3772, %v3774
        %3778 = vrot.lane.b32.xlu0 %v3764, 126
        %v3779 = vpop.permute.xlu0 %3778
        %3780 = vrot.lane.b32.xlu0 %v3766, 126
        %v3781 = vpop.permute.xlu0 %3780
        %v3782 = vsel %vm671, %v3779, %v3781
        %v3785 = vld [vmem:[%s6] sm:$0xff]
        %3787 = vset.pattern.permute.xlu0 0
        %3788 = vperm.xlu0 %3787, %v3785
        %v3789 = vpop.permute.xlu0 %3788
        %v3792 = vsel %vm883, %v3768, 0
        %3794 = vmatprep.subr.mxu0 %v3766
        %3795 = vmatpush1.msra.mxu0 %v3764
        %3796 = vmatprep.subr.mxu0 %v3774
        %3797 = vmatpush1.msra.mxu0 %v3775
        %3798 = vmatprep.subr.mxu0 %v3781
        %3799 = vmatpush1.msra.mxu0 %v3782
        %3800 = vmatprep.subr.mxu0 0.0
        %3801 = vmatpush1.msra.mxu0 0.0
        %3802 = vmatprep.subr.mxu0 0.0
        %3803 = vmatpush1.msra.mxu0 0.0
        %3804 = vmatprep.subr.mxu0 0.0
        %3805 = vmatpush1.msra.mxu0 0.0
        %3806 = vmatprep.subr.mxu0 0.0
        %3807 = vmatpush1.msra.mxu0 0.0
        %3808 = vmatprep.subr.mxu0 0.0
        %3809 = vmatpush1.msra.mxu0 0.0
        %3810 = vmatprep.subr.mxu0 0.0
        %3811 = vmatpush1.msra.mxu0 0.0
        %3812 = vmatprep.subr.mxu0 0.0
        %3813 = vmatpush1.msra.mxu0 0.0
        %3814 = vmatprep.subr.mxu0 0.0
        %3815 = vmatpush1.msra.mxu0 0.0
        %3816 = vmatprep.subr.mxu0 0.0
        %3817 = vmatpush1.msra.mxu0 0.0
        %3818 = vmatprep.subr.mxu0 0.0
        %3819 = vmatpush1.msra.mxu0 0.0
        %3820 = vmatprep.subr.mxu0 0.0
        %3821 = vmatpush1.msra.mxu0 0.0
        %3822 = vmatprep.subr.mxu0 0.0
        %3823 = vmatpush1.msra.mxu0 0.0
        %3824 = vmatprep.subr.mxu0 0.0
        %3825 = vmatpush1.msra.mxu0 0.0
        %3826 = vmatprep.subr.mxu0 0.0
        %3827 = vmatpush1.msra.mxu0 0.0
        %3828 = vmatprep.subr.mxu0 0.0
        %3829 = vmatpush1.msra.mxu0 0.0
        %3830 = vmatprep.subr.mxu0 0.0
        %3831 = vmatpush1.msra.mxu0 0.0
        %3832 = vmatprep.subr.mxu0 0.0
        %3833 = vmatpush1.msra.mxu0 0.0
        %3834 = vmatprep.subr.mxu0 0.0
        %3835 = vmatpush1.msra.mxu0 0.0
        %3836 = vmatprep.subr.mxu0 0.0
        %3837 = vmatpush1.msra.mxu0 0.0
        %3838 = vmatprep.subr.mxu0 0.0
        %3839 = vmatpush1.msra.mxu0 0.0
        %3840 = vmatprep.subr.mxu0 0.0
        %3841 = vmatpush1.msra.mxu0 0.0
        %3842 = vmatprep.subr.mxu0 0.0
        %3843 = vmatpush1.msra.mxu0 0.0
        %3844 = vmatprep.subr.mxu0 0.0
        %3845 = vmatpush1.msra.mxu0 0.0
        %3846 = vmatprep.subr.mxu0 0.0
        %3847 = vmatpush1.msra.mxu0 0.0
        %3848 = vmatprep.subr.mxu0 0.0
        %3849 = vmatpush1.msra.mxu0 0.0
        %3850 = vmatprep.subr.mxu0 0.0
        %3851 = vmatpush1.msra.mxu0 0.0
        %3852 = vmatprep.subr.mxu0 0.0
        %3853 = vmatpush1.msra.mxu0 0.0
        %3854 = vmatprep.subr.mxu0 0.0
        %3855 = vmatpush1.msra.mxu0 0.0
        %3856 = vmatprep.subr.mxu0 0.0
        %3857 = vmatpush1.msra.mxu0 0.0
        %3858 = vmatprep.mubr.f32.mxu0 0.0
        %3859 = vmatmul.mubr.f32.gmra.mrb[0].mxu0 %v3792
        %v3860 = vpop.f32.mrb[0].mxu0
        %v3861 = vadd.f32 %v3789, %v3860
        %v3862 = vpop.f32.mrb[0].mxu0
        %v3863 = vadd.f32 %v3789, %v3862
        %3864 = vdwg.mxu0
        %v3865 = vmax.f32 %v3861, 0.0
        %v3866 = vmax.f32 %v3863, 0.0
        %v3867 = vld [vmem:[%s7] sm:$0xff]
        %3870 = vrot.lane.b32.xlu0 %v3865, 127
        %v3871 = vpop.permute.xlu0 %3870
        %3872 = vrot.lane.b32.xlu0 %v3866, 127
        %v3873 = vpop.permute.xlu0 %3872
        %v3874 = vsel %vm640, %v3871, %v3873
        %3877 = vrot.lane.b32.xlu0 %v3865, 126
        %v3878 = vpop.permute.xlu0 %3877
        %3879 = vrot.lane.b32.xlu0 %v3866, 126
        %v3880 = vpop.permute.xlu0 %3879
        %v3881 = vsel %vm671, %v3878, %v3880
        %v3884 = vld [vmem:[%s8] sm:$0xff]
        %3886 = vset.pattern.permute.xlu0 0
        %3887 = vperm.xlu0 %3886, %v3884
        %v3888 = vpop.permute.xlu0 %3887
        %v3891 = vsel %vm883, %v3867, 0
        %3893 = vmatprep.subr.mxu0 %v3866
        %3894 = vmatpush1.msra.mxu0 %v3865
        %3895 = vmatprep.subr.mxu0 %v3873
        %3896 = vmatpush1.msra.mxu0 %v3874
        %3897 = vmatprep.subr.mxu0 %v3880
        %3898 = vmatpush1.msra.mxu0 %v3881
        %3899 = vmatprep.subr.mxu0 0.0
        %3900 = vmatpush1.msra.mxu0 0.0
        %3901 = vmatprep.subr.mxu0 0.0
        %3902 = vmatpush1.msra.mxu0 0.0
        %3903 = vmatprep.subr.mxu0 0.0
        %3904 = vmatpush1.msra.mxu0 0.0
        %3905 = vmatprep.subr.mxu0 0.0
        %3906 = vmatpush1.msra.mxu0 0.0
        %3907 = vmatprep.subr.mxu0 0.0
        %3908 = vmatpush1.msra.mxu0 0.0
        %3909 = vmatprep.subr.mxu0 0.0
        %3910 = vmatpush1.msra.mxu0 0.0
        %3911 = vmatprep.subr.mxu0 0.0
        %3912 = vmatpush1.msra.mxu0 0.0
        %3913 = vmatprep.subr.mxu0 0.0
        %3914 = vmatpush1.msra.mxu0 0.0
        %3915 = vmatprep.subr.mxu0 0.0
        %3916 = vmatpush1.msra.mxu0 0.0
        %3917 = vmatprep.subr.mxu0 0.0
        %3918 = vmatpush1.msra.mxu0 0.0
        %3919 = vmatprep.subr.mxu0 0.0
        %3920 = vmatpush1.msra.mxu0 0.0
        %3921 = vmatprep.subr.mxu0 0.0
        %3922 = vmatpush1.msra.mxu0 0.0
        %3923 = vmatprep.subr.mxu0 0.0
        %3924 = vmatpush1.msra.mxu0 0.0
        %3925 = vmatprep.subr.mxu0 0.0
        %3926 = vmatpush1.msra.mxu0 0.0
        %3927 = vmatprep.subr.mxu0 0.0
        %3928 = vmatpush1.msra.mxu0 0.0
        %3929 = vmatprep.subr.mxu0 0.0
        %3930 = vmatpush1.msra.mxu0 0.0
        %3931 = vmatprep.subr.mxu0 0.0
        %3932 = vmatpush1.msra.mxu0 0.0
        %3933 = vmatprep.subr.mxu0 0.0
        %3934 = vmatpush1.msra.mxu0 0.0
        %3935 = vmatprep.subr.mxu0 0.0
        %3936 = vmatpush1.msra.mxu0 0.0
        %3937 = vmatprep.subr.mxu0 0.0
        %3938 = vmatpush1.msra.mxu0 0.0
        %3939 = vmatprep.subr.mxu0 0.0
        %3940 = vmatpush1.msra.mxu0 0.0
        %3941 = vmatprep.subr.mxu0 0.0
        %3942 = vmatpush1.msra.mxu0 0.0
        %3943 = vmatprep.subr.mxu0 0.0
        %3944 = vmatpush1.msra.mxu0 0.0
        %3945 = vmatprep.subr.mxu0 0.0
        %3946 = vmatpush1.msra.mxu0 0.0
        %3947 = vmatprep.subr.mxu0 0.0
        %3948 = vmatpush1.msra.mxu0 0.0
        %3949 = vmatprep.subr.mxu0 0.0
        %3950 = vmatpush1.msra.mxu0 0.0
        %3951 = vmatprep.subr.mxu0 0.0
        %3952 = vmatpush1.msra.mxu0 0.0
        %3953 = vmatprep.subr.mxu0 0.0
        %3954 = vmatpush1.msra.mxu0 0.0
        %3955 = vmatprep.subr.mxu0 0.0
        %3956 = vmatpush1.msra.mxu0 0.0
        %3957 = vmatprep.mubr.f32.mxu0 0.0
        %3958 = vmatmul.mubr.f32.gmra.mrb[0].mxu0 %v3891
        %v3959 = vpop.f32.mrb[0].mxu0
        %v3960 = vadd.f32 %v3888, %v3959
        %v3961 = vpop.f32.mrb[0].mxu0
        %v3962 = vadd.f32 %v3888, %v3961
        %3963 = vdwg.mxu0
        %v3964 = vmax.f32 %v3960, 0.0
        %v3965 = vmax.f32 %v3962, 0.0
        %3966 = vst [vmem:[%s602] sm:$0xff] %v3964
        %3967 = vst.msk [vmem:[%s602 + $0x8] sm:$0xff] %vm1036, %v3965
        %3970 = vrot.lane.b32.xlu0 %v3964, 127
        %v3971 = vpop.permute.xlu0 %3970
        %3972 = vrot.lane.b32.xlu0 %v3965, 127
        %v3973 = vpop.permute.xlu0 %3972
        %v3974 = vsel %vm640, %v3971, %v3973
        %v3977 = vmax.f32 %v3964, %v3974
        %v3978 = vmax.f32 %v3965, %v3973
        %v3979 = vld [vmem:[%s14] sm:$0xff]
        %v3980 = vld [vmem:[%s14 + $0x8] sm:$0xff]
        %v3981 = vld [vmem:[%s14 + $0x10] sm:$0xff]
        %v3982 = vld [vmem:[%s14 + $0x18] sm:$0xff]
        %v3983 = vld [vmem:[%s14 + $0x20] sm:$0xff]
        %v3984 = vld [vmem:[%s14 + $0x28] sm:$0xff]
        %v3985 = vld [vmem:[%s14 + $0x30] sm:$0xff]
        %v3986 = vld [vmem:[%s14 + $0x38] sm:$0xff]
        %v3987 = vld [vmem:[%s14 + $0x40] sm:$0xff]
        %v3988 = vld [vmem:[%s14 + $0x48] sm:$0xff]
        %v3989 = vld [vmem:[%s14 + $0x50] sm:$0xff]
        %v3990 = vld [vmem:[%s14 + $0x58] sm:$0xff]
        %v3991 = vld [vmem:[%s14 + $0x60] sm:$0xff]
        %v3992 = vld [vmem:[%s14 + $0x68] sm:$0xff]
        %v3993 = vld [vmem:[%s14 + $0x70] sm:$0xff]
        %v3994 = vld [vmem:[%s14 + $0x78] sm:$0xff]
        %v3995 = vld [vmem:[%s14 + $0x80] sm:$0xff]
        %v3996 = vld [vmem:[%s14 + $0x88] sm:$0xff]
        %v3997 = vld [vmem:[%s14 + $0x90] sm:$0xff]
        %v3998 = vld [vmem:[%s14 + $0x98] sm:$0xff]
        %v3999 = vld [vmem:[%s14 + $0xa0] sm:$0xff]
        %v4000 = vld [vmem:[%s14 + $0xa8] sm:$0xff]
        %v4001 = vld [vmem:[%s14 + $0xb0] sm:$0xff]
        %v4002 = vld [vmem:[%s14 + $0xb8] sm:$0xff]
        %v4003 = vld [vmem:[%s14 + $0xc0] sm:$0xff]
        %v4004 = vld [vmem:[%s14 + $0xc8] sm:$0xff]
        %v4005 = vld [vmem:[%s14 + $0xd0] sm:$0xff]
        %v4006 = vld [vmem:[%s14 + $0xd8] sm:$0xff]
        %v4007 = vld [vmem:[%s14 + $0xe0] sm:$0xff]
        %v4008 = vld [vmem:[%s14 + $0xe8] sm:$0xff]
        %v4009 = vld [vmem:[%s14 + $0xf0] sm:$0xff]
        %v4010 = vld [vmem:[%s14 + $0xf8] sm:$0x7]
        %v4012 = vsel %vm1189, %v3978, 0
        %v4015 = vsel %vm1193, %v4010, 0
        %4017 = vmatprep.subr.mxu0 0.0
        %v4018 = vand.u32 %v3979, 4294901760
        %4019 = vmatpush1.msra.mxu0 %v4018
        %4020 = vmatprep.subr.mxu0 0.0
        %v4021 = vand.u32 %v3980, 4294901760
        %4022 = vmatpush1.msra.mxu0 %v4021
        %4023 = vmatprep.subr.mxu0 0.0
        %v4024 = vand.u32 %v3981, 4294901760
        %4025 = vmatpush1.msra.mxu0 %v4024
        %4026 = vmatprep.subr.mxu0 0.0
        %v4027 = vand.u32 %v3982, 4294901760
        %4028 = vmatpush1.msra.mxu0 %v4027
        %4029 = vmatprep.subr.mxu0 0.0
        %v4030 = vand.u32 %v3983, 4294901760
        %4031 = vmatpush1.msra.mxu0 %v4030
        %4032 = vmatprep.subr.mxu0 0.0
        %v4033 = vand.u32 %v3984, 4294901760
        %4034 = vmatpush1.msra.mxu0 %v4033
        %4035 = vmatprep.subr.mxu0 0.0
        %v4036 = vand.u32 %v3985, 4294901760
        %4037 = vmatpush1.msra.mxu0 %v4036
        %4038 = vmatprep.subr.mxu0 0.0
        %v4039 = vand.u32 %v3986, 4294901760
        %4040 = vmatpush1.msra.mxu0 %v4039
        %4041 = vmatprep.subr.mxu0 0.0
        %v4042 = vand.u32 %v3987, 4294901760
        %4043 = vmatpush1.msra.mxu0 %v4042
        %4044 = vmatprep.subr.mxu0 0.0
        %v4045 = vand.u32 %v3988, 4294901760
        %4046 = vmatpush1.msra.mxu0 %v4045
        %4047 = vmatprep.subr.mxu0 0.0
        %v4048 = vand.u32 %v3989, 4294901760
        %4049 = vmatpush1.msra.mxu0 %v4048
        %4050 = vmatprep.subr.mxu0 0.0
        %v4051 = vand.u32 %v3990, 4294901760
        %4052 = vmatpush1.msra.mxu0 %v4051
        %4053 = vmatprep.subr.mxu0 0.0
        %v4054 = vand.u32 %v3991, 4294901760
        %4055 = vmatpush1.msra.mxu0 %v4054
        %4056 = vmatprep.subr.mxu0 0.0
        %v4057 = vand.u32 %v3992, 4294901760
        %4058 = vmatpush1.msra.mxu0 %v4057
        %4059 = vmatprep.subr.mxu0 0.0
        %v4060 = vand.u32 %v3993, 4294901760
        %4061 = vmatpush1.msra.mxu0 %v4060
        %4062 = vmatprep.subr.mxu0 0.0
        %v4063 = vand.u32 %v3994, 4294901760
        %4064 = vmatpush1.msra.mxu0 %v4063
        %4065 = vmatprep.subr.mxu0 0.0
        %v4066 = vand.u32 %v3995, 4294901760
        %4067 = vmatpush1.msra.mxu0 %v4066
        %4068 = vmatprep.subr.mxu0 0.0
        %v4069 = vand.u32 %v3996, 4294901760
        %4070 = vmatpush1.msra.mxu0 %v4069
        %4071 = vmatprep.subr.mxu0 0.0
        %v4072 = vand.u32 %v3997, 4294901760
        %4073 = vmatpush1.msra.mxu0 %v4072
        %4074 = vmatprep.subr.mxu0 0.0
        %v4075 = vand.u32 %v3998, 4294901760
        %4076 = vmatpush1.msra.mxu0 %v4075
        %4077 = vmatprep.subr.mxu0 0.0
        %v4078 = vand.u32 %v3999, 4294901760
        %4079 = vmatpush1.msra.mxu0 %v4078
        %4080 = vmatprep.subr.mxu0 0.0
        %v4081 = vand.u32 %v4000, 4294901760
        %4082 = vmatpush1.msra.mxu0 %v4081
        %4083 = vmatprep.subr.mxu0 0.0
        %v4084 = vand.u32 %v4001, 4294901760
        %4085 = vmatpush1.msra.mxu0 %v4084
        %4086 = vmatprep.subr.mxu0 0.0
        %v4087 = vand.u32 %v4002, 4294901760
        %4088 = vmatpush1.msra.mxu0 %v4087
        %4089 = vmatprep.subr.mxu0 0.0
        %v4090 = vand.u32 %v4003, 4294901760
        %4091 = vmatpush1.msra.mxu0 %v4090
        %4092 = vmatprep.subr.mxu0 0.0
        %v4093 = vand.u32 %v4004, 4294901760
        %4094 = vmatpush1.msra.mxu0 %v4093
        %4095 = vmatprep.subr.mxu0 0.0
        %v4096 = vand.u32 %v4005, 4294901760
        %4097 = vmatpush1.msra.mxu0 %v4096
        %4098 = vmatprep.subr.mxu0 0.0
        %v4099 = vand.u32 %v4006, 4294901760
        %4100 = vmatpush1.msra.mxu0 %v4099
        %4101 = vmatprep.subr.mxu0 0.0
        %v4102 = vand.u32 %v4007, 4294901760
        %4103 = vmatpush1.msra.mxu0 %v4102
        %4104 = vmatprep.subr.mxu0 0.0
        %v4105 = vand.u32 %v4008, 4294901760
        %4106 = vmatpush1.msra.mxu0 %v4105
        %4107 = vmatprep.subr.mxu0 0.0
        %v4108 = vand.u32 %v4009, 4294901760
        %4109 = vmatpush1.msra.mxu0 %v4108
        %4110 = vmatprep.subr.mxu0 0.0
        %v4111 = vand.u32 %v4015, 4294901760
        %4112 = vmatpush1.msra.mxu0 %v4111
        %v4113 = vand.u32 %v4012, 4294901760
        %v4114 = vsub.f32 %v4012, %v4113
        %v4115 = vand.u32 %v4114, 4294901760
        %v4116 = vsub.f32 %v4114, %v4115
        %v4117 = vand.u32 %v4116, 4294901760
        %4118 = vmatprep.mubr.f32.mxu0 %v4117
        %v4119 = vand.u32 %v3977, 4294901760
        %v4120 = vsub.f32 %v3977, %v4119
        %v4121 = vand.u32 %v4120, 4294901760
        %v4122 = vsub.f32 %v4120, %v4121
        %v4123 = vand.u32 %v4122, 4294901760
        %4124 = vmatmul.mubr.f32.gmra.mrb[0].mxu0 %v4123
        %v4125 = vpop.f32.mrb[0].mxu0
        %v4126 = vadd.f32 0.0, %v4125
        %v4127 = vpop.f32.mrb[0].mxu0
        %4128 = vdwg.mxu0
        %4129 = vmatprep.subr.mxu0 0.0
        %v4130 = vand.u32 %v3979, 4294901760
        %v4131 = vsub.f32 %v3979, %v4130
        %v4132 = vand.u32 %v4131, 4294901760
        %v4133 = vsub.f32 %v4131, %v4132
        %v4134 = vand.u32 %v4133, 4294901760
        %4135 = vmatpush1.msra.mxu0 %v4134
        %4136 = vmatprep.subr.mxu0 0.0
        %v4137 = vand.u32 %v3980, 4294901760
        %v4138 = vsub.f32 %v3980, %v4137
        %v4139 = vand.u32 %v4138, 4294901760
        %v4140 = vsub.f32 %v4138, %v4139
        %v4141 = vand.u32 %v4140, 4294901760
        %4142 = vmatpush1.msra.mxu0 %v4141
        %4143 = vmatprep.subr.mxu0 0.0
        %v4144 = vand.u32 %v3981, 4294901760
        %v4145 = vsub.f32 %v3981, %v4144
        %v4146 = vand.u32 %v4145, 4294901760
        %v4147 = vsub.f32 %v4145, %v4146
        %v4148 = vand.u32 %v4147, 4294901760
        %4149 = vmatpush1.msra.mxu0 %v4148
        %4150 = vmatprep.subr.mxu0 0.0
        %v4151 = vand.u32 %v3982, 4294901760
        %v4152 = vsub.f32 %v3982, %v4151
        %v4153 = vand.u32 %v4152, 4294901760
        %v4154 = vsub.f32 %v4152, %v4153
        %v4155 = vand.u32 %v4154, 4294901760
        %4156 = vmatpush1.msra.mxu0 %v4155
        %4157 = vmatprep.subr.mxu0 0.0
        %v4158 = vand.u32 %v3983, 4294901760
        %v4159 = vsub.f32 %v3983, %v4158
        %v4160 = vand.u32 %v4159, 4294901760
        %v4161 = vsub.f32 %v4159, %v4160
        %v4162 = vand.u32 %v4161, 4294901760
        %4163 = vmatpush1.msra.mxu0 %v4162
        %4164 = vmatprep.subr.mxu0 0.0
        %v4165 = vand.u32 %v3984, 4294901760
        %v4166 = vsub.f32 %v3984, %v4165
        %v4167 = vand.u32 %v4166, 4294901760
        %v4168 = vsub.f32 %v4166, %v4167
        %v4169 = vand.u32 %v4168, 4294901760
        %4170 = vmatpush1.msra.mxu0 %v4169
        %4171 = vmatprep.subr.mxu0 0.0
        %v4172 = vand.u32 %v3985, 4294901760
        %v4173 = vsub.f32 %v3985, %v4172
        %v4174 = vand.u32 %v4173, 4294901760
        %v4175 = vsub.f32 %v4173, %v4174
        %v4176 = vand.u32 %v4175, 4294901760
        %4177 = vmatpush1.msra.mxu0 %v4176
        %4178 = vmatprep.subr.mxu0 0.0
        %v4179 = vand.u32 %v3986, 4294901760
        %v4180 = vsub.f32 %v3986, %v4179
        %v4181 = vand.u32 %v4180, 4294901760
        %v4182 = vsub.f32 %v4180, %v4181
        %v4183 = vand.u32 %v4182, 4294901760
        %4184 = vmatpush1.msra.mxu0 %v4183
        %4185 = vmatprep.subr.mxu0 0.0
        %v4186 = vand.u32 %v3987, 4294901760
        %v4187 = vsub.f32 %v3987, %v4186
        %v4188 = vand.u32 %v4187, 4294901760
        %v4189 = vsub.f32 %v4187, %v4188
        %v4190 = vand.u32 %v4189, 4294901760
        %4191 = vmatpush1.msra.mxu0 %v4190
        %4192 = vmatprep.subr.mxu0 0.0
        %v4193 = vand.u32 %v3988, 4294901760
        %v4194 = vsub.f32 %v3988, %v4193
        %v4195 = vand.u32 %v4194, 4294901760
        %v4196 = vsub.f32 %v4194, %v4195
        %v4197 = vand.u32 %v4196, 4294901760
        %4198 = vmatpush1.msra.mxu0 %v4197
        %4199 = vmatprep.subr.mxu0 0.0
        %v4200 = vand.u32 %v3989, 4294901760
        %v4201 = vsub.f32 %v3989, %v4200
        %v4202 = vand.u32 %v4201, 4294901760
        %v4203 = vsub.f32 %v4201, %v4202
        %v4204 = vand.u32 %v4203, 4294901760
        %4205 = vmatpush1.msra.mxu0 %v4204
        %4206 = vmatprep.subr.mxu0 0.0
        %v4207 = vand.u32 %v3990, 4294901760
        %v4208 = vsub.f32 %v3990, %v4207
        %v4209 = vand.u32 %v4208, 4294901760
        %v4210 = vsub.f32 %v4208, %v4209
        %v4211 = vand.u32 %v4210, 4294901760
        %4212 = vmatpush1.msra.mxu0 %v4211
        %4213 = vmatprep.subr.mxu0 0.0
        %v4214 = vand.u32 %v3991, 4294901760
        %v4215 = vsub.f32 %v3991, %v4214
        %v4216 = vand.u32 %v4215, 4294901760
        %v4217 = vsub.f32 %v4215, %v4216
        %v4218 = vand.u32 %v4217, 4294901760
        %4219 = vmatpush1.msra.mxu0 %v4218
        %4220 = vmatprep.subr.mxu0 0.0
        %v4221 = vand.u32 %v3992, 4294901760
        %v4222 = vsub.f32 %v3992, %v4221
        %v4223 = vand.u32 %v4222, 4294901760
        %v4224 = vsub.f32 %v4222, %v4223
        %v4225 = vand.u32 %v4224, 4294901760
        %4226 = vmatpush1.msra.mxu0 %v4225
        %4227 = vmatprep.subr.mxu0 0.0
        %v4228 = vand.u32 %v3993, 4294901760
        %v4229 = vsub.f32 %v3993, %v4228
        %v4230 = vand.u32 %v4229, 4294901760
        %v4231 = vsub.f32 %v4229, %v4230
        %v4232 = vand.u32 %v4231, 4294901760
        %4233 = vmatpush1.msra.mxu0 %v4232
        %4234 = vmatprep.subr.mxu0 0.0
        %v4235 = vand.u32 %v3994, 4294901760
        %v4236 = vsub.f32 %v3994, %v4235
        %v4237 = vand.u32 %v4236, 4294901760
        %v4238 = vsub.f32 %v4236, %v4237
        %v4239 = vand.u32 %v4238, 4294901760
        %4240 = vmatpush1.msra.mxu0 %v4239
        %4241 = vmatprep.subr.mxu0 0.0
        %v4242 = vand.u32 %v3995, 4294901760
        %v4243 = vsub.f32 %v3995, %v4242
        %v4244 = vand.u32 %v4243, 4294901760
        %v4245 = vsub.f32 %v4243, %v4244
        %v4246 = vand.u32 %v4245, 4294901760
        %4247 = vmatpush1.msra.mxu0 %v4246
        %4248 = vmatprep.subr.mxu0 0.0
        %v4249 = vand.u32 %v3996, 4294901760
        %v4250 = vsub.f32 %v3996, %v4249
        %v4251 = vand.u32 %v4250, 4294901760
        %v4252 = vsub.f32 %v4250, %v4251
        %v4253 = vand.u32 %v4252, 4294901760
        %4254 = vmatpush1.msra.mxu0 %v4253
        %4255 = vmatprep.subr.mxu0 0.0
        %v4256 = vand.u32 %v3997, 4294901760
        %v4257 = vsub.f32 %v3997, %v4256
        %v4258 = vand.u32 %v4257, 4294901760
        %v4259 = vsub.f32 %v4257, %v4258
        %v4260 = vand.u32 %v4259, 4294901760
        %4261 = vmatpush1.msra.mxu0 %v4260
        %4262 = vmatprep.subr.mxu0 0.0
        %v4263 = vand.u32 %v3998, 4294901760
        %v4264 = vsub.f32 %v3998, %v4263
        %v4265 = vand.u32 %v4264, 4294901760
        %v4266 = vsub.f32 %v4264, %v4265
        %v4267 = vand.u32 %v4266, 4294901760
        %4268 = vmatpush1.msra.mxu0 %v4267
        %4269 = vmatprep.subr.mxu0 0.0
        %v4270 = vand.u32 %v3999, 4294901760
        %v4271 = vsub.f32 %v3999, %v4270
        %v4272 = vand.u32 %v4271, 4294901760
        %v4273 = vsub.f32 %v4271, %v4272
        %v4274 = vand.u32 %v4273, 4294901760
        %4275 = vmatpush1.msra.mxu0 %v4274
        %4276 = vmatprep.subr.mxu0 0.0
        %v4277 = vand.u32 %v4000, 4294901760
        %v4278 = vsub.f32 %v4000, %v4277
        %v4279 = vand.u32 %v4278, 4294901760
        %v4280 = vsub.f32 %v4278, %v4279
        %v4281 = vand.u32 %v4280, 4294901760
        %4282 = vmatpush1.msra.mxu0 %v4281
        %4283 = vmatprep.subr.mxu0 0.0
        %v4284 = vand.u32 %v4001, 4294901760
        %v4285 = vsub.f32 %v4001, %v4284
        %v4286 = vand.u32 %v4285, 4294901760
        %v4287 = vsub.f32 %v4285, %v4286
        %v4288 = vand.u32 %v4287, 4294901760
        %4289 = vmatpush1.msra.mxu0 %v4288
        %4290 = vmatprep.subr.mxu0 0.0
        %v4291 = vand.u32 %v4002, 4294901760
        %v4292 = vsub.f32 %v4002, %v4291
        %v4293 = vand.u32 %v4292, 4294901760
        %v4294 = vsub.f32 %v4292, %v4293
        %v4295 = vand.u32 %v4294, 4294901760
        %4296 = vmatpush1.msra.mxu0 %v4295
        %4297 = vmatprep.subr.mxu0 0.0
        %v4298 = vand.u32 %v4003, 4294901760
        %v4299 = vsub.f32 %v4003, %v4298
        %v4300 = vand.u32 %v4299, 4294901760
        %v4301 = vsub.f32 %v4299, %v4300
        %v4302 = vand.u32 %v4301, 4294901760
        %4303 = vmatpush1.msra.mxu0 %v4302
        %4304 = vmatprep.subr.mxu0 0.0
        %v4305 = vand.u32 %v4004, 4294901760
        %v4306 = vsub.f32 %v4004, %v4305
        %v4307 = vand.u32 %v4306, 4294901760
        %v4308 = vsub.f32 %v4306, %v4307
        %v4309 = vand.u32 %v4308, 4294901760
        %4310 = vmatpush1.msra.mxu0 %v4309
        %4311 = vmatprep.subr.mxu0 0.0
        %v4312 = vand.u32 %v4005, 4294901760
        %v4313 = vsub.f32 %v4005, %v4312
        %v4314 = vand.u32 %v4313, 4294901760
        %v4315 = vsub.f32 %v4313, %v4314
        %v4316 = vand.u32 %v4315, 4294901760
        %4317 = vmatpush1.msra.mxu0 %v4316
        %4318 = vmatprep.subr.mxu0 0.0
        %v4319 = vand.u32 %v4006, 4294901760
        %v4320 = vsub.f32 %v4006, %v4319
        %v4321 = vand.u32 %v4320, 4294901760
        %v4322 = vsub.f32 %v4320, %v4321
        %v4323 = vand.u32 %v4322, 4294901760
        %4324 = vmatpush1.msra.mxu0 %v4323
        %4325 = vmatprep.subr.mxu0 0.0
        %v4326 = vand.u32 %v4007, 4294901760
        %v4327 = vsub.f32 %v4007, %v4326
        %v4328 = vand.u32 %v4327, 4294901760
        %v4329 = vsub.f32 %v4327, %v4328
        %v4330 = vand.u32 %v4329, 4294901760
        %4331 = vmatpush1.msra.mxu0 %v4330
        %4332 = vmatprep.subr.mxu0 0.0
        %v4333 = vand.u32 %v4008, 4294901760
        %v4334 = vsub.f32 %v4008, %v4333
        %v4335 = vand.u32 %v4334, 4294901760
        %v4336 = vsub.f32 %v4334, %v4335
        %v4337 = vand.u32 %v4336, 4294901760
        %4338 = vmatpush1.msra.mxu0 %v4337
        %4339 = vmatprep.subr.mxu0 0.0
        %v4340 = vand.u32 %v4009, 4294901760
        %v4341 = vsub.f32 %v4009, %v4340
        %v4342 = vand.u32 %v4341, 4294901760
        %v4343 = vsub.f32 %v4341, %v4342
        %v4344 = vand.u32 %v4343, 4294901760
        %4345 = vmatpush1.msra.mxu0 %v4344
        %4346 = vmatprep.subr.mxu0 0.0
        %v4347 = vand.u32 %v4015, 4294901760
        %v4348 = vsub.f32 %v4015, %v4347
        %v4349 = vand.u32 %v4348, 4294901760
        %v4350 = vsub.f32 %v4348, %v4349
        %v4351 = vand.u32 %v4350, 4294901760
        %4352 = vmatpush1.msra.mxu0 %v4351
        %v4353 = vand.u32 %v4012, 4294901760
        %4354 = vmatprep.mubr.f32.mxu0 %v4353
        %v4355 = vand.u32 %v3977, 4294901760
        %4356 = vmatmul.mubr.f32.gmra.mrb[0].mxu0 %v4355
        %v4357 = vpop.f32.mrb[0].mxu0
        %v4358 = vadd.f32 %v4126, %v4357
        %v4359 = vpop.f32.mrb[0].mxu0
        %4360 = vdwg.mxu0
        %4361 = vmatprep.subr.mxu0 0.0
        %v4362 = vand.u32 %v3979, 4294901760
        %v4363 = vsub.f32 %v3979, %v4362
        %4364 = vmatpush1.msra.mxu0 %v4363
        %4365 = vmatprep.subr.mxu0 0.0
        %v4366 = vand.u32 %v3980, 4294901760
        %v4367 = vsub.f32 %v3980, %v4366
        %4368 = vmatpush1.msra.mxu0 %v4367
        %4369 = vmatprep.subr.mxu0 0.0
        %v4370 = vand.u32 %v3981, 4294901760
        %v4371 = vsub.f32 %v3981, %v4370
        %4372 = vmatpush1.msra.mxu0 %v4371
        %4373 = vmatprep.subr.mxu0 0.0
        %v4374 = vand.u32 %v3982, 4294901760
        %v4375 = vsub.f32 %v3982, %v4374
        %4376 = vmatpush1.msra.mxu0 %v4375
        %4377 = vmatprep.subr.mxu0 0.0
        %v4378 = vand.u32 %v3983, 4294901760
        %v4379 = vsub.f32 %v3983, %v4378
        %4380 = vmatpush1.msra.mxu0 %v4379
        %4381 = vmatprep.subr.mxu0 0.0
        %v4382 = vand.u32 %v3984, 4294901760
        %v4383 = vsub.f32 %v3984, %v4382
        %4384 = vmatpush1.msra.mxu0 %v4383
        %4385 = vmatprep.subr.mxu0 0.0
        %v4386 = vand.u32 %v3985, 4294901760
        %v4387 = vsub.f32 %v3985, %v4386
        %4388 = vmatpush1.msra.mxu0 %v4387
        %4389 = vmatprep.subr.mxu0 0.0
        %v4390 = vand.u32 %v3986, 4294901760
        %v4391 = vsub.f32 %v3986, %v4390
        %4392 = vmatpush1.msra.mxu0 %v4391
        %4393 = vmatprep.subr.mxu0 0.0
        %v4394 = vand.u32 %v3987, 4294901760
        %v4395 = vsub.f32 %v3987, %v4394
        %4396 = vmatpush1.msra.mxu0 %v4395
        %4397 = vmatprep.subr.mxu0 0.0
        %v4398 = vand.u32 %v3988, 4294901760
        %v4399 = vsub.f32 %v3988, %v4398
        %4400 = vmatpush1.msra.mxu0 %v4399
        %4401 = vmatprep.subr.mxu0 0.0
        %v4402 = vand.u32 %v3989, 4294901760
        %v4403 = vsub.f32 %v3989, %v4402
        %4404 = vmatpush1.msra.mxu0 %v4403
        %4405 = vmatprep.subr.mxu0 0.0
        %v4406 = vand.u32 %v3990, 4294901760
        %v4407 = vsub.f32 %v3990, %v4406
        %4408 = vmatpush1.msra.mxu0 %v4407
        %4409 = vmatprep.subr.mxu0 0.0
        %v4410 = vand.u32 %v3991, 4294901760
        %v4411 = vsub.f32 %v3991, %v4410
        %4412 = vmatpush1.msra.mxu0 %v4411
        %4413 = vmatprep.subr.mxu0 0.0
        %v4414 = vand.u32 %v3992, 4294901760
        %v4415 = vsub.f32 %v3992, %v4414
        %4416 = vmatpush1.msra.mxu0 %v4415
        %4417 = vmatprep.subr.mxu0 0.0
        %v4418 = vand.u32 %v3993, 4294901760
        %v4419 = vsub.f32 %v3993, %v4418
        %4420 = vmatpush1.msra.mxu0 %v4419
        %4421 = vmatprep.subr.mxu0 0.0
        %v4422 = vand.u32 %v3994, 4294901760
        %v4423 = vsub.f32 %v3994, %v4422
        %4424 = vmatpush1.msra.mxu0 %v4423
        %4425 = vmatprep.subr.mxu0 0.0
        %v4426 = vand.u32 %v3995, 4294901760
        %v4427 = vsub.f32 %v3995, %v4426
        %4428 = vmatpush1.msra.mxu0 %v4427
        %4429 = vmatprep.subr.mxu0 0.0
        %v4430 = vand.u32 %v3996, 4294901760
        %v4431 = vsub.f32 %v3996, %v4430
        %4432 = vmatpush1.msra.mxu0 %v4431
        %4433 = vmatprep.subr.mxu0 0.0
        %v4434 = vand.u32 %v3997, 4294901760
        %v4435 = vsub.f32 %v3997, %v4434
        %4436 = vmatpush1.msra.mxu0 %v4435
        %4437 = vmatprep.subr.mxu0 0.0
        %v4438 = vand.u32 %v3998, 4294901760
        %v4439 = vsub.f32 %v3998, %v4438
        %4440 = vmatpush1.msra.mxu0 %v4439
        %4441 = vmatprep.subr.mxu0 0.0
        %v4442 = vand.u32 %v3999, 4294901760
        %v4443 = vsub.f32 %v3999, %v4442
        %4444 = vmatpush1.msra.mxu0 %v4443
        %4445 = vmatprep.subr.mxu0 0.0
        %v4446 = vand.u32 %v4000, 4294901760
        %v4447 = vsub.f32 %v4000, %v4446
        %4448 = vmatpush1.msra.mxu0 %v4447
        %4449 = vmatprep.subr.mxu0 0.0
        %v4450 = vand.u32 %v4001, 4294901760
        %v4451 = vsub.f32 %v4001, %v4450
        %4452 = vmatpush1.msra.mxu0 %v4451
        %4453 = vmatprep.subr.mxu0 0.0
        %v4454 = vand.u32 %v4002, 4294901760
        %v4455 = vsub.f32 %v4002, %v4454
        %4456 = vmatpush1.msra.mxu0 %v4455
        %4457 = vmatprep.subr.mxu0 0.0
        %v4458 = vand.u32 %v4003, 4294901760
        %v4459 = vsub.f32 %v4003, %v4458
        %4460 = vmatpush1.msra.mxu0 %v4459
        %4461 = vmatprep.subr.mxu0 0.0
        %v4462 = vand.u32 %v4004, 4294901760
        %v4463 = vsub.f32 %v4004, %v4462
        %4464 = vmatpush1.msra.mxu0 %v4463
        %4465 = vmatprep.subr.mxu0 0.0
        %v4466 = vand.u32 %v4005, 4294901760
        %v4467 = vsub.f32 %v4005, %v4466
        %4468 = vmatpush1.msra.mxu0 %v4467
        %4469 = vmatprep.subr.mxu0 0.0
        %v4470 = vand.u32 %v4006, 4294901760
        %v4471 = vsub.f32 %v4006, %v4470
        %4472 = vmatpush1.msra.mxu0 %v4471
        %4473 = vmatprep.subr.mxu0 0.0
        %v4474 = vand.u32 %v4007, 4294901760
        %v4475 = vsub.f32 %v4007, %v4474
        %4476 = vmatpush1.msra.mxu0 %v4475
        %4477 = vmatprep.subr.mxu0 0.0
        %v4478 = vand.u32 %v4008, 4294901760
        %v4479 = vsub.f32 %v4008, %v4478
        %4480 = vmatpush1.msra.mxu0 %v4479
        %4481 = vmatprep.subr.mxu0 0.0
        %v4482 = vand.u32 %v4009, 4294901760
        %v4483 = vsub.f32 %v4009, %v4482
        %4484 = vmatpush1.msra.mxu0 %v4483
        %4485 = vmatprep.subr.mxu0 0.0
        %v4486 = vand.u32 %v4015, 4294901760
        %v4487 = vsub.f32 %v4015, %v4486
        %4488 = vmatpush1.msra.mxu0 %v4487
        %v4489 = vand.u32 %v4012, 4294901760
        %v4490 = vsub.f32 %v4012, %v4489
        %4491 = vmatprep.mubr.f32.mxu0 %v4490
        %v4492 = vand.u32 %v3977, 4294901760
        %v4493 = vsub.f32 %v3977, %v4492
        %4494 = vmatmul.mubr.f32.gmra.mrb[0].mxu0 %v4493
        %v4495 = vpop.f32.mrb[0].mxu0
        %v4496 = vadd.f32 %v4358, %v4495
        %v4497 = vpop.f32.mrb[0].mxu0
        %4498 = vdwg.mxu0
        %4499 = vmatprep.subr.mxu0 0.0
        %v4500 = vand.u32 %v3979, 4294901760
        %4501 = vmatpush1.msra.mxu0 %v4500
        %4502 = vmatprep.subr.mxu0 0.0
        %v4503 = vand.u32 %v3980, 4294901760
        %4504 = vmatpush1.msra.mxu0 %v4503
        %4505 = vmatprep.subr.mxu0 0.0
        %v4506 = vand.u32 %v3981, 4294901760
        %4507 = vmatpush1.msra.mxu0 %v4506
        %4508 = vmatprep.subr.mxu0 0.0
        %v4509 = vand.u32 %v3982, 4294901760
        %4510 = vmatpush1.msra.mxu0 %v4509
        %4511 = vmatprep.subr.mxu0 0.0
        %v4512 = vand.u32 %v3983, 4294901760
        %4513 = vmatpush1.msra.mxu0 %v4512
        %4514 = vmatprep.subr.mxu0 0.0
        %v4515 = vand.u32 %v3984, 4294901760
        %4516 = vmatpush1.msra.mxu0 %v4515
        %4517 = vmatprep.subr.mxu0 0.0
        %v4518 = vand.u32 %v3985, 4294901760
        %4519 = vmatpush1.msra.mxu0 %v4518
        %4520 = vmatprep.subr.mxu0 0.0
        %v4521 = vand.u32 %v3986, 4294901760
        %4522 = vmatpush1.msra.mxu0 %v4521
        %4523 = vmatprep.subr.mxu0 0.0
        %v4524 = vand.u32 %v3987, 4294901760
        %4525 = vmatpush1.msra.mxu0 %v4524
        %4526 = vmatprep.subr.mxu0 0.0
        %v4527 = vand.u32 %v3988, 4294901760
        %4528 = vmatpush1.msra.mxu0 %v4527
        %4529 = vmatprep.subr.mxu0 0.0
        %v4530 = vand.u32 %v3989, 4294901760
        %4531 = vmatpush1.msra.mxu0 %v4530
        %4532 = vmatprep.subr.mxu0 0.0
        %v4533 = vand.u32 %v3990, 4294901760
        %4534 = vmatpush1.msra.mxu0 %v4533
        %4535 = vmatprep.subr.mxu0 0.0
        %v4536 = vand.u32 %v3991, 4294901760
        %4537 = vmatpush1.msra.mxu0 %v4536
        %4538 = vmatprep.subr.mxu0 0.0
        %v4539 = vand.u32 %v3992, 4294901760
        %4540 = vmatpush1.msra.mxu0 %v4539
        %4541 = vmatprep.subr.mxu0 0.0
        %v4542 = vand.u32 %v3993, 4294901760
        %4543 = vmatpush1.msra.mxu0 %v4542
        %4544 = vmatprep.subr.mxu0 0.0
        %v4545 = vand.u32 %v3994, 4294901760
        %4546 = vmatpush1.msra.mxu0 %v4545
        %4547 = vmatprep.subr.mxu0 0.0
        %v4548 = vand.u32 %v3995, 4294901760
        %4549 = vmatpush1.msra.mxu0 %v4548
        %4550 = vmatprep.subr.mxu0 0.0
        %v4551 = vand.u32 %v3996, 4294901760
        %4552 = vmatpush1.msra.mxu0 %v4551
        %4553 = vmatprep.subr.mxu0 0.0
        %v4554 = vand.u32 %v3997, 4294901760
        %4555 = vmatpush1.msra.mxu0 %v4554
        %4556 = vmatprep.subr.mxu0 0.0
        %v4557 = vand.u32 %v3998, 4294901760
        %4558 = vmatpush1.msra.mxu0 %v4557
        %4559 = vmatprep.subr.mxu0 0.0
        %v4560 = vand.u32 %v3999, 4294901760
        %4561 = vmatpush1.msra.mxu0 %v4560
        %4562 = vmatprep.subr.mxu0 0.0
        %v4563 = vand.u32 %v4000, 4294901760
        %4564 = vmatpush1.msra.mxu0 %v4563
        %4565 = vmatprep.subr.mxu0 0.0
        %v4566 = vand.u32 %v4001, 4294901760
        %4567 = vmatpush1.msra.mxu0 %v4566
        %4568 = vmatprep.subr.mxu0 0.0
        %v4569 = vand.u32 %v4002, 4294901760
        %4570 = vmatpush1.msra.mxu0 %v4569
        %4571 = vmatprep.subr.mxu0 0.0
        %v4572 = vand.u32 %v4003, 4294901760
        %4573 = vmatpush1.msra.mxu0 %v4572
        %4574 = vmatprep.subr.mxu0 0.0
        %v4575 = vand.u32 %v4004, 4294901760
        %4576 = vmatpush1.msra.mxu0 %v4575
        %4577 = vmatprep.subr.mxu0 0.0
        %v4578 = vand.u32 %v4005, 4294901760
        %4579 = vmatpush1.msra.mxu0 %v4578
        %4580 = vmatprep.subr.mxu0 0.0
        %v4581 = vand.u32 %v4006, 4294901760
        %4582 = vmatpush1.msra.mxu0 %v4581
        %4583 = vmatprep.subr.mxu0 0.0
        %v4584 = vand.u32 %v4007, 4294901760
        %4585 = vmatpush1.msra.mxu0 %v4584
        %4586 = vmatprep.subr.mxu0 0.0
        %v4587 = vand.u32 %v4008, 4294901760
        %4588 = vmatpush1.msra.mxu0 %v4587
        %4589 = vmatprep.subr.mxu0 0.0
        %v4590 = vand.u32 %v4009, 4294901760
        %4591 = vmatpush1.msra.mxu0 %v4590
        %4592 = vmatprep.subr.mxu0 0.0
        %v4593 = vand.u32 %v4015, 4294901760
        %4594 = vmatpush1.msra.mxu0 %v4593
        %v4595 = vand.u32 %v4012, 4294901760
        %v4596 = vsub.f32 %v4012, %v4595
        %v4597 = vand.u32 %v4596, 4294901760
        %4598 = vmatprep.mubr.f32.mxu0 %v4597
        %v4599 = vand.u32 %v3977, 4294901760
        %v4600 = vsub.f32 %v3977, %v4599
        %v4601 = vand.u32 %v4600, 4294901760
        %4602 = vmatmul.mubr.f32.gmra.mrb[0].mxu0 %v4601
        %v4603 = vpop.f32.mrb[0].mxu0
        %v4604 = vadd.f32 %v4496, %v4603
        %v4605 = vpop.f32.mrb[0].mxu0
        %4606 = vdwg.mxu0
        %4607 = vmatprep.subr.mxu0 0.0
        %v4608 = vand.u32 %v3979, 4294901760
        %v4609 = vsub.f32 %v3979, %v4608
        %v4610 = vand.u32 %v4609, 4294901760
        %4611 = vmatpush1.msra.mxu0 %v4610
        %4612 = vmatprep.subr.mxu0 0.0
        %v4613 = vand.u32 %v3980, 4294901760
        %v4614 = vsub.f32 %v3980, %v4613
        %v4615 = vand.u32 %v4614, 4294901760
        %4616 = vmatpush1.msra.mxu0 %v4615
        %4617 = vmatprep.subr.mxu0 0.0
        %v4618 = vand.u32 %v3981, 4294901760
        %v4619 = vsub.f32 %v3981, %v4618
        %v4620 = vand.u32 %v4619, 4294901760
        %4621 = vmatpush1.msra.mxu0 %v4620
        %4622 = vmatprep.subr.mxu0 0.0
        %v4623 = vand.u32 %v3982, 4294901760
        %v4624 = vsub.f32 %v3982, %v4623
        %v4625 = vand.u32 %v4624, 4294901760
        %4626 = vmatpush1.msra.mxu0 %v4625
        %4627 = vmatprep.subr.mxu0 0.0
        %v4628 = vand.u32 %v3983, 4294901760
        %v4629 = vsub.f32 %v3983, %v4628
        %v4630 = vand.u32 %v4629, 4294901760
        %4631 = vmatpush1.msra.mxu0 %v4630
        %4632 = vmatprep.subr.mxu0 0.0
        %v4633 = vand.u32 %v3984, 4294901760
        %v4634 = vsub.f32 %v3984, %v4633
        %v4635 = vand.u32 %v4634, 4294901760
        %4636 = vmatpush1.msra.mxu0 %v4635
        %4637 = vmatprep.subr.mxu0 0.0
        %v4638 = vand.u32 %v3985, 4294901760
        %v4639 = vsub.f32 %v3985, %v4638
        %v4640 = vand.u32 %v4639, 4294901760
        %4641 = vmatpush1.msra.mxu0 %v4640
        %4642 = vmatprep.subr.mxu0 0.0
        %v4643 = vand.u32 %v3986, 4294901760
        %v4644 = vsub.f32 %v3986, %v4643
        %v4645 = vand.u32 %v4644, 4294901760
        %4646 = vmatpush1.msra.mxu0 %v4645
        %4647 = vmatprep.subr.mxu0 0.0
        %v4648 = vand.u32 %v3987, 4294901760
        %v4649 = vsub.f32 %v3987, %v4648
        %v4650 = vand.u32 %v4649, 4294901760
        %4651 = vmatpush1.msra.mxu0 %v4650
        %4652 = vmatprep.subr.mxu0 0.0
        %v4653 = vand.u32 %v3988, 4294901760
        %v4654 = vsub.f32 %v3988, %v4653
        %v4655 = vand.u32 %v4654, 4294901760
        %4656 = vmatpush1.msra.mxu0 %v4655
        %4657 = vmatprep.subr.mxu0 0.0
        %v4658 = vand.u32 %v3989, 4294901760
        %v4659 = vsub.f32 %v3989, %v4658
        %v4660 = vand.u32 %v4659, 4294901760
        %4661 = vmatpush1.msra.mxu0 %v4660
        %4662 = vmatprep.subr.mxu0 0.0
        %v4663 = vand.u32 %v3990, 4294901760
        %v4664 = vsub.f32 %v3990, %v4663
        %v4665 = vand.u32 %v4664, 4294901760
        %4666 = vmatpush1.msra.mxu0 %v4665
        %4667 = vmatprep.subr.mxu0 0.0
        %v4668 = vand.u32 %v3991, 4294901760
        %v4669 = vsub.f32 %v3991, %v4668
        %v4670 = vand.u32 %v4669, 4294901760
        %4671 = vmatpush1.msra.mxu0 %v4670
        %4672 = vmatprep.subr.mxu0 0.0
        %v4673 = vand.u32 %v3992, 4294901760
        %v4674 = vsub.f32 %v3992, %v4673
        %v4675 = vand.u32 %v4674, 4294901760
        %4676 = vmatpush1.msra.mxu0 %v4675
        %4677 = vmatprep.subr.mxu0 0.0
        %v4678 = vand.u32 %v3993, 4294901760
        %v4679 = vsub.f32 %v3993, %v4678
        %v4680 = vand.u32 %v4679, 4294901760
        %4681 = vmatpush1.msra.mxu0 %v4680
        %4682 = vmatprep.subr.mxu0 0.0
        %v4683 = vand.u32 %v3994, 4294901760
        %v4684 = vsub.f32 %v3994, %v4683
        %v4685 = vand.u32 %v4684, 4294901760
        %4686 = vmatpush1.msra.mxu0 %v4685
        %4687 = vmatprep.subr.mxu0 0.0
        %v4688 = vand.u32 %v3995, 4294901760
        %v4689 = vsub.f32 %v3995, %v4688
        %v4690 = vand.u32 %v4689, 4294901760
        %4691 = vmatpush1.msra.mxu0 %v4690
        %4692 = vmatprep.subr.mxu0 0.0
        %v4693 = vand.u32 %v3996, 4294901760
        %v4694 = vsub.f32 %v3996, %v4693
        %v4695 = vand.u32 %v4694, 4294901760
        %4696 = vmatpush1.msra.mxu0 %v4695
        %4697 = vmatprep.subr.mxu0 0.0
        %v4698 = vand.u32 %v3997, 4294901760
        %v4699 = vsub.f32 %v3997, %v4698
        %v4700 = vand.u32 %v4699, 4294901760
        %4701 = vmatpush1.msra.mxu0 %v4700
        %4702 = vmatprep.subr.mxu0 0.0
        %v4703 = vand.u32 %v3998, 4294901760
        %v4704 = vsub.f32 %v3998, %v4703
        %v4705 = vand.u32 %v4704, 4294901760
        %4706 = vmatpush1.msra.mxu0 %v4705
        %4707 = vmatprep.subr.mxu0 0.0
        %v4708 = vand.u32 %v3999, 4294901760
        %v4709 = vsub.f32 %v3999, %v4708
        %v4710 = vand.u32 %v4709, 4294901760
        %4711 = vmatpush1.msra.mxu0 %v4710
        %4712 = vmatprep.subr.mxu0 0.0
        %v4713 = vand.u32 %v4000, 4294901760
        %v4714 = vsub.f32 %v4000, %v4713
        %v4715 = vand.u32 %v4714, 4294901760
        %4716 = vmatpush1.msra.mxu0 %v4715
        %4717 = vmatprep.subr.mxu0 0.0
        %v4718 = vand.u32 %v4001, 4294901760
        %v4719 = vsub.f32 %v4001, %v4718
        %v4720 = vand.u32 %v4719, 4294901760
        %4721 = vmatpush1.msra.mxu0 %v4720
        %4722 = vmatprep.subr.mxu0 0.0
        %v4723 = vand.u32 %v4002, 4294901760
        %v4724 = vsub.f32 %v4002, %v4723
        %v4725 = vand.u32 %v4724, 4294901760
        %4726 = vmatpush1.msra.mxu0 %v4725
        %4727 = vmatprep.subr.mxu0 0.0
        %v4728 = vand.u32 %v4003, 4294901760
        %v4729 = vsub.f32 %v4003, %v4728
        %v4730 = vand.u32 %v4729, 4294901760
        %4731 = vmatpush1.msra.mxu0 %v4730
        %4732 = vmatprep.subr.mxu0 0.0
        %v4733 = vand.u32 %v4004, 4294901760
        %v4734 = vsub.f32 %v4004, %v4733
        %v4735 = vand.u32 %v4734, 4294901760
        %4736 = vmatpush1.msra.mxu0 %v4735
        %4737 = vmatprep.subr.mxu0 0.0
        %v4738 = vand.u32 %v4005, 4294901760
        %v4739 = vsub.f32 %v4005, %v4738
        %v4740 = vand.u32 %v4739, 4294901760
        %4741 = vmatpush1.msra.mxu0 %v4740
        %4742 = vmatprep.subr.mxu0 0.0
        %v4743 = vand.u32 %v4006, 4294901760
        %v4744 = vsub.f32 %v4006, %v4743
        %v4745 = vand.u32 %v4744, 4294901760
        %4746 = vmatpush1.msra.mxu0 %v4745
        %4747 = vmatprep.subr.mxu0 0.0
        %v4748 = vand.u32 %v4007, 4294901760
        %v4749 = vsub.f32 %v4007, %v4748
        %v4750 = vand.u32 %v4749, 4294901760
        %4751 = vmatpush1.msra.mxu0 %v4750
        %4752 = vmatprep.subr.mxu0 0.0
        %v4753 = vand.u32 %v4008, 4294901760
        %v4754 = vsub.f32 %v4008, %v4753
        %v4755 = vand.u32 %v4754, 4294901760
        %4756 = vmatpush1.msra.mxu0 %v4755
        %4757 = vmatprep.subr.mxu0 0.0
        %v4758 = vand.u32 %v4009, 4294901760
        %v4759 = vsub.f32 %v4009, %v4758
        %v4760 = vand.u32 %v4759, 4294901760
        %4761 = vmatpush1.msra.mxu0 %v4760
        %4762 = vmatprep.subr.mxu0 0.0
        %v4763 = vand.u32 %v4015, 4294901760
        %v4764 = vsub.f32 %v4015, %v4763
        %v4765 = vand.u32 %v4764, 4294901760
        %4766 = vmatpush1.msra.mxu0 %v4765
        %v4767 = vand.u32 %v4012, 4294901760
        %4768 = vmatprep.mubr.f32.mxu0 %v4767
        %v4769 = vand.u32 %v3977, 4294901760
        %4770 = vmatmul.mubr.f32.gmra.mrb[0].mxu0 %v4769
        %v4771 = vpop.f32.mrb[0].mxu0
        %v4772 = vadd.f32 %v4604, %v4771
        %v4773 = vpop.f32.mrb[0].mxu0
        %4774 = vdwg.mxu0
        %4775 = vmatprep.subr.mxu0 0.0
        %v4776 = vand.u32 %v3979, 4294901760
        %4777 = vmatpush1.msra.mxu0 %v4776
        %4778 = vmatprep.subr.mxu0 0.0
        %v4779 = vand.u32 %v3980, 4294901760
        %4780 = vmatpush1.msra.mxu0 %v4779
        %4781 = vmatprep.subr.mxu0 0.0
        %v4782 = vand.u32 %v3981, 4294901760
        %4783 = vmatpush1.msra.mxu0 %v4782
        %4784 = vmatprep.subr.mxu0 0.0
        %v4785 = vand.u32 %v3982, 4294901760
        %4786 = vmatpush1.msra.mxu0 %v4785
        %4787 = vmatprep.subr.mxu0 0.0
        %v4788 = vand.u32 %v3983, 4294901760
        %4789 = vmatpush1.msra.mxu0 %v4788
        %4790 = vmatprep.subr.mxu0 0.0
        %v4791 = vand.u32 %v3984, 4294901760
        %4792 = vmatpush1.msra.mxu0 %v4791
        %4793 = vmatprep.subr.mxu0 0.0
        %v4794 = vand.u32 %v3985, 4294901760
        %4795 = vmatpush1.msra.mxu0 %v4794
        %4796 = vmatprep.subr.mxu0 0.0
        %v4797 = vand.u32 %v3986, 4294901760
        %4798 = vmatpush1.msra.mxu0 %v4797
        %4799 = vmatprep.subr.mxu0 0.0
        %v4800 = vand.u32 %v3987, 4294901760
        %4801 = vmatpush1.msra.mxu0 %v4800
        %4802 = vmatprep.subr.mxu0 0.0
        %v4803 = vand.u32 %v3988, 4294901760
        %4804 = vmatpush1.msra.mxu0 %v4803
        %4805 = vmatprep.subr.mxu0 0.0
        %v4806 = vand.u32 %v3989, 4294901760
        %4807 = vmatpush1.msra.mxu0 %v4806
        %4808 = vmatprep.subr.mxu0 0.0
        %v4809 = vand.u32 %v3990, 4294901760
        %4810 = vmatpush1.msra.mxu0 %v4809
        %4811 = vmatprep.subr.mxu0 0.0
        %v4812 = vand.u32 %v3991, 4294901760
        %4813 = vmatpush1.msra.mxu0 %v4812
        %4814 = vmatprep.subr.mxu0 0.0
        %v4815 = vand.u32 %v3992, 4294901760
        %4816 = vmatpush1.msra.mxu0 %v4815
        %4817 = vmatprep.subr.mxu0 0.0
        %v4818 = vand.u32 %v3993, 4294901760
        %4819 = vmatpush1.msra.mxu0 %v4818
        %4820 = vmatprep.subr.mxu0 0.0
        %v4821 = vand.u32 %v3994, 4294901760
        %4822 = vmatpush1.msra.mxu0 %v4821
        %4823 = vmatprep.subr.mxu0 0.0
        %v4824 = vand.u32 %v3995, 4294901760
        %4825 = vmatpush1.msra.mxu0 %v4824
        %4826 = vmatprep.subr.mxu0 0.0
        %v4827 = vand.u32 %v3996, 4294901760
        %4828 = vmatpush1.msra.mxu0 %v4827
        %4829 = vmatprep.subr.mxu0 0.0
        %v4830 = vand.u32 %v3997, 4294901760
        %4831 = vmatpush1.msra.mxu0 %v4830
        %4832 = vmatprep.subr.mxu0 0.0
        %v4833 = vand.u32 %v3998, 4294901760
        %4834 = vmatpush1.msra.mxu0 %v4833
        %4835 = vmatprep.subr.mxu0 0.0
        %v4836 = vand.u32 %v3999, 4294901760
        %4837 = vmatpush1.msra.mxu0 %v4836
        %4838 = vmatprep.subr.mxu0 0.0
        %v4839 = vand.u32 %v4000, 4294901760
        %4840 = vmatpush1.msra.mxu0 %v4839
        %4841 = vmatprep.subr.mxu0 0.0
        %v4842 = vand.u32 %v4001, 4294901760
        %4843 = vmatpush1.msra.mxu0 %v4842
        %4844 = vmatprep.subr.mxu0 0.0
        %v4845 = vand.u32 %v4002, 4294901760
        %4846 = vmatpush1.msra.mxu0 %v4845
        %4847 = vmatprep.subr.mxu0 0.0
        %v4848 = vand.u32 %v4003, 4294901760
        %4849 = vmatpush1.msra.mxu0 %v4848
        %4850 = vmatprep.subr.mxu0 0.0
        %v4851 = vand.u32 %v4004, 4294901760
        %4852 = vmatpush1.msra.mxu0 %v4851
        %4853 = vmatprep.subr.mxu0 0.0
        %v4854 = vand.u32 %v4005, 4294901760
        %4855 = vmatpush1.msra.mxu0 %v4854
        %4856 = vmatprep.subr.mxu0 0.0
        %v4857 = vand.u32 %v4006, 4294901760
        %4858 = vmatpush1.msra.mxu0 %v4857
        %4859 = vmatprep.subr.mxu0 0.0
        %v4860 = vand.u32 %v4007, 4294901760
        %4861 = vmatpush1.msra.mxu0 %v4860
        %4862 = vmatprep.subr.mxu0 0.0
        %v4863 = vand.u32 %v4008, 4294901760
        %4864 = vmatpush1.msra.mxu0 %v4863
        %4865 = vmatprep.subr.mxu0 0.0
        %v4866 = vand.u32 %v4009, 4294901760
        %4867 = vmatpush1.msra.mxu0 %v4866
        %4868 = vmatprep.subr.mxu0 0.0
        %v4869 = vand.u32 %v4015, 4294901760
        %4870 = vmatpush1.msra.mxu0 %v4869
        %v4871 = vand.u32 %v4012, 4294901760
        %4872 = vmatprep.mubr.f32.mxu0 %v4871
        %v4873 = vand.u32 %v3977, 4294901760
        %4874 = vmatmul.mubr.f32.gmra.mrb[0].mxu0 %v4873
        %v4875 = vpop.f32.mrb[0].mxu0
        %v4876 = vadd.f32 %v4772, %v4875
        %v4877 = vpop.f32.mrb[0].mxu0
        %4878 = vdwg.mxu0
        %v4879 = vld [vmem:[%s9] sm:$0xff]
        %4881 = vrot.lane.b32.xlu0 %v4876, 127
        %v4882 = vpop.permute.xlu0 %4881
        %4884 = vrot.lane.b32.xlu0 %v4876, 126
        %v4885 = vpop.permute.xlu0 %4884
        %v4887 = vld [vmem:[%s10] sm:$0xff]
        %4889 = vset.pattern.permute.xlu0 0
        %4890 = vperm.xlu0 %4889, %v4887
        %v4891 = vpop.permute.xlu0 %4890
        %v4894 = vsel %vm883, %v4879, 0
        %4896 = vmatprep.subr.mxu0 0.0
        %4897 = vmatpush1.msra.mxu0 %v4876
        %4898 = vmatprep.subr.mxu0 0.0
        %4899 = vmatpush1.msra.mxu0 %v4882
        %4900 = vmatprep.subr.mxu0 0.0
        %4901 = vmatpush1.msra.mxu0 %v4885
        %4902 = vmatprep.subr.mxu0 0.0
        %4903 = vmatpush1.msra.mxu0 0.0
        %4904 = vmatprep.subr.mxu0 0.0
        %4905 = vmatpush1.msra.mxu0 0.0
        %4906 = vmatprep.subr.mxu0 0.0
        %4907 = vmatpush1.msra.mxu0 0.0
        %4908 = vmatprep.subr.mxu0 0.0
        %4909 = vmatpush1.msra.mxu0 0.0
        %4910 = vmatprep.subr.mxu0 0.0
        %4911 = vmatpush1.msra.mxu0 0.0
        %4912 = vmatprep.subr.mxu0 0.0
        %4913 = vmatpush1.msra.mxu0 0.0
        %4914 = vmatprep.subr.mxu0 0.0
        %4915 = vmatpush1.msra.mxu0 0.0
        %4916 = vmatprep.subr.mxu0 0.0
        %4917 = vmatpush1.msra.mxu0 0.0
        %4918 = vmatprep.subr.mxu0 0.0
        %4919 = vmatpush1.msra.mxu0 0.0
        %4920 = vmatprep.subr.mxu0 0.0
        %4921 = vmatpush1.msra.mxu0 0.0
        %4922 = vmatprep.subr.mxu0 0.0
        %4923 = vmatpush1.msra.mxu0 0.0
        %4924 = vmatprep.subr.mxu0 0.0
        %4925 = vmatpush1.msra.mxu0 0.0
        %4926 = vmatprep.subr.mxu0 0.0
        %4927 = vmatpush1.msra.mxu0 0.0
        %4928 = vmatprep.subr.mxu0 0.0
        %4929 = vmatpush1.msra.mxu0 0.0
        %4930 = vmatprep.subr.mxu0 0.0
        %4931 = vmatpush1.msra.mxu0 0.0
        %4932 = vmatprep.subr.mxu0 0.0
        %4933 = vmatpush1.msra.mxu0 0.0
        %4934 = vmatprep.subr.mxu0 0.0
        %4935 = vmatpush1.msra.mxu0 0.0
        %4936 = vmatprep.subr.mxu0 0.0
        %4937 = vmatpush1.msra.mxu0 0.0
        %4938 = vmatprep.subr.mxu0 0.0
        %4939 = vmatpush1.msra.mxu0 0.0
        %4940 = vmatprep.subr.mxu0 0.0
        %4941 = vmatpush1.msra.mxu0 0.0
        %4942 = vmatprep.subr.mxu0 0.0
        %4943 = vmatpush1.msra.mxu0 0.0
        %4944 = vmatprep.subr.mxu0 0.0
        %4945 = vmatpush1.msra.mxu0 0.0
        %4946 = vmatprep.subr.mxu0 0.0
        %4947 = vmatpush1.msra.mxu0 0.0
        %4948 = vmatprep.subr.mxu0 0.0
        %4949 = vmatpush1.msra.mxu0 0.0
        %4950 = vmatprep.subr.mxu0 0.0
        %4951 = vmatpush1.msra.mxu0 0.0
        %4952 = vmatprep.subr.mxu0 0.0
        %4953 = vmatpush1.msra.mxu0 0.0
        %4954 = vmatprep.subr.mxu0 0.0
        %4955 = vmatpush1.msra.mxu0 0.0
        %4956 = vmatprep.subr.mxu0 0.0
        %4957 = vmatpush1.msra.mxu0 0.0
        %4958 = vmatprep.subr.mxu0 0.0
        %4959 = vmatpush1.msra.mxu0 0.0
        %4960 = vmatprep.mubr.f32.mxu0 0.0
        %4961 = vmatmul.mubr.f32.gmra.mrb[0].mxu0 %v4894
        %v4962 = vpop.f32.mrb[0].mxu0
        %v4963 = vadd.f32 %v4891, %v4962
        %v4964 = vpop.f32.mrb[0].mxu0
        %4965 = vdwg.mxu0
        %v4966 = vmax.f32 %v4963, 0.0
        %v4967 = vld [vmem:[%s11] sm:$0xff]
        %4969 = vrot.lane.b32.xlu0 %v4966, 127
        %v4970 = vpop.permute.xlu0 %4969
        %4972 = vrot.lane.b32.xlu0 %v4966, 126
        %v4973 = vpop.permute.xlu0 %4972
        %v4975 = vld [vmem:[%s12] sm:$0xff]
        %4977 = vset.pattern.permute.xlu0 0
        %4978 = vperm.xlu0 %4977, %v4975
        %v4979 = vpop.permute.xlu0 %4978
        %v4982 = vsel %vm883, %v4967, 0
        %4984 = vmatprep.subr.mxu0 0.0
        %4985 = vmatpush1.msra.mxu0 %v4966
        %4986 = vmatprep.subr.mxu0 0.0
        %4987 = vmatpush1.msra.mxu0 %v4970
        %4988 = vmatprep.subr.mxu0 0.0
        %4989 = vmatpush1.msra.mxu0 %v4973
        %4990 = vmatprep.subr.mxu0 0.0
        %4991 = vmatpush1.msra.mxu0 0.0
        %4992 = vmatprep.subr.mxu0 0.0
        %4993 = vmatpush1.msra.mxu0 0.0
        %4994 = vmatprep.subr.mxu0 0.0
        %4995 = vmatpush1.msra.mxu0 0.0
        %4996 = vmatprep.subr.mxu0 0.0
        %4997 = vmatpush1.msra.mxu0 0.0
        %4998 = vmatprep.subr.mxu0 0.0
        %4999 = vmatpush1.msra.mxu0 0.0
        %5000 = vmatprep.subr.mxu0 0.0
        %5001 = vmatpush1.msra.mxu0 0.0
        %5002 = vmatprep.subr.mxu0 0.0
        %5003 = vmatpush1.msra.mxu0 0.0
        %5004 = vmatprep.subr.mxu0 0.0
        %5005 = vmatpush1.msra.mxu0 0.0
        %5006 = vmatprep.subr.mxu0 0.0
        %5007 = vmatpush1.msra.mxu0 0.0
        %5008 = vmatprep.subr.mxu0 0.0
        %5009 = vmatpush1.msra.mxu0 0.0
        %5010 = vmatprep.subr.mxu0 0.0
        %5011 = vmatpush1.msra.mxu0 0.0
        %5012 = vmatprep.subr.mxu0 0.0
        %5013 = vmatpush1.msra.mxu0 0.0
        %5014 = vmatprep.subr.mxu0 0.0
        %5015 = vmatpush1.msra.mxu0 0.0
        %5016 = vmatprep.subr.mxu0 0.0
        %5017 = vmatpush1.msra.mxu0 0.0
        %5018 = vmatprep.subr.mxu0 0.0
        %5019 = vmatpush1.msra.mxu0 0.0
        %5020 = vmatprep.subr.mxu0 0.0
        %5021 = vmatpush1.msra.mxu0 0.0
        %5022 = vmatprep.subr.mxu0 0.0
        %5023 = vmatpush1.msra.mxu0 0.0
        %5024 = vmatprep.subr.mxu0 0.0
        %5025 = vmatpush1.msra.mxu0 0.0
        %5026 = vmatprep.subr.mxu0 0.0
        %5027 = vmatpush1.msra.mxu0 0.0
        %5028 = vmatprep.subr.mxu0 0.0
        %5029 = vmatpush1.msra.mxu0 0.0
        %5030 = vmatprep.subr.mxu0 0.0
        %5031 = vmatpush1.msra.mxu0 0.0
        %5032 = vmatprep.subr.mxu0 0.0
        %5033 = vmatpush1.msra.mxu0 0.0
        %5034 = vmatprep.subr.mxu0 0.0
        %5035 = vmatpush1.msra.mxu0 0.0
        %5036 = vmatprep.subr.mxu0 0.0
        %5037 = vmatpush1.msra.mxu0 0.0
        %5038 = vmatprep.subr.mxu0 0.0
        %5039 = vmatpush1.msra.mxu0 0.0
        %5040 = vmatprep.subr.mxu0 0.0
        %5041 = vmatpush1.msra.mxu0 0.0
        %5042 = vmatprep.subr.mxu0 0.0
        %5043 = vmatpush1.msra.mxu0 0.0
        %5044 = vmatprep.subr.mxu0 0.0
        %5045 = vmatpush1.msra.mxu0 0.0
        %5046 = vmatprep.subr.mxu0 0.0
        %5047 = vmatpush1.msra.mxu0 0.0
        %5048 = vmatprep.mubr.f32.mxu0 0.0
        %5049 = vmatmul.mubr.f32.gmra.mrb[0].mxu0 %v4982
        %v5050 = vpop.f32.mrb[0].mxu0
        %v5051 = vadd.f32 %v4979, %v5050
        %v5052 = vpop.f32.mrb[0].mxu0
        %5053 = vdwg.mxu0
        %v5054 = vmax.f32 %v5051, 0.0
        %5055 = vst.msk [vmem:[%s606] sm:$0xff] %vm1036, %v5054
        %p5056 = scmp.lt.s32.totalorder %s29, 3
        %s5057 = scalar_select %p5056, %s29, 3
        %s5058 = smul.addr %s5057, 4
        %s5059 = smul.addr %s5058, 8
        %s5060 = scalar_lea.vmem %s15, %s5059
        %p5061 = scmp.lt.s32.totalorder %s29, 3
        %s5062 = scalar_select %p5061, %s29, 3
        %s5063 = smul.addr %s5062, 2
        %s5064 = smul.addr %s5063, 8
        %s5065 = scalar_lea.vmem %s16, %s5064
        %p5066 = scmp.lt.s32.totalorder %s29, 3
        %s5067 = scalar_select %p5066, %s29, 3
        %s5068 = smul.addr %s5067, 8
        %s5069 = scalar_lea.vmem %s17, %s5068
        // Predicated region
        $region104: #{encoder_forward.1} parent=98 // pred_check
          %p5070 = pneg %p367
        $region105: #{encoder_forward.1} parent=98 // pred_check_branch
          %5072 = sbr.rel (%p5070) target = $region107
        $region106: #{encoder_forward.1} parent=98 // pred_region
          _
        $region107: #{encoder_forward.1} parent=98 // pred_fallthru
          _
        // Predicated region
        $region108: #{encoder_forward.1} parent=98 // pred_check
          %p5073 = pneg %p393
        $region109: #{encoder_forward.1} parent=98 // pred_check_branch
          %5075 = sbr.rel (%p5073) target = $region111
        $region110: #{encoder_forward.1} parent=98 // pred_region
          _
        $region111: #{encoder_forward.1} parent=98 // pred_fallthru
          _
        // Predicated region
        $region112: #{encoder_forward.1} parent=98 // pred_check
          %p5076 = pneg %p419
        $region113: #{encoder_forward.1} parent=98 // pred_check_branch
          %5078 = sbr.rel (%p5076) target = $region115
        $region114: #{encoder_forward.1} parent=98 // pred_region
          _
        $region115: #{encoder_forward.1} parent=98 // pred_fallthru
          _
      $region99: #{encoder_forward.1} parent=5 // pred_fallthru
        _
      %p5079 = scmp.le.s32.totalorder 2, %s24
      // Predicated region
      $region116: #{encoder_forward.1} parent=5 // pred_check
        %p5080 = pneg %p5079
      $region117: #{encoder_forward.1} parent=5 // pred_check_branch
        %5082 = sbr.rel (%p5080) target = $region119
      $region118: #{encoder_forward.1} parent=5 // pred_region
        %s5083 = ssub.s32 %s24, 2
        // Predicated region
        $region120: #{encoder_forward.1} parent=118 // pred_check
          %p5084 = pneg %p373
        $region121: #{encoder_forward.1} parent=118 // pred_check_branch
          %5086 = sbr.rel (%p5084) target = $region123
        $region122: #{encoder_forward.1} parent=118 // pred_region
          %p5087 = scmp.lt.s32.totalorder %s30, 3
          %s5088 = scalar_select %p5087, %s30, 3
          %s5089 = smul.addr %s5088, 4
          %s5090 = smul.addr %s5089, 8
          %s5091 = scalar_lea.vmem %s15, %s5090
        $region123: #{encoder_forward.1} parent=118 // pred_fallthru
          _
        // Predicated region
        $region124: #{encoder_forward.1} parent=118 // pred_check
          %p5092 = pneg %p399
        $region125: #{encoder_forward.1} parent=118 // pred_check_branch
          %5094 = sbr.rel (%p5092) target = $region127
        $region126: #{encoder_forward.1} parent=118 // pred_region
          %p5095 = scmp.lt.s32.totalorder %s30, 3
          %s5096 = scalar_select %p5095, %s30, 3
          %s5097 = smul.addr %s5096, 2
          %s5098 = smul.addr %s5097, 8
          %s5099 = scalar_lea.vmem %s16, %s5098
        $region127: #{encoder_forward.1} parent=118 // pred_fallthru
          _
        // Predicated region
        $region128: #{encoder_forward.1} parent=118 // pred_check
          %p5100 = pneg %p425
        $region129: #{encoder_forward.1} parent=118 // pred_check_branch
          %5102 = sbr.rel (%p5100) target = $region131
        $region130: #{encoder_forward.1} parent=118 // pred_region
          %p5103 = scmp.lt.s32.totalorder %s30, 3
          %s5104 = scalar_select %p5103, %s30, 3
          %s5105 = smul.addr %s5104, 8
          %s5106 = scalar_lea.vmem %s17, %s5105
        $region131: #{encoder_forward.1} parent=118 // pred_fallthru
          _
      $region119: #{encoder_forward.1} parent=5 // pred_fallthru
        _
    $region6: #{encoder_forward.1} parent=1 // loop_footer
      %s28 = sadd.s32 1, %s24
    $region7: #{encoder_forward.1} parent=1 // loop_footer_branch
      %23 = sbr.rel target = $region3
    $region8: #{encoder_forward.1} parent=1 // loop_exit
      _

</llo_original>
